<compile_context>
chip_gen: v7x
topology: tpu7x:2x2x1
jax: 0.10.0
libtpu: 0.0.40
codegen_flags: <defaults>
</compile_context>

<pallas_src>
import jax
import jax.numpy as jnp
from jax.experimental import pallas as pl
from jax.experimental.pallas import tpu as pltpu

Z_DIM = 10
IM_DIM = 784
IM_PAD = 896          # 7 * 128: lane-dense padded output width
HIDDEN = 128
BN_EPS = 1e-5


def _gen_block(h, w_ref, b_ref, g_ref, be_ref):
    """Fused Linear + BatchNorm1d(train-mode batch stats) + ReLU."""
    w = w_ref[...].astype(jnp.float32)            # bf16 storage -> f32 compute
    y = jnp.dot(h, w, preferred_element_type=jnp.float32) + b_ref[...]
    mu = jnp.mean(y, axis=0, keepdims=True)
    # E[y^2] - mu^2 saves one full-width subtract+square pass vs mean((y-mu)^2)
    var = jnp.maximum(jnp.mean(y * y, axis=0, keepdims=True) - mu * mu, 0.0)
    y_hat = (y - mu) * jax.lax.rsqrt(var + BN_EPS)
    return jnp.maximum(y_hat * g_ref[...] + be_ref[...], 0.0)


def generator_kernel(x_ref,
                     w1, b1, g1, be1,
                     w2, b2, g2, be2,
                     w3, b3, g3, be3,
                     w4, b4, g4, be4,
                     w5, b5,
                     out_ref):
    h = x_ref[...].astype(jnp.float32)
    h = _gen_block(h, w1, b1, g1, be1)     # (B, 128)
    h = _gen_block(h, w2, b2, g2, be2)     # (B, 256)
    h = _gen_block(h, w3, b3, g3, be3)     # (B, 512)
    h = _gen_block(h, w4, b4, g4, be4)     # (B, 1024)
    w5f = w5[...].astype(jnp.float32)
    logits = jnp.dot(h, w5f, preferred_element_type=jnp.float32) + b5[...]
    out_ref[...] = jax.nn.sigmoid(logits)  # (B, IM_PAD), lane-dense store


def generator_forward(noise, params):
    """noise: (B, Z_DIM) f32; params: flat list of 18 arrays (see make_params)."""
    B = noise.shape[0]
    n_in = 1 + len(params)
    vmem = pl.BlockSpec(memory_space=pltpu.MemorySpace.VMEM)
    out_padded = pl.pallas_call(
        generator_kernel,
        out_shape=jax.ShapeDtypeStruct((B, IM_PAD), jnp.float32),
        in_specs=[vmem] * n_in,
        out_specs=vmem,
        compiler_params=pltpu.CompilerParams(vmem_limit_bytes=32 * 1024 * 1024),
    )(noise, *params)
    return out_padded[:, :IM_DIM]          # slice padding back off


def make_params(key):
    """Deterministic synthetic parameters (PyTorch-like init, pre-transposed).

    Linear weights are bf16 (DMA-bound kernel: halves HBM weight traffic);
    biases / BN affine params stay f32.  The last layer's (w, b) are
    zero-padded from 784 to 896 output columns.
    """
    dims = [(Z_DIM, HIDDEN), (HIDDEN, HIDDEN * 2), (HIDDEN * 2, HIDDEN * 4),
            (HIDDEN * 4, HIDDEN * 8), (HIDDEN * 8, IM_DIM)]
    params = []
    keys = jax.random.split(key, 2 * len(dims))
    for i, (din, dout) in enumerate(dims):
        bound = 1.0 / jnp.sqrt(jnp.float32(din))
        w = jax.random.uniform(keys[2 * i], (din, dout), jnp.float32,
                               -bound, bound).astype(jnp.bfloat16)
        b = jax.random.uniform(keys[2 * i + 1], (1, dout), jnp.float32,
                               -bound, bound)
        if i == len(dims) - 1:             # pad w5/b5 to lane-dense width
            w = jnp.pad(w, ((0, 0), (0, IM_PAD - IM_DIM)))
            b = jnp.pad(b, ((0, 0), (0, IM_PAD - IM_DIM)))
        params.append(w)
        params.append(b)
        if i < 4:  # BatchNorm affine params (PyTorch defaults: gamma=1, beta=0)
            params.append(jnp.ones((1, dout), jnp.float32))
            params.append(jnp.zeros((1, dout), jnp.float32))
    return params


def generator_reference(noise, params):
    """Pure-JAX reference (f32 math on the same bf16-stored weights)."""
    idx = 0
    h = noise
    for _ in range(4):
        w, b, g, be = params[idx], params[idx + 1], params[idx + 2], params[idx + 3]
        idx += 4
        y = h @ w.astype(jnp.float32) + b
        mu = jnp.mean(y, axis=0, keepdims=True)
        var = jnp.mean((y - mu) ** 2, axis=0, keepdims=True)
        h = jnp.maximum(((y - mu) / jnp.sqrt(var + BN_EPS)) * g + be, 0.0)
    w, b = params[idx], params[idx + 1]
    out = jax.nn.sigmoid(h @ w.astype(jnp.float32) + b)
    return out[:, :IM_DIM]


if __name__ == "__main__":
    key = jax.random.PRNGKey(0)
    pkey, nkey = jax.random.split(key)
    params = make_params(pkey)

    B = 8
    noise = jax.random.normal(nkey, (B, Z_DIM), jnp.float32)

    out = generator_forward(noise, params)
    out = jax.block_until_ready(out)

    ref = generator_reference(noise, params)
    assert out.shape == (B, IM_DIM)
    assert jnp.allclose(out, ref, atol=1e-4, rtol=1e-4), "mismatch vs reference"

    print("KERNEL_OK")
</pallas_src>

<mosaic_0001>
module attributes {stable_mosaic.version = 11 : i64} {
  func.func @generator_kernel(%arg0: memref<8x10xf32, #tpu.memory_space<vmem>>, %arg1: memref<10x128xbf16, #tpu.memory_space<vmem>>, %arg2: memref<1x128xf32, #tpu.memory_space<vmem>>, %arg3: memref<1x128xf32, #tpu.memory_space<vmem>>, %arg4: memref<1x128xf32, #tpu.memory_space<vmem>>, %arg5: memref<128x256xbf16, #tpu.memory_space<vmem>>, %arg6: memref<1x256xf32, #tpu.memory_space<vmem>>, %arg7: memref<1x256xf32, #tpu.memory_space<vmem>>, %arg8: memref<1x256xf32, #tpu.memory_space<vmem>>, %arg9: memref<256x512xbf16, #tpu.memory_space<vmem>>, %arg10: memref<1x512xf32, #tpu.memory_space<vmem>>, %arg11: memref<1x512xf32, #tpu.memory_space<vmem>>, %arg12: memref<1x512xf32, #tpu.memory_space<vmem>>, %arg13: memref<512x1024xbf16, #tpu.memory_space<vmem>>, %arg14: memref<1x1024xf32, #tpu.memory_space<vmem>>, %arg15: memref<1x1024xf32, #tpu.memory_space<vmem>>, %arg16: memref<1x1024xf32, #tpu.memory_space<vmem>>, %arg17: memref<1024x896xbf16, #tpu.memory_space<vmem>>, %arg18: memref<1x896xf32, #tpu.memory_space<vmem>>, %arg19: memref<8x896xf32, #tpu.memory_space<vmem>>) attributes {dimension_semantics = [], scalar_prefetch = 0 : i64, scratch_operands = 0 : i64, tpu.core_type = #tpu.core_type<tc>} {
    %c0 = arith.constant 0 : index
    %c0_0 = arith.constant 0 : index
    %0 = vector.load %arg0[%c0, %c0_0] : memref<8x10xf32, #tpu.memory_space<vmem>>, vector<8x10xf32>
    %c0_1 = arith.constant 0 : index
    %c0_2 = arith.constant 0 : index
    %1 = vector.load %arg1[%c0_1, %c0_2] : memref<10x128xbf16, #tpu.memory_space<vmem>>, vector<10x128xbf16>
    %2 = arith.extf %1 : vector<10x128xbf16> to vector<10x128xf32>
    %cst = arith.constant dense<0.000000e+00> : vector<8x128xf32>
    %3 = tpu.matmul %0, %2, %cst {dimension_numbers = #tpu.dot_dimension_numbers<[1], [0], [0], [1], [0, 0, 1, 1], [], []>} : vector<8x10xf32>, vector<10x128xf32>, vector<8x128xf32> -> vector<8x128xf32>
    %c0_3 = arith.constant 0 : index
    %c0_4 = arith.constant 0 : index
    %4 = vector.load %arg2[%c0_3, %c0_4] : memref<1x128xf32, #tpu.memory_space<vmem>>, vector<1x128xf32>
    %5 = vector.broadcast %4 : vector<1x128xf32> to vector<8x128xf32>
    %6 = arith.addf %3, %5 : vector<8x128xf32>
    %cst_5 = arith.constant dense<0.000000e+00> : vector<128xf32>
    %7 = vector.multi_reduction <add>, %6, %cst_5 [0] : vector<8x128xf32> to vector<128xf32>
    %8 = vector.shape_cast %7 : vector<128xf32> to vector<1x128xf32>
    %cst_6 = arith.constant 8.000000e+00 : f32
    %9 = vector.broadcast %cst_6 : f32 to vector<1x128xf32>
    %10 = arith.divf %8, %9 : vector<1x128xf32>
    %11 = arith.mulf %6, %6 : vector<8x128xf32>
    %cst_7 = arith.constant dense<0.000000e+00> : vector<128xf32>
    %12 = vector.multi_reduction <add>, %11, %cst_7 [0] : vector<8x128xf32> to vector<128xf32>
    %13 = vector.shape_cast %12 : vector<128xf32> to vector<1x128xf32>
    %cst_8 = arith.constant 8.000000e+00 : f32
    %14 = vector.broadcast %cst_8 : f32 to vector<1x128xf32>
    %15 = arith.divf %13, %14 : vector<1x128xf32>
    %16 = arith.mulf %10, %10 : vector<1x128xf32>
    %17 = arith.subf %15, %16 : vector<1x128xf32>
    %cst_9 = arith.constant 0.000000e+00 : f32
    %18 = vector.broadcast %cst_9 : f32 to vector<1x128xf32>
    %19 = arith.maximumf %17, %18 : vector<1x128xf32>
    %20 = vector.broadcast %10 : vector<1x128xf32> to vector<8x128xf32>
    %21 = arith.subf %6, %20 : vector<8x128xf32>
    %cst_10 = arith.constant 9.99999974E-6 : f32
    %22 = vector.broadcast %cst_10 : f32 to vector<1x128xf32>
    %23 = arith.addf %19, %22 : vector<1x128xf32>
    %24 = math.rsqrt %23 : vector<1x128xf32>
    %25 = vector.broadcast %24 : vector<1x128xf32> to vector<8x128xf32>
    %26 = arith.mulf %21, %25 : vector<8x128xf32>
    %c0_11 = arith.constant 0 : index
    %c0_12 = arith.constant 0 : index
    %27 = vector.load %arg3[%c0_11, %c0_12] : memref<1x128xf32, #tpu.memory_space<vmem>>, vector<1x128xf32>
    %28 = vector.broadcast %27 : vector<1x128xf32> to vector<8x128xf32>
    %29 = arith.mulf %26, %28 : vector<8x128xf32>
    %c0_13 = arith.constant 0 : index
    %c0_14 = arith.constant 0 : index
    %30 = vector.load %arg4[%c0_13, %c0_14] : memref<1x128xf32, #tpu.memory_space<vmem>>, vector<1x128xf32>
    %31 = vector.broadcast %30 : vector<1x128xf32> to vector<8x128xf32>
    %32 = arith.addf %29, %31 : vector<8x128xf32>
    %cst_15 = arith.constant 0.000000e+00 : f32
    %33 = vector.broadcast %cst_15 : f32 to vector<8x128xf32>
    %34 = arith.maximumf %32, %33 : vector<8x128xf32>
    %c0_16 = arith.constant 0 : index
    %c0_17 = arith.constant 0 : index
    %35 = vector.load %arg5[%c0_16, %c0_17] : memref<128x256xbf16, #tpu.memory_space<vmem>>, vector<128x256xbf16>
    %36 = arith.extf %35 : vector<128x256xbf16> to vector<128x256xf32>
    %cst_18 = arith.constant dense<0.000000e+00> : vector<8x256xf32>
    %37 = tpu.matmul %34, %36, %cst_18 {dimension_numbers = #tpu.dot_dimension_numbers<[1], [0], [0], [1], [0, 0, 1, 1], [], []>} : vector<8x128xf32>, vector<128x256xf32>, vector<8x256xf32> -> vector<8x256xf32>
    %c0_19 = arith.constant 0 : index
    %c0_20 = arith.constant 0 : index
    %38 = vector.load %arg6[%c0_19, %c0_20] : memref<1x256xf32, #tpu.memory_space<vmem>>, vector<1x256xf32>
    %39 = vector.broadcast %38 : vector<1x256xf32> to vector<8x256xf32>
    %40 = arith.addf %37, %39 : vector<8x256xf32>
    %cst_21 = arith.constant dense<0.000000e+00> : vector<256xf32>
    %41 = vector.multi_reduction <add>, %40, %cst_21 [0] : vector<8x256xf32> to vector<256xf32>
    %42 = vector.shape_cast %41 : vector<256xf32> to vector<1x256xf32>
    %cst_22 = arith.constant 8.000000e+00 : f32
    %43 = vector.broadcast %cst_22 : f32 to vector<1x256xf32>
    %44 = arith.divf %42, %43 : vector<1x256xf32>
    %45 = arith.mulf %40, %40 : vector<8x256xf32>
    %cst_23 = arith.constant dense<0.000000e+00> : vector<256xf32>
    %46 = vector.multi_reduction <add>, %45, %cst_23 [0] : vector<8x256xf32> to vector<256xf32>
    %47 = vector.shape_cast %46 : vector<256xf32> to vector<1x256xf32>
    %cst_24 = arith.constant 8.000000e+00 : f32
    %48 = vector.broadcast %cst_24 : f32 to vector<1x256xf32>
    %49 = arith.divf %47, %48 : vector<1x256xf32>
    %50 = arith.mulf %44, %44 : vector<1x256xf32>
    %51 = arith.subf %49, %50 : vector<1x256xf32>
    %cst_25 = arith.constant 0.000000e+00 : f32
    %52 = vector.broadcast %cst_25 : f32 to vector<1x256xf32>
    %53 = arith.maximumf %51, %52 : vector<1x256xf32>
    %54 = vector.broadcast %44 : vector<1x256xf32> to vector<8x256xf32>
    %55 = arith.subf %40, %54 : vector<8x256xf32>
    %cst_26 = arith.constant 9.99999974E-6 : f32
    %56 = vector.broadcast %cst_26 : f32 to vector<1x256xf32>
    %57 = arith.addf %53, %56 : vector<1x256xf32>
    %58 = math.rsqrt %57 : vector<1x256xf32>
    %59 = vector.broadcast %58 : vector<1x256xf32> to vector<8x256xf32>
    %60 = arith.mulf %55, %59 : vector<8x256xf32>
    %c0_27 = arith.constant 0 : index
    %c0_28 = arith.constant 0 : index
    %61 = vector.load %arg7[%c0_27, %c0_28] : memref<1x256xf32, #tpu.memory_space<vmem>>, vector<1x256xf32>
    %62 = vector.broadcast %61 : vector<1x256xf32> to vector<8x256xf32>
    %63 = arith.mulf %60, %62 : vector<8x256xf32>
    %c0_29 = arith.constant 0 : index
    %c0_30 = arith.constant 0 : index
    %64 = vector.load %arg8[%c0_29, %c0_30] : memref<1x256xf32, #tpu.memory_space<vmem>>, vector<1x256xf32>
    %65 = vector.broadcast %64 : vector<1x256xf32> to vector<8x256xf32>
    %66 = arith.addf %63, %65 : vector<8x256xf32>
    %cst_31 = arith.constant 0.000000e+00 : f32
    %67 = vector.broadcast %cst_31 : f32 to vector<8x256xf32>
    %68 = arith.maximumf %66, %67 : vector<8x256xf32>
    %c0_32 = arith.constant 0 : index
    %c0_33 = arith.constant 0 : index
    %69 = vector.load %arg9[%c0_32, %c0_33] : memref<256x512xbf16, #tpu.memory_space<vmem>>, vector<256x512xbf16>
    %70 = arith.extf %69 : vector<256x512xbf16> to vector<256x512xf32>
    %cst_34 = arith.constant dense<0.000000e+00> : vector<8x512xf32>
    %71 = tpu.matmul %68, %70, %cst_34 {dimension_numbers = #tpu.dot_dimension_numbers<[1], [0], [0], [1], [0, 0, 1, 1], [], []>} : vector<8x256xf32>, vector<256x512xf32>, vector<8x512xf32> -> vector<8x512xf32>
    %c0_35 = arith.constant 0 : index
    %c0_36 = arith.constant 0 : index
    %72 = vector.load %arg10[%c0_35, %c0_36] : memref<1x512xf32, #tpu.memory_space<vmem>>, vector<1x512xf32>
    %73 = vector.broadcast %72 : vector<1x512xf32> to vector<8x512xf32>
    %74 = arith.addf %71, %73 : vector<8x512xf32>
    %cst_37 = arith.constant dense<0.000000e+00> : vector<512xf32>
    %75 = vector.multi_reduction <add>, %74, %cst_37 [0] : vector<8x512xf32> to vector<512xf32>
    %76 = vector.shape_cast %75 : vector<512xf32> to vector<1x512xf32>
    %cst_38 = arith.constant 8.000000e+00 : f32
    %77 = vector.broadcast %cst_38 : f32 to vector<1x512xf32>
    %78 = arith.divf %76, %77 : vector<1x512xf32>
    %79 = arith.mulf %74, %74 : vector<8x512xf32>
    %cst_39 = arith.constant dense<0.000000e+00> : vector<512xf32>
    %80 = vector.multi_reduction <add>, %79, %cst_39 [0] : vector<8x512xf32> to vector<512xf32>
    %81 = vector.shape_cast %80 : vector<512xf32> to vector<1x512xf32>
    %cst_40 = arith.constant 8.000000e+00 : f32
    %82 = vector.broadcast %cst_40 : f32 to vector<1x512xf32>
    %83 = arith.divf %81, %82 : vector<1x512xf32>
    %84 = arith.mulf %78, %78 : vector<1x512xf32>
    %85 = arith.subf %83, %84 : vector<1x512xf32>
    %cst_41 = arith.constant 0.000000e+00 : f32
    %86 = vector.broadcast %cst_41 : f32 to vector<1x512xf32>
    %87 = arith.maximumf %85, %86 : vector<1x512xf32>
    %88 = vector.broadcast %78 : vector<1x512xf32> to vector<8x512xf32>
    %89 = arith.subf %74, %88 : vector<8x512xf32>
    %cst_42 = arith.constant 9.99999974E-6 : f32
    %90 = vector.broadcast %cst_42 : f32 to vector<1x512xf32>
    %91 = arith.addf %87, %90 : vector<1x512xf32>
    %92 = math.rsqrt %91 : vector<1x512xf32>
    %93 = vector.broadcast %92 : vector<1x512xf32> to vector<8x512xf32>
    %94 = arith.mulf %89, %93 : vector<8x512xf32>
    %c0_43 = arith.constant 0 : index
    %c0_44 = arith.constant 0 : index
    %95 = vector.load %arg11[%c0_43, %c0_44] : memref<1x512xf32, #tpu.memory_space<vmem>>, vector<1x512xf32>
    %96 = vector.broadcast %95 : vector<1x512xf32> to vector<8x512xf32>
    %97 = arith.mulf %94, %96 : vector<8x512xf32>
    %c0_45 = arith.constant 0 : index
    %c0_46 = arith.constant 0 : index
    %98 = vector.load %arg12[%c0_45, %c0_46] : memref<1x512xf32, #tpu.memory_space<vmem>>, vector<1x512xf32>
    %99 = vector.broadcast %98 : vector<1x512xf32> to vector<8x512xf32>
    %100 = arith.addf %97, %99 : vector<8x512xf32>
    %cst_47 = arith.constant 0.000000e+00 : f32
    %101 = vector.broadcast %cst_47 : f32 to vector<8x512xf32>
    %102 = arith.maximumf %100, %101 : vector<8x512xf32>
    %c0_48 = arith.constant 0 : index
    %c0_49 = arith.constant 0 : index
    %103 = vector.load %arg13[%c0_48, %c0_49] : memref<512x1024xbf16, #tpu.memory_space<vmem>>, vector<512x1024xbf16>
    %104 = arith.extf %103 : vector<512x1024xbf16> to vector<512x1024xf32>
    %cst_50 = arith.constant dense<0.000000e+00> : vector<8x1024xf32>
    %105 = tpu.matmul %102, %104, %cst_50 {dimension_numbers = #tpu.dot_dimension_numbers<[1], [0], [0], [1], [0, 0, 1, 1], [], []>} : vector<8x512xf32>, vector<512x1024xf32>, vector<8x1024xf32> -> vector<8x1024xf32>
    %c0_51 = arith.constant 0 : index
    %c0_52 = arith.constant 0 : index
    %106 = vector.load %arg14[%c0_51, %c0_52] : memref<1x1024xf32, #tpu.memory_space<vmem>>, vector<1x1024xf32>
    %107 = vector.broadcast %106 : vector<1x1024xf32> to vector<8x1024xf32>
    %108 = arith.addf %105, %107 : vector<8x1024xf32>
    %cst_53 = arith.constant dense<0.000000e+00> : vector<1024xf32>
    %109 = vector.multi_reduction <add>, %108, %cst_53 [0] : vector<8x1024xf32> to vector<1024xf32>
    %110 = vector.shape_cast %109 : vector<1024xf32> to vector<1x1024xf32>
    %cst_54 = arith.constant 8.000000e+00 : f32
    %111 = vector.broadcast %cst_54 : f32 to vector<1x1024xf32>
    %112 = arith.divf %110, %111 : vector<1x1024xf32>
    %113 = arith.mulf %108, %108 : vector<8x1024xf32>
    %cst_55 = arith.constant dense<0.000000e+00> : vector<1024xf32>
    %114 = vector.multi_reduction <add>, %113, %cst_55 [0] : vector<8x1024xf32> to vector<1024xf32>
    %115 = vector.shape_cast %114 : vector<1024xf32> to vector<1x1024xf32>
    %cst_56 = arith.constant 8.000000e+00 : f32
    %116 = vector.broadcast %cst_56 : f32 to vector<1x1024xf32>
    %117 = arith.divf %115, %116 : vector<1x1024xf32>
    %118 = arith.mulf %112, %112 : vector<1x1024xf32>
    %119 = arith.subf %117, %118 : vector<1x1024xf32>
    %cst_57 = arith.constant 0.000000e+00 : f32
    %120 = vector.broadcast %cst_57 : f32 to vector<1x1024xf32>
    %121 = arith.maximumf %119, %120 : vector<1x1024xf32>
    %122 = vector.broadcast %112 : vector<1x1024xf32> to vector<8x1024xf32>
    %123 = arith.subf %108, %122 : vector<8x1024xf32>
    %cst_58 = arith.constant 9.99999974E-6 : f32
    %124 = vector.broadcast %cst_58 : f32 to vector<1x1024xf32>
    %125 = arith.addf %121, %124 : vector<1x1024xf32>
    %126 = math.rsqrt %125 : vector<1x1024xf32>
    %127 = vector.broadcast %126 : vector<1x1024xf32> to vector<8x1024xf32>
    %128 = arith.mulf %123, %127 : vector<8x1024xf32>
    %c0_59 = arith.constant 0 : index
    %c0_60 = arith.constant 0 : index
    %129 = vector.load %arg15[%c0_59, %c0_60] : memref<1x1024xf32, #tpu.memory_space<vmem>>, vector<1x1024xf32>
    %130 = vector.broadcast %129 : vector<1x1024xf32> to vector<8x1024xf32>
    %131 = arith.mulf %128, %130 : vector<8x1024xf32>
    %c0_61 = arith.constant 0 : index
    %c0_62 = arith.constant 0 : index
    %132 = vector.load %arg16[%c0_61, %c0_62] : memref<1x1024xf32, #tpu.memory_space<vmem>>, vector<1x1024xf32>
    %133 = vector.broadcast %132 : vector<1x1024xf32> to vector<8x1024xf32>
    %134 = arith.addf %131, %133 : vector<8x1024xf32>
    %cst_63 = arith.constant 0.000000e+00 : f32
    %135 = vector.broadcast %cst_63 : f32 to vector<8x1024xf32>
    %136 = arith.maximumf %134, %135 : vector<8x1024xf32>
    %c0_64 = arith.constant 0 : index
    %c0_65 = arith.constant 0 : index
    %137 = vector.load %arg17[%c0_64, %c0_65] : memref<1024x896xbf16, #tpu.memory_space<vmem>>, vector<1024x896xbf16>
    %138 = arith.extf %137 : vector<1024x896xbf16> to vector<1024x896xf32>
    %cst_66 = arith.constant dense<0.000000e+00> : vector<8x896xf32>
    %139 = tpu.matmul %136, %138, %cst_66 {dimension_numbers = #tpu.dot_dimension_numbers<[1], [0], [0], [1], [0, 0, 1, 1], [], []>} : vector<8x1024xf32>, vector<1024x896xf32>, vector<8x896xf32> -> vector<8x896xf32>
    %c0_67 = arith.constant 0 : index
    %c0_68 = arith.constant 0 : index
    %140 = vector.load %arg18[%c0_67, %c0_68] : memref<1x896xf32, #tpu.memory_space<vmem>>, vector<1x896xf32>
    %141 = vector.broadcast %140 : vector<1x896xf32> to vector<8x896xf32>
    %142 = arith.addf %139, %141 : vector<8x896xf32>
    %143 = arith.negf %142 : vector<8x896xf32>
    %144 = math.exp %143 : vector<8x896xf32>
    %cst_69 = arith.constant 1.000000e+00 : f32
    %145 = vector.broadcast %cst_69 : f32 to vector<8x896xf32>
    %146 = arith.addf %145, %144 : vector<8x896xf32>
    %147 = arith.divf %145, %146 : vector<8x896xf32>
    %c0_70 = arith.constant 0 : index
    %c0_71 = arith.constant 0 : index
    %148 = vector.load %arg19[%c0_70, %c0_71] : memref<8x896xf32, #tpu.memory_space<vmem>>, vector<8x896xf32>
    tpu.vector_store %arg19[%c0_70, %c0_71], %147 {strides = array<i32>} : memref<8x896xf32, #tpu.memory_space<vmem>>, vector<8x896xf32>,
    return
  }
}

</mosaic_0001>

<llo_original>
// kernel: tpu_custom_call.1
$region0: #{tpu_custom_call.1}
  #allocation0 [shape = 'u32[]', space=smem, size = 0x4, offset = 0x4, fixed_abs, tag = 'smem constant byte address 0x4 - core index']
  #allocation1 [shape = 'u32[144,128]{1,0:T(1,128)}', space=vmem, size = 0x12000, scoped, tag = 'internal scratch']
  %s0 = inlined_call_operand.hbm [shape: f32[8,10], index: 0, kind: input, shape index: {}]
  %s1 = inlined_call_operand.hbm [shape: bf16[10,128], index: 1, kind: input, shape index: {}]
  %s2 = inlined_call_operand.hbm [shape: f32[1,128], index: 2, kind: input, shape index: {}]
  %s3 = inlined_call_operand.hbm [shape: f32[1,128], index: 3, kind: input, shape index: {}]
  %s4 = inlined_call_operand.hbm [shape: f32[1,128], index: 4, kind: input, shape index: {}]
  %s5 = inlined_call_operand.hbm [shape: bf16[128,256], index: 5, kind: input, shape index: {}]
  %s6 = inlined_call_operand.hbm [shape: f32[1,256], index: 6, kind: input, shape index: {}]
  %s7 = inlined_call_operand.hbm [shape: f32[1,256], index: 7, kind: input, shape index: {}]
  %s8 = inlined_call_operand.hbm [shape: f32[1,256], index: 8, kind: input, shape index: {}]
  %s9 = inlined_call_operand.hbm [shape: bf16[256,512], index: 9, kind: input, shape index: {}]
  %s10 = inlined_call_operand.hbm [shape: f32[1,512], index: 10, kind: input, shape index: {}]
  %s11 = inlined_call_operand.hbm [shape: f32[1,512], index: 11, kind: input, shape index: {}]
  %s12 = inlined_call_operand.hbm [shape: f32[1,512], index: 12, kind: input, shape index: {}]
  %s13 = inlined_call_operand.hbm [shape: bf16[512,1024], index: 13, kind: input, shape index: {}]
  %s14 = inlined_call_operand.hbm [shape: f32[1,1024], index: 14, kind: input, shape index: {}]
  %s15 = inlined_call_operand.hbm [shape: f32[1,1024], index: 15, kind: input, shape index: {}]
  %s16 = inlined_call_operand.hbm [shape: f32[1,1024], index: 16, kind: input, shape index: {}]
  %s17 = inlined_call_operand.hbm [shape: bf16[1024,896], index: 17, kind: input, shape index: {}]
  %s18 = inlined_call_operand.hbm [shape: f32[1,896], index: 18, kind: input, shape index: {}]
  %s19 = inlined_call_operand.hbm [shape: f32[8,896], index: 19, kind: output, shape index: {}]
  %s20 = sld [smem:[#allocation0]]
  $region162: #{tpu_custom_call.1} parent=0
    _
  %s22 = ssub.s32 1, %s20
  %s23 = scalar_select 0, %s22, %s20
  $region1: #{tpu_custom_call.1} parent=0
    #allocation2 [shape = 'u8[4096]{0}', space=vmem, size = 0x1000, scoped, tag = 'input window, operand 0, single buffered']
    #allocation3 [shape = 's32[1]{0}', space=sflag, size = 0x4, scoped, tag = 'scoped memory for tpu_custom_call.1']
    #allocation4 [shape = 's32[1]{0}', space=sflag, size = 0x4, scoped, tag = 'scoped memory for tpu_custom_call.1']
    #allocation5 [shape = 'u8[4096]{0}', space=vmem, size = 0x1000, scoped, tag = 'input window, operand 1, single buffered']
    #allocation6 [shape = 's32[1]{0}', space=sflag, size = 0x4, scoped, tag = 'scoped memory for tpu_custom_call.1']
    #allocation7 [shape = 'u8[512]{0}', space=vmem, size = 0x400, scoped, tag = 'input window, operand 2, single buffered']
    #allocation8 [shape = 'u8[512]{0}', space=vmem, size = 0x400, scoped, tag = 'input window, operand 3, single buffered']
    #allocation9 [shape = 's32[1]{0}', space=sflag, size = 0x4, scoped, tag = 'scoped memory for tpu_custom_call.1']
    #allocation10 [shape = 'u8[512]{0}', space=vmem, size = 0x400, scoped, tag = 'input window, operand 4, single buffered']
    #allocation11 [shape = 'u8[65536]{0}', space=vmem, size = 0x10000, scoped, tag = 'input window, operand 5, single buffered']
    #allocation12 [shape = 's32[1]{0}', space=sflag, size = 0x4, scoped, tag = 'scoped memory for tpu_custom_call.1']
    #allocation13 [shape = 'u8[1024]{0}', space=vmem, size = 0x400, scoped, tag = 'input window, operand 6, single buffered']
    #allocation14 [shape = 'u8[1024]{0}', space=vmem, size = 0x400, scoped, tag = 'input window, operand 7, single buffered']
    #allocation15 [shape = 's32[1]{0}', space=sflag, size = 0x4, scoped, tag = 'scoped memory for tpu_custom_call.1']
    #allocation16 [shape = 'u8[1024]{0}', space=vmem, size = 0x400, scoped, tag = 'input window, operand 8, single buffered']
    #allocation17 [shape = 'u8[262144]{0}', space=vmem, size = 0x40000, scoped, tag = 'input window, operand 9, single buffered']
    #allocation18 [shape = 's32[1]{0}', space=sflag, size = 0x4, scoped, tag = 'scoped memory for tpu_custom_call.1']
    #allocation19 [shape = 'u8[2048]{0}', space=vmem, size = 0x800, scoped, tag = 'input window, operand 10, single buffered']
    #allocation20 [shape = 'u8[2048]{0}', space=vmem, size = 0x800, scoped, tag = 'input window, operand 11, single buffered']
    #allocation21 [shape = 's32[1]{0}', space=sflag, size = 0x4, scoped, tag = 'scoped memory for tpu_custom_call.1']
    #allocation22 [shape = 'u8[2048]{0}', space=vmem, size = 0x800, scoped, tag = 'input window, operand 12, single buffered']
    #allocation23 [shape = 'u8[1048576]{0}', space=vmem, size = 0x100000, scoped, tag = 'input window, operand 13, single buffered']
    #allocation24 [shape = 's32[1]{0}', space=sflag, size = 0x4, scoped, tag = 'scoped memory for tpu_custom_call.1']
    #allocation25 [shape = 'u8[4096]{0}', space=vmem, size = 0x1000, scoped, tag = 'input window, operand 14, single buffered']
    #allocation26 [shape = 'u8[4096]{0}', space=vmem, size = 0x1000, scoped, tag = 'input window, operand 15, single buffered']
    #allocation27 [shape = 's32[1]{0}', space=sflag, size = 0x4, scoped, tag = 'scoped memory for tpu_custom_call.1']
    #allocation28 [shape = 'u8[4096]{0}', space=vmem, size = 0x1000, scoped, tag = 'input window, operand 16, single buffered']
    #allocation29 [shape = 'u8[1835008]{0}', space=vmem, size = 0x1c0000, scoped, tag = 'input window, operand 17, single buffered']
    #allocation30 [shape = 's32[1]{0}', space=sflag, size = 0x4, scoped, tag = 'scoped memory for tpu_custom_call.1']
    #allocation31 [shape = 'u8[3584]{0}', space=vmem, size = 0x1000, scoped, tag = 'input window, operand 18, single buffered']
    #allocation32 [shape = 'u8[28672]{0}', space=vmem, size = 0x7000, scoped, tag = 'output window, operand 0, single buffered']
    %24 = vsyncpa [#allocation3], 0
    %25 = vsyncpa [#allocation6], 0
    %26 = vsyncpa [#allocation9], 0
    %27 = vsyncpa [#allocation12], 0
    %28 = vsyncpa [#allocation15], 0
    %29 = vsyncpa [#allocation18], 0
    %30 = vsyncpa [#allocation21], 0
    %31 = vsyncpa [#allocation24], 0
    %32 = vsyncpa [#allocation27], 0
    %33 = vsyncpa [#allocation30], 0
    %34 = vsyncpa [#allocation4], 0
    // Predicated region
    $region2: #{tpu_custom_call.1} parent=1 // pred_check
      _
    $region3: #{tpu_custom_call.1} parent=1 // pred_check_branch
      %36 = sbr.rel (0) target = $region5
    $region4: #{tpu_custom_call.1} parent=1 // pred_region
      %s38 = ssub.s32 128, 128
      %39 = vsyncadd [#allocation3], %s38
      %s41 = sshll.u32 [#allocation2], 4
      %s42 = int_to_ptr.vmem [resolvable:$true] %s41
      %44 = dma.hbm_to_vmem [thread:$0]  %s0, 128, %s42, [#allocation3]
    $region5: #{tpu_custom_call.1} parent=1 // pred_fallthru
      _
    // Predicated region
    $region6: #{tpu_custom_call.1} parent=1 // pred_check
      _
    $region7: #{tpu_custom_call.1} parent=1 // pred_check_branch
      %46 = sbr.rel (0) target = $region9
    $region8: #{tpu_custom_call.1} parent=1 // pred_region
      %s48 = ssub.s32 128, 128
      %49 = vsyncadd [#allocation6], %s48
      %s50 = sshll.u32 [#allocation5], 4
      %s51 = int_to_ptr.vmem [resolvable:$true] %s50
      %56 = dma.hbm_to_vmem [thread:$0]  %s1, 128, %s51, [#allocation6], 64, 64, 4
    $region9: #{tpu_custom_call.1} parent=1 // pred_fallthru
      _
    // Predicated region
    $region10: #{tpu_custom_call.1} parent=1 // pred_check
      _
    $region11: #{tpu_custom_call.1} parent=1 // pred_check_branch
      %58 = sbr.rel (0) target = $region13
    $region12: #{tpu_custom_call.1} parent=1 // pred_region
      %s60 = ssub.s32 16, 16
      %61 = vsyncadd [#allocation6], %s60
      %s63 = sshll.u32 [#allocation7], 4
      %s64 = int_to_ptr.vmem [resolvable:$true] %s63
      %66 = dma.hbm_to_vmem [thread:$0]  %s2, 16, %s64, [#allocation6]
    $region13: #{tpu_custom_call.1} parent=1 // pred_fallthru
      _
    // Predicated region
    $region14: #{tpu_custom_call.1} parent=1 // pred_check
      _
    $region15: #{tpu_custom_call.1} parent=1 // pred_check_branch
      %68 = sbr.rel (0) target = $region17
    $region16: #{tpu_custom_call.1} parent=1 // pred_region
      %s70 = ssub.s32 16, 16
      %71 = vsyncadd [#allocation9], %s70
      %s73 = sshll.u32 [#allocation8], 4
      %s74 = int_to_ptr.vmem [resolvable:$true] %s73
      %76 = dma.hbm_to_vmem [thread:$0]  %s3, 16, %s74, [#allocation9]
    $region17: #{tpu_custom_call.1} parent=1 // pred_fallthru
      _
    // Predicated region
    $region18: #{tpu_custom_call.1} parent=1 // pred_check
      _
    $region19: #{tpu_custom_call.1} parent=1 // pred_check_branch
      %78 = sbr.rel (0) target = $region21
    $region20: #{tpu_custom_call.1} parent=1 // pred_region
      %s80 = ssub.s32 16, 16
      %81 = vsyncadd [#allocation9], %s80
      %s83 = sshll.u32 [#allocation10], 4
      %s84 = int_to_ptr.vmem [resolvable:$true] %s83
      %86 = dma.hbm_to_vmem [thread:$0]  %s4, 16, %s84, [#allocation9]
    $region21: #{tpu_custom_call.1} parent=1 // pred_fallthru
      _
    // Predicated region
    $region22: #{tpu_custom_call.1} parent=1 // pred_check
      _
    $region23: #{tpu_custom_call.1} parent=1 // pred_check_branch
      %88 = sbr.rel (0) target = $region25
    $region24: #{tpu_custom_call.1} parent=1 // pred_region
      %s90 = ssub.s32 2048, 2048
      %91 = vsyncadd [#allocation12], %s90
      %s92 = sshll.u32 [#allocation11], 4
      %s93 = int_to_ptr.vmem [resolvable:$true] %s92
      %98 = dma.hbm_to_vmem [thread:$0]  %s5, 2048, %s93, [#allocation12], 128, 128, 8
    $region25: #{tpu_custom_call.1} parent=1 // pred_fallthru
      _
    // Predicated region
    $region26: #{tpu_custom_call.1} parent=1 // pred_check
      _
    $region27: #{tpu_custom_call.1} parent=1 // pred_check_branch
      %100 = sbr.rel (0) target = $region29
    $region28: #{tpu_custom_call.1} parent=1 // pred_region
      %s102 = ssub.s32 32, 32
      %103 = vsyncadd [#allocation12], %s102
      %s105 = sshll.u32 [#allocation13], 4
      %s106 = int_to_ptr.vmem [resolvable:$true] %s105
      %108 = dma.hbm_to_vmem [thread:$0]  %s6, 32, %s106, [#allocation12]
    $region29: #{tpu_custom_call.1} parent=1 // pred_fallthru
      _
    // Predicated region
    $region30: #{tpu_custom_call.1} parent=1 // pred_check
      _
    $region31: #{tpu_custom_call.1} parent=1 // pred_check_branch
      %110 = sbr.rel (0) target = $region33
    $region32: #{tpu_custom_call.1} parent=1 // pred_region
      %s112 = ssub.s32 32, 32
      %113 = vsyncadd [#allocation15], %s112
      %s115 = sshll.u32 [#allocation14], 4
      %s116 = int_to_ptr.vmem [resolvable:$true] %s115
      %118 = dma.hbm_to_vmem [thread:$0]  %s7, 32, %s116, [#allocation15]
    $region33: #{tpu_custom_call.1} parent=1 // pred_fallthru
      _
    // Predicated region
    $region34: #{tpu_custom_call.1} parent=1 // pred_check
      _
    $region35: #{tpu_custom_call.1} parent=1 // pred_check_branch
      %120 = sbr.rel (0) target = $region37
    $region36: #{tpu_custom_call.1} parent=1 // pred_region
      %s122 = ssub.s32 32, 32
      %123 = vsyncadd [#allocation15], %s122
      %s125 = sshll.u32 [#allocation16], 4
      %s126 = int_to_ptr.vmem [resolvable:$true] %s125
      %128 = dma.hbm_to_vmem [thread:$0]  %s8, 32, %s126, [#allocation15]
    $region37: #{tpu_custom_call.1} parent=1 // pred_fallthru
      _
    // Predicated region
    $region38: #{tpu_custom_call.1} parent=1 // pred_check
      _
    $region39: #{tpu_custom_call.1} parent=1 // pred_check_branch
      %130 = sbr.rel (0) target = $region41
    $region40: #{tpu_custom_call.1} parent=1 // pred_region
      %s132 = ssub.s32 8192, 8192
      %133 = vsyncadd [#allocation18], %s132
      %s134 = sshll.u32 [#allocation17], 4
      %s135 = int_to_ptr.vmem [resolvable:$true] %s134
      %140 = dma.hbm_to_vmem [thread:$0]  %s9, 8192, %s135, [#allocation18], 256, 256, 16
    $region41: #{tpu_custom_call.1} parent=1 // pred_fallthru
      _
    // Predicated region
    $region42: #{tpu_custom_call.1} parent=1 // pred_check
      _
    $region43: #{tpu_custom_call.1} parent=1 // pred_check_branch
      %142 = sbr.rel (0) target = $region45
    $region44: #{tpu_custom_call.1} parent=1 // pred_region
      %s144 = ssub.s32 64, 64
      %145 = vsyncadd [#allocation18], %s144
      %s147 = sshll.u32 [#allocation19], 4
      %s148 = int_to_ptr.vmem [resolvable:$true] %s147
      %150 = dma.hbm_to_vmem [thread:$0]  %s10, 64, %s148, [#allocation18]
    $region45: #{tpu_custom_call.1} parent=1 // pred_fallthru
      _
    // Predicated region
    $region46: #{tpu_custom_call.1} parent=1 // pred_check
      _
    $region47: #{tpu_custom_call.1} parent=1 // pred_check_branch
      %152 = sbr.rel (0) target = $region49
    $region48: #{tpu_custom_call.1} parent=1 // pred_region
      %s154 = ssub.s32 64, 64
      %155 = vsyncadd [#allocation21], %s154
      %s157 = sshll.u32 [#allocation20], 4
      %s158 = int_to_ptr.vmem [resolvable:$true] %s157
      %160 = dma.hbm_to_vmem [thread:$0]  %s11, 64, %s158, [#allocation21]
    $region49: #{tpu_custom_call.1} parent=1 // pred_fallthru
      _
    // Predicated region
    $region50: #{tpu_custom_call.1} parent=1 // pred_check
      _
    $region51: #{tpu_custom_call.1} parent=1 // pred_check_branch
      %162 = sbr.rel (0) target = $region53
    $region52: #{tpu_custom_call.1} parent=1 // pred_region
      %s164 = ssub.s32 64, 64
      %165 = vsyncadd [#allocation21], %s164
      %s167 = sshll.u32 [#allocation22], 4
      %s168 = int_to_ptr.vmem [resolvable:$true] %s167
      %170 = dma.hbm_to_vmem [thread:$0]  %s12, 64, %s168, [#allocation21]
    $region53: #{tpu_custom_call.1} parent=1 // pred_fallthru
      _
    // Predicated region
    $region54: #{tpu_custom_call.1} parent=1 // pred_check
      _
    $region55: #{tpu_custom_call.1} parent=1 // pred_check_branch
      %172 = sbr.rel (0) target = $region57
    $region56: #{tpu_custom_call.1} parent=1 // pred_region
      %s174 = ssub.s32 32768, 32768
      %175 = vsyncadd [#allocation24], %s174
      %s176 = sshll.u32 [#allocation23], 4
      %s177 = int_to_ptr.vmem [resolvable:$true] %s176
      %182 = dma.hbm_to_vmem [thread:$0]  %s13, 32768, %s177, [#allocation24], 512, 512, 32
    $region57: #{tpu_custom_call.1} parent=1 // pred_fallthru
      _
    // Predicated region
    $region58: #{tpu_custom_call.1} parent=1 // pred_check
      _
    $region59: #{tpu_custom_call.1} parent=1 // pred_check_branch
      %184 = sbr.rel (0) target = $region61
    $region60: #{tpu_custom_call.1} parent=1 // pred_region
      %s186 = ssub.s32 128, 128
      %187 = vsyncadd [#allocation24], %s186
      %s189 = sshll.u32 [#allocation25], 4
      %s190 = int_to_ptr.vmem [resolvable:$true] %s189
      %192 = dma.hbm_to_vmem [thread:$0]  %s14, 128, %s190, [#allocation24]
    $region61: #{tpu_custom_call.1} parent=1 // pred_fallthru
      _
    // Predicated region
    $region62: #{tpu_custom_call.1} parent=1 // pred_check
      _
    $region63: #{tpu_custom_call.1} parent=1 // pred_check_branch
      %194 = sbr.rel (0) target = $region65
    $region64: #{tpu_custom_call.1} parent=1 // pred_region
      %s196 = ssub.s32 128, 128
      %197 = vsyncadd [#allocation27], %s196
      %s199 = sshll.u32 [#allocation26], 4
      %s200 = int_to_ptr.vmem [resolvable:$true] %s199
      %202 = dma.hbm_to_vmem [thread:$0]  %s15, 128, %s200, [#allocation27]
    $region65: #{tpu_custom_call.1} parent=1 // pred_fallthru
      _
    // Predicated region
    $region66: #{tpu_custom_call.1} parent=1 // pred_check
      _
    $region67: #{tpu_custom_call.1} parent=1 // pred_check_branch
      %204 = sbr.rel (0) target = $region69
    $region68: #{tpu_custom_call.1} parent=1 // pred_region
      %s206 = ssub.s32 128, 128
      %207 = vsyncadd [#allocation27], %s206
      %s209 = sshll.u32 [#allocation28], 4
      %s210 = int_to_ptr.vmem [resolvable:$true] %s209
      %212 = dma.hbm_to_vmem [thread:$0]  %s16, 128, %s210, [#allocation27]
    $region69: #{tpu_custom_call.1} parent=1 // pred_fallthru
      _
    // Predicated region
    $region70: #{tpu_custom_call.1} parent=1 // pred_check
      _
    $region71: #{tpu_custom_call.1} parent=1 // pred_check_branch
      %214 = sbr.rel (0) target = $region73
    $region72: #{tpu_custom_call.1} parent=1 // pred_region
      %s216 = ssub.s32 57344, 57344
      %217 = vsyncadd [#allocation30], %s216
      %s218 = sshll.u32 [#allocation29], 4
      %s219 = int_to_ptr.vmem [resolvable:$true] %s218
      %224 = dma.hbm_to_vmem [thread:$0]  %s17, 57344, %s219, [#allocation30], 448, 448, 28
    $region73: #{tpu_custom_call.1} parent=1 // pred_fallthru
      _
    // Predicated region
    $region74: #{tpu_custom_call.1} parent=1 // pred_check
      _
    $region75: #{tpu_custom_call.1} parent=1 // pred_check_branch
      %226 = sbr.rel (0) target = $region77
    $region76: #{tpu_custom_call.1} parent=1 // pred_region
      %s228 = ssub.s32 112, 112
      %229 = vsyncadd [#allocation30], %s228
      %s231 = sshll.u32 [#allocation31], 4
      %s232 = int_to_ptr.vmem [resolvable:$true] %s231
      %234 = dma.hbm_to_vmem [thread:$0]  %s18, 112, %s232, [#allocation30]
    $region77: #{tpu_custom_call.1} parent=1 // pred_fallthru
      _
    // Predicated region
    $region78: #{tpu_custom_call.1} parent=1 // pred_check
      _
    $region79: #{tpu_custom_call.1} parent=1 // pred_check_branch
      %236 = sbr.rel (0) target = $region81
    $region80: #{tpu_custom_call.1} parent=1 // pred_region
      %237 = dma.done [#allocation3], 128
    $region81: #{tpu_custom_call.1} parent=1 // pred_fallthru
      _
    // Predicated region
    $region82: #{tpu_custom_call.1} parent=1 // pred_check
      _
    $region83: #{tpu_custom_call.1} parent=1 // pred_check_branch
      %239 = sbr.rel (0) target = $region85
    $region84: #{tpu_custom_call.1} parent=1 // pred_region
      %240 = dma.done [#allocation6], 128
    $region85: #{tpu_custom_call.1} parent=1 // pred_fallthru
      _
    // Predicated region
    $region86: #{tpu_custom_call.1} parent=1 // pred_check
      _
    $region87: #{tpu_custom_call.1} parent=1 // pred_check_branch
      %242 = sbr.rel (0) target = $region89
    $region88: #{tpu_custom_call.1} parent=1 // pred_region
      %243 = dma.done [#allocation6], 16
    $region89: #{tpu_custom_call.1} parent=1 // pred_fallthru
      _
    // Predicated region
    $region90: #{tpu_custom_call.1} parent=1 // pred_check
      _
    $region91: #{tpu_custom_call.1} parent=1 // pred_check_branch
      %245 = sbr.rel (0) target = $region93
    $region92: #{tpu_custom_call.1} parent=1 // pred_region
      %246 = dma.done [#allocation9], 16
    $region93: #{tpu_custom_call.1} parent=1 // pred_fallthru
      _
    // Predicated region
    $region94: #{tpu_custom_call.1} parent=1 // pred_check
      _
    $region95: #{tpu_custom_call.1} parent=1 // pred_check_branch
      %248 = sbr.rel (0) target = $region97
    $region96: #{tpu_custom_call.1} parent=1 // pred_region
      %249 = dma.done [#allocation9], 16
    $region97: #{tpu_custom_call.1} parent=1 // pred_fallthru
      _
    // Predicated region
    $region98: #{tpu_custom_call.1} parent=1 // pred_check
      _
    $region99: #{tpu_custom_call.1} parent=1 // pred_check_branch
      %251 = sbr.rel (0) target = $region101
    $region100: #{tpu_custom_call.1} parent=1 // pred_region
      %252 = dma.done [#allocation12], 2048
    $region101: #{tpu_custom_call.1} parent=1 // pred_fallthru
      _
    // Predicated region
    $region102: #{tpu_custom_call.1} parent=1 // pred_check
      _
    $region103: #{tpu_custom_call.1} parent=1 // pred_check_branch
      %254 = sbr.rel (0) target = $region105
    $region104: #{tpu_custom_call.1} parent=1 // pred_region
      %255 = dma.done [#allocation12], 32
    $region105: #{tpu_custom_call.1} parent=1 // pred_fallthru
      _
    // Predicated region
    $region106: #{tpu_custom_call.1} parent=1 // pred_check
      _
    $region107: #{tpu_custom_call.1} parent=1 // pred_check_branch
      %257 = sbr.rel (0) target = $region109
    $region108: #{tpu_custom_call.1} parent=1 // pred_region
      %258 = dma.done [#allocation15], 32
    $region109: #{tpu_custom_call.1} parent=1 // pred_fallthru
      _
    // Predicated region
    $region110: #{tpu_custom_call.1} parent=1 // pred_check
      _
    $region111: #{tpu_custom_call.1} parent=1 // pred_check_branch
      %260 = sbr.rel (0) target = $region113
    $region112: #{tpu_custom_call.1} parent=1 // pred_region
      %261 = dma.done [#allocation15], 32
    $region113: #{tpu_custom_call.1} parent=1 // pred_fallthru
      _
    // Predicated region
    $region114: #{tpu_custom_call.1} parent=1 // pred_check
      _
    $region115: #{tpu_custom_call.1} parent=1 // pred_check_branch
      %263 = sbr.rel (0) target = $region117
    $region116: #{tpu_custom_call.1} parent=1 // pred_region
      %264 = dma.done [#allocation18], 8192
    $region117: #{tpu_custom_call.1} parent=1 // pred_fallthru
      _
    // Predicated region
    $region118: #{tpu_custom_call.1} parent=1 // pred_check
      _
    $region119: #{tpu_custom_call.1} parent=1 // pred_check_branch
      %266 = sbr.rel (0) target = $region121
    $region120: #{tpu_custom_call.1} parent=1 // pred_region
      %267 = dma.done [#allocation18], 64
    $region121: #{tpu_custom_call.1} parent=1 // pred_fallthru
      _
    // Predicated region
    $region122: #{tpu_custom_call.1} parent=1 // pred_check
      _
    $region123: #{tpu_custom_call.1} parent=1 // pred_check_branch
      %269 = sbr.rel (0) target = $region125
    $region124: #{tpu_custom_call.1} parent=1 // pred_region
      %270 = dma.done [#allocation21], 64
    $region125: #{tpu_custom_call.1} parent=1 // pred_fallthru
      _
    // Predicated region
    $region126: #{tpu_custom_call.1} parent=1 // pred_check
      _
    $region127: #{tpu_custom_call.1} parent=1 // pred_check_branch
      %272 = sbr.rel (0) target = $region129
    $region128: #{tpu_custom_call.1} parent=1 // pred_region
      %273 = dma.done [#allocation21], 64
    $region129: #{tpu_custom_call.1} parent=1 // pred_fallthru
      _
    // Predicated region
    $region130: #{tpu_custom_call.1} parent=1 // pred_check
      _
    $region131: #{tpu_custom_call.1} parent=1 // pred_check_branch
      %275 = sbr.rel (0) target = $region133
    $region132: #{tpu_custom_call.1} parent=1 // pred_region
      %276 = dma.done [#allocation24], 32768
    $region133: #{tpu_custom_call.1} parent=1 // pred_fallthru
      _
    // Predicated region
    $region134: #{tpu_custom_call.1} parent=1 // pred_check
      _
    $region135: #{tpu_custom_call.1} parent=1 // pred_check_branch
      %278 = sbr.rel (0) target = $region137
    $region136: #{tpu_custom_call.1} parent=1 // pred_region
      %279 = dma.done [#allocation24], 128
    $region137: #{tpu_custom_call.1} parent=1 // pred_fallthru
      _
    // Predicated region
    $region138: #{tpu_custom_call.1} parent=1 // pred_check
      _
    $region139: #{tpu_custom_call.1} parent=1 // pred_check_branch
      %281 = sbr.rel (0) target = $region141
    $region140: #{tpu_custom_call.1} parent=1 // pred_region
      %282 = dma.done [#allocation27], 128
    $region141: #{tpu_custom_call.1} parent=1 // pred_fallthru
      _
    // Predicated region
    $region142: #{tpu_custom_call.1} parent=1 // pred_check
      _
    $region143: #{tpu_custom_call.1} parent=1 // pred_check_branch
      %284 = sbr.rel (0) target = $region145
    $region144: #{tpu_custom_call.1} parent=1 // pred_region
      %285 = dma.done [#allocation27], 128
    $region145: #{tpu_custom_call.1} parent=1 // pred_fallthru
      _
    // Predicated region
    $region146: #{tpu_custom_call.1} parent=1 // pred_check
      _
    $region147: #{tpu_custom_call.1} parent=1 // pred_check_branch
      %287 = sbr.rel (0) target = $region149
    $region148: #{tpu_custom_call.1} parent=1 // pred_region
      %288 = dma.done [#allocation30], 57344
    $region149: #{tpu_custom_call.1} parent=1 // pred_fallthru
      _
    // Predicated region
    $region150: #{tpu_custom_call.1} parent=1 // pred_check
      _
    $region151: #{tpu_custom_call.1} parent=1 // pred_check_branch
      %290 = sbr.rel (0) target = $region153
    $region152: #{tpu_custom_call.1} parent=1 // pred_region
      %291 = dma.done [#allocation30], 112
    $region153: #{tpu_custom_call.1} parent=1 // pred_fallthru
      _
    %v292 = vld [vmem:[#allocation2] sm:$0xff]
    %v293 = vld [vmem:[#allocation5] sm:$0xf]
    %v294 = vld [vmem:[#allocation5 + $0x4] sm:$0x1]
    %v295 = vunpack.c.l.bf16 %v293
    %v296 = vunpack.c.l.bf16 %v294
    %v297 = vld [vmem:[#allocation7] sm:$0x1]
    %v299 = vlaneseq
    %v300 = vshrl.u32 %v299, 7
    %v301 = vsub.s32 0, %v300
    %v302 = vrot.slane %v297, %v301
    %vm304 = vcmask 80896
    %v306 = vsel %vm304, %v292, 0
    %vm308 = vcmask 1041408
    %v310 = vsel %vm308, %v296, 0
    %312 = vmatprep.subr.mxu0 0.0
    %313 = vmatpush1.msra.mxu0 %v295
    %314 = vmatprep.subr.mxu0 0.0
    %315 = vmatpush1.msra.mxu0 %v310
    %316 = vmatprep.subr.mxu0 0.0
    %317 = vmatpush1.msra.mxu0 0.0
    %318 = vmatprep.subr.mxu0 0.0
    %319 = vmatpush1.msra.mxu0 0.0
    %320 = vmatprep.subr.mxu0 0.0
    %321 = vmatpush1.msra.mxu0 0.0
    %322 = vmatprep.subr.mxu0 0.0
    %323 = vmatpush1.msra.mxu0 0.0
    %324 = vmatprep.subr.mxu0 0.0
    %325 = vmatpush1.msra.mxu0 0.0
    %326 = vmatprep.subr.mxu0 0.0
    %327 = vmatpush1.msra.mxu0 0.0
    %328 = vmatprep.subr.mxu0 0.0
    %329 = vmatpush1.msra.mxu0 0.0
    %330 = vmatprep.subr.mxu0 0.0
    %331 = vmatpush1.msra.mxu0 0.0
    %332 = vmatprep.subr.mxu0 0.0
    %333 = vmatpush1.msra.mxu0 0.0
    %334 = vmatprep.subr.mxu0 0.0
    %335 = vmatpush1.msra.mxu0 0.0
    %336 = vmatprep.subr.mxu0 0.0
    %337 = vmatpush1.msra.mxu0 0.0
    %338 = vmatprep.subr.mxu0 0.0
    %339 = vmatpush1.msra.mxu0 0.0
    %340 = vmatprep.subr.mxu0 0.0
    %341 = vmatpush1.msra.mxu0 0.0
    %342 = vmatprep.subr.mxu0 0.0
    %343 = vmatpush1.msra.mxu0 0.0
    %344 = vmatprep.subr.mxu0 0.0
    %345 = vmatpush1.msra.mxu0 0.0
    %346 = vmatprep.subr.mxu0 0.0
    %347 = vmatpush1.msra.mxu0 0.0
    %348 = vmatprep.subr.mxu0 0.0
    %349 = vmatpush1.msra.mxu0 0.0
    %350 = vmatprep.subr.mxu0 0.0
    %351 = vmatpush1.msra.mxu0 0.0
    %352 = vmatprep.subr.mxu0 0.0
    %353 = vmatpush1.msra.mxu0 0.0
    %354 = vmatprep.subr.mxu0 0.0
    %355 = vmatpush1.msra.mxu0 0.0
    %356 = vmatprep.subr.mxu0 0.0
    %357 = vmatpush1.msra.mxu0 0.0
    %358 = vmatprep.subr.mxu0 0.0
    %359 = vmatpush1.msra.mxu0 0.0
    %360 = vmatprep.subr.mxu0 0.0
    %361 = vmatpush1.msra.mxu0 0.0
    %362 = vmatprep.subr.mxu0 0.0
    %363 = vmatpush1.msra.mxu0 0.0
    %364 = vmatprep.subr.mxu0 0.0
    %365 = vmatpush1.msra.mxu0 0.0
    %366 = vmatprep.subr.mxu0 0.0
    %367 = vmatpush1.msra.mxu0 0.0
    %368 = vmatprep.subr.mxu0 0.0
    %369 = vmatpush1.msra.mxu0 0.0
    %370 = vmatprep.subr.mxu0 0.0
    %371 = vmatpush1.msra.mxu0 0.0
    %372 = vmatprep.subr.mxu0 0.0
    %373 = vmatpush1.msra.mxu0 0.0
    %374 = vmatprep.subr.mxu0 0.0
    %375 = vmatpush1.msra.mxu0 0.0
    %376 = vmatprep.mubr.f32.mxu0 0.0
    %377 = vmatmul.mubr.f32.gmra.mrb[0].mxu0 %v306
    %v378 = vpop.f32.mrb[0].mxu0
    %v379 = vadd.f32 %v302, %v378
    %v380 = vpop.f32.mrb[0].mxu0
    %381 = vdwg.mxu0
    %v382 = vrot.slane %v379, 4
    %v383 = vadd.f32 %v379, %v382
    %v384 = vrot.slane %v383, 2
    %v385 = vadd.f32 %v383, %v384
    %v386 = vrot.slane %v385, 1
    %v387 = vadd.f32 %v385, %v386
    %v388 = vrcp.pop 8.0
    %v389 = vmul.f32 %v387, %v388
    %v390 = vmul.f32 %v379, %v379
    %v391 = vrot.slane %v390, 4
    %v392 = vadd.f32 %v390, %v391
    %v393 = vrot.slane %v392, 2
    %v394 = vadd.f32 %v392, %v393
    %v395 = vrot.slane %v394, 1
    %v396 = vadd.f32 %v394, %v395
    %v397 = vmul.f32 %v396, %v388
    %v398 = vmul.f32 %v389, %v389
    %v399 = vsub.f32 %v397, %v398
    %v400 = vmax.f32 %v399, 0.0
    %v401 = vsub.f32 %v379, %v389
    %v402 = vadd.f32 %v400, 1e-05
    %v403 = vrsqrt.pop %v402
    %v404 = vmul.f32 %v401, %v403
    %v405 = vld [vmem:[#allocation8] sm:$0x1]
    %v407 = vlaneseq
    %v408 = vshrl.u32 %v407, 7
    %v409 = vsub.s32 0, %v408
    %v410 = vrot.slane %v405, %v409
    %v412 = vmul.f32 %v404, %v410
    %v413 = vld [vmem:[#allocation10] sm:$0x1]
    %v415 = vlaneseq
    %v416 = vshrl.u32 %v415, 7
    %v417 = vsub.s32 0, %v416
    %v418 = vrot.slane %v413, %v417
    %v420 = vadd.f32 %v412, %v418
    %v421 = vmax.f32 %v420, 0.0
    %v422 = vld [vmem:[#allocation11] sm:$0xff]
    %v423 = vld [vmem:[#allocation11 + $0x8] sm:$0xff]
    %v424 = vld [vmem:[#allocation11 + $0x10] sm:$0xff]
    %v425 = vld [vmem:[#allocation11 + $0x18] sm:$0xff]
    %v426 = vld [vmem:[#allocation11 + $0x20] sm:$0xff]
    %v427 = vld [vmem:[#allocation11 + $0x28] sm:$0xff]
    %v428 = vld [vmem:[#allocation11 + $0x30] sm:$0xff]
    %v429 = vld [vmem:[#allocation11 + $0x38] sm:$0xff]
    %v430 = vld [vmem:[#allocation11 + $0x40] sm:$0xff]
    %v431 = vld [vmem:[#allocation11 + $0x48] sm:$0xff]
    %v432 = vld [vmem:[#allocation11 + $0x50] sm:$0xff]
    %v433 = vld [vmem:[#allocation11 + $0x58] sm:$0xff]
    %v434 = vld [vmem:[#allocation11 + $0x60] sm:$0xff]
    %v435 = vld [vmem:[#allocation11 + $0x68] sm:$0xff]
    %v436 = vld [vmem:[#allocation11 + $0x70] sm:$0xff]
    %v437 = vld [vmem:[#allocation11 + $0x78] sm:$0xff]
    %v438 = vunpack.c.l.bf16 %v422
    %v439 = vunpack.c.h.bf16 %v422
    %v440 = vunpack.c.l.bf16 %v423
    %v441 = vunpack.c.h.bf16 %v423
    %v442 = vunpack.c.l.bf16 %v424
    %v443 = vunpack.c.h.bf16 %v424
    %v444 = vunpack.c.l.bf16 %v425
    %v445 = vunpack.c.h.bf16 %v425
    %v446 = vunpack.c.l.bf16 %v426
    %v447 = vunpack.c.h.bf16 %v426
    %v448 = vunpack.c.l.bf16 %v427
    %v449 = vunpack.c.h.bf16 %v427
    %v450 = vunpack.c.l.bf16 %v428
    %v451 = vunpack.c.h.bf16 %v428
    %v452 = vunpack.c.l.bf16 %v429
    %v453 = vunpack.c.h.bf16 %v429
    %v454 = vunpack.c.l.bf16 %v430
    %v455 = vunpack.c.h.bf16 %v430
    %v456 = vunpack.c.l.bf16 %v431
    %v457 = vunpack.c.h.bf16 %v431
    %v458 = vunpack.c.l.bf16 %v432
    %v459 = vunpack.c.h.bf16 %v432
    %v460 = vunpack.c.l.bf16 %v433
    %v461 = vunpack.c.h.bf16 %v433
    %v462 = vunpack.c.l.bf16 %v434
    %v463 = vunpack.c.h.bf16 %v434
    %v464 = vunpack.c.l.bf16 %v435
    %v465 = vunpack.c.h.bf16 %v435
    %v466 = vunpack.c.l.bf16 %v436
    %v467 = vunpack.c.h.bf16 %v436
    %v468 = vunpack.c.l.bf16 %v437
    %v469 = vunpack.c.h.bf16 %v437
    %v470 = vld [vmem:[#allocation13] sm:$0x3]
    %v472 = vlaneseq
    %v473 = vshrl.u32 %v472, 7
    %v474 = vsub.s32 0, %v473
    %v475 = vrot.slane %v470, %v474
    %v476 = vlaneseq
    %v477 = vshrl.u32 %v476, 7
    %v478 = vsub.s32 1, %v477
    %v479 = vrot.slane %v470, %v478
    %482 = vmatprep.subr.mxu0 %v439
    %483 = vmatpush1.msra.mxu0 %v438
    %484 = vmatprep.subr.mxu0 %v441
    %485 = vmatpush1.msra.mxu0 %v440
    %486 = vmatprep.subr.mxu0 %v443
    %487 = vmatpush1.msra.mxu0 %v442
    %488 = vmatprep.subr.mxu0 %v445
    %489 = vmatpush1.msra.mxu0 %v444
    %490 = vmatprep.subr.mxu0 %v447
    %491 = vmatpush1.msra.mxu0 %v446
    %492 = vmatprep.subr.mxu0 %v449
    %493 = vmatpush1.msra.mxu0 %v448
    %494 = vmatprep.subr.mxu0 %v451
    %495 = vmatpush1.msra.mxu0 %v450
    %496 = vmatprep.subr.mxu0 %v453
    %497 = vmatpush1.msra.mxu0 %v452
    %498 = vmatprep.subr.mxu0 %v455
    %499 = vmatpush1.msra.mxu0 %v454
    %500 = vmatprep.subr.mxu0 %v457
    %501 = vmatpush1.msra.mxu0 %v456
    %502 = vmatprep.subr.mxu0 %v459
    %503 = vmatpush1.msra.mxu0 %v458
    %504 = vmatprep.subr.mxu0 %v461
    %505 = vmatpush1.msra.mxu0 %v460
    %506 = vmatprep.subr.mxu0 %v463
    %507 = vmatpush1.msra.mxu0 %v462
    %508 = vmatprep.subr.mxu0 %v465
    %509 = vmatpush1.msra.mxu0 %v464
    %510 = vmatprep.subr.mxu0 %v467
    %511 = vmatpush1.msra.mxu0 %v466
    %512 = vmatprep.subr.mxu0 %v469
    %513 = vmatpush1.msra.mxu0 %v468
    %514 = vmatprep.subr.mxu0 0.0
    %515 = vmatpush1.msra.mxu0 0.0
    %516 = vmatprep.subr.mxu0 0.0
    %517 = vmatpush1.msra.mxu0 0.0
    %518 = vmatprep.subr.mxu0 0.0
    %519 = vmatpush1.msra.mxu0 0.0
    %520 = vmatprep.subr.mxu0 0.0
    %521 = vmatpush1.msra.mxu0 0.0
    %522 = vmatprep.subr.mxu0 0.0
    %523 = vmatpush1.msra.mxu0 0.0
    %524 = vmatprep.subr.mxu0 0.0
    %525 = vmatpush1.msra.mxu0 0.0
    %526 = vmatprep.subr.mxu0 0.0
    %527 = vmatpush1.msra.mxu0 0.0
    %528 = vmatprep.subr.mxu0 0.0
    %529 = vmatpush1.msra.mxu0 0.0
    %530 = vmatprep.subr.mxu0 0.0
    %531 = vmatpush1.msra.mxu0 0.0
    %532 = vmatprep.subr.mxu0 0.0
    %533 = vmatpush1.msra.mxu0 0.0
    %534 = vmatprep.subr.mxu0 0.0
    %535 = vmatpush1.msra.mxu0 0.0
    %536 = vmatprep.subr.mxu0 0.0
    %537 = vmatpush1.msra.mxu0 0.0
    %538 = vmatprep.subr.mxu0 0.0
    %539 = vmatpush1.msra.mxu0 0.0
    %540 = vmatprep.subr.mxu0 0.0
    %541 = vmatpush1.msra.mxu0 0.0
    %542 = vmatprep.subr.mxu0 0.0
    %543 = vmatpush1.msra.mxu0 0.0
    %544 = vmatprep.subr.mxu0 0.0
    %545 = vmatpush1.msra.mxu0 0.0
    %546 = vmatprep.mubr.f32.mxu0 0.0
    %547 = vmatmul.mubr.f32.gmra.mrb[0].mxu0 %v421
    %v548 = vpop.f32.mrb[0].mxu0
    %v549 = vadd.f32 %v475, %v548
    %v550 = vpop.f32.mrb[0].mxu0
    %v551 = vadd.f32 %v479, %v550
    %552 = vdwg.mxu0
    %v553 = vrot.slane %v549, 4
    %v554 = vadd.f32 %v549, %v553
    %v555 = vrot.slane %v554, 2
    %v556 = vadd.f32 %v554, %v555
    %v557 = vrot.slane %v556, 1
    %v558 = vadd.f32 %v556, %v557
    %v559 = vrot.slane %v551, 4
    %v560 = vadd.f32 %v551, %v559
    %v561 = vrot.slane %v560, 2
    %v562 = vadd.f32 %v560, %v561
    %v563 = vrot.slane %v562, 1
    %v564 = vadd.f32 %v562, %v563
    %v565 = vmul.f32 %v558, %v388
    %v566 = vmul.f32 %v564, %v388
    %v567 = vmul.f32 %v549, %v549
    %v568 = vmul.f32 %v551, %v551
    %v569 = vrot.slane %v567, 4
    %v570 = vadd.f32 %v567, %v569
    %v571 = vrot.slane %v570, 2
    %v572 = vadd.f32 %v570, %v571
    %v573 = vrot.slane %v572, 1
    %v574 = vadd.f32 %v572, %v573
    %v575 = vrot.slane %v568, 4
    %v576 = vadd.f32 %v568, %v575
    %v577 = vrot.slane %v576, 2
    %v578 = vadd.f32 %v576, %v577
    %v579 = vrot.slane %v578, 1
    %v580 = vadd.f32 %v578, %v579
    %v581 = vmul.f32 %v574, %v388
    %v582 = vmul.f32 %v580, %v388
    %v583 = vmul.f32 %v565, %v565
    %v584 = vmul.f32 %v566, %v566
    %v585 = vsub.f32 %v581, %v583
    %v586 = vsub.f32 %v582, %v584
    %v587 = vmax.f32 %v585, 0.0
    %v588 = vmax.f32 %v586, 0.0
    %v589 = vsub.f32 %v549, %v565
    %v590 = vsub.f32 %v551, %v566
    %v591 = vadd.f32 %v587, 1e-05
    %v592 = vadd.f32 %v588, 1e-05
    %v593 = vrsqrt.pop %v591
    %v594 = vrsqrt.pop %v592
    %v595 = vmul.f32 %v589, %v593
    %v596 = vmul.f32 %v590, %v594
    %v597 = vld [vmem:[#allocation14] sm:$0x3]
    %v599 = vlaneseq
    %v600 = vshrl.u32 %v599, 7
    %v601 = vsub.s32 0, %v600
    %v602 = vrot.slane %v597, %v601
    %v603 = vlaneseq
    %v604 = vshrl.u32 %v603, 7
    %v605 = vsub.s32 1, %v604
    %v606 = vrot.slane %v597, %v605
    %v609 = vmul.f32 %v595, %v602
    %v610 = vmul.f32 %v596, %v606
    %v611 = vld [vmem:[#allocation16] sm:$0x3]
    %v613 = vlaneseq
    %v614 = vshrl.u32 %v613, 7
    %v615 = vsub.s32 0, %v614
    %v616 = vrot.slane %v611, %v615
    %v617 = vlaneseq
    %v618 = vshrl.u32 %v617, 7
    %v619 = vsub.s32 1, %v618
    %v620 = vrot.slane %v611, %v619
    %v623 = vadd.f32 %v609, %v616
    %v624 = vadd.f32 %v610, %v620
    %v625 = vmax.f32 %v623, 0.0
    %v626 = vmax.f32 %v624, 0.0
    %v627 = vld [vmem:[#allocation17] sm:$0xff]
    %v628 = vld [vmem:[#allocation17 + $0x8] sm:$0xff]
    %v629 = vld [vmem:[#allocation17 + $0x10] sm:$0xff]
    %v630 = vld [vmem:[#allocation17 + $0x18] sm:$0xff]
    %v631 = vld [vmem:[#allocation17 + $0x20] sm:$0xff]
    %v632 = vld [vmem:[#allocation17 + $0x28] sm:$0xff]
    %v633 = vld [vmem:[#allocation17 + $0x30] sm:$0xff]
    %v634 = vld [vmem:[#allocation17 + $0x38] sm:$0xff]
    %v635 = vld [vmem:[#allocation17 + $0x40] sm:$0xff]
    %v636 = vld [vmem:[#allocation17 + $0x48] sm:$0xff]
    %v637 = vld [vmem:[#allocation17 + $0x50] sm:$0xff]
    %v638 = vld [vmem:[#allocation17 + $0x58] sm:$0xff]
    %v639 = vld [vmem:[#allocation17 + $0x60] sm:$0xff]
    %v640 = vld [vmem:[#allocation17 + $0x68] sm:$0xff]
    %v641 = vld [vmem:[#allocation17 + $0x70] sm:$0xff]
    %v642 = vld [vmem:[#allocation17 + $0x78] sm:$0xff]
    %v643 = vld [vmem:[#allocation17 + $0x80] sm:$0xff]
    %v644 = vld [vmem:[#allocation17 + $0x88] sm:$0xff]
    %v645 = vld [vmem:[#allocation17 + $0x90] sm:$0xff]
    %v646 = vld [vmem:[#allocation17 + $0x98] sm:$0xff]
    %v647 = vld [vmem:[#allocation17 + $0xa0] sm:$0xff]
    %v648 = vld [vmem:[#allocation17 + $0xa8] sm:$0xff]
    %v649 = vld [vmem:[#allocation17 + $0xb0] sm:$0xff]
    %v650 = vld [vmem:[#allocation17 + $0xb8] sm:$0xff]
    %v651 = vld [vmem:[#allocation17 + $0xc0] sm:$0xff]
    %v652 = vld [vmem:[#allocation17 + $0xc8] sm:$0xff]
    %v653 = vld [vmem:[#allocation17 + $0xd0] sm:$0xff]
    %v654 = vld [vmem:[#allocation17 + $0xd8] sm:$0xff]
    %v655 = vld [vmem:[#allocation17 + $0xe0] sm:$0xff]
    %v656 = vld [vmem:[#allocation17 + $0xe8] sm:$0xff]
    %v657 = vld [vmem:[#allocation17 + $0xf0] sm:$0xff]
    %v658 = vld [vmem:[#allocation17 + $0xf8] sm:$0xff]
    %v659 = vld [vmem:[#allocation17 + $0x100] sm:$0xff]
    %v660 = vld [vmem:[#allocation17 + $0x108] sm:$0xff]
    %v661 = vld [vmem:[#allocation17 + $0x110] sm:$0xff]
    %v662 = vld [vmem:[#allocation17 + $0x118] sm:$0xff]
    %v663 = vld [vmem:[#allocation17 + $0x120] sm:$0xff]
    %v664 = vld [vmem:[#allocation17 + $0x128] sm:$0xff]
    %v665 = vld [vmem:[#allocation17 + $0x130] sm:$0xff]
    %v666 = vld [vmem:[#allocation17 + $0x138] sm:$0xff]
    %v667 = vld [vmem:[#allocation17 + $0x140] sm:$0xff]
    %v668 = vld [vmem:[#allocation17 + $0x148] sm:$0xff]
    %v669 = vld [vmem:[#allocation17 + $0x150] sm:$0xff]
    %v670 = vld [vmem:[#allocation17 + $0x158] sm:$0xff]
    %v671 = vld [vmem:[#allocation17 + $0x160] sm:$0xff]
    %v672 = vld [vmem:[#allocation17 + $0x168] sm:$0xff]
    %v673 = vld [vmem:[#allocation17 + $0x170] sm:$0xff]
    %v674 = vld [vmem:[#allocation17 + $0x178] sm:$0xff]
    %v675 = vld [vmem:[#allocation17 + $0x180] sm:$0xff]
    %v676 = vld [vmem:[#allocation17 + $0x188] sm:$0xff]
    %v677 = vld [vmem:[#allocation17 + $0x190] sm:$0xff]
    %v678 = vld [vmem:[#allocation17 + $0x198] sm:$0xff]
    %v679 = vld [vmem:[#allocation17 + $0x1a0] sm:$0xff]
    %v680 = vld [vmem:[#allocation17 + $0x1a8] sm:$0xff]
    %v681 = vld [vmem:[#allocation17 + $0x1b0] sm:$0xff]
    %v682 = vld [vmem:[#allocation17 + $0x1b8] sm:$0xff]
    %v683 = vld [vmem:[#allocation17 + $0x1c0] sm:$0xff]
    %v684 = vld [vmem:[#allocation17 + $0x1c8] sm:$0xff]
    %v685 = vld [vmem:[#allocation17 + $0x1d0] sm:$0xff]
    %v686 = vld [vmem:[#allocation17 + $0x1d8] sm:$0xff]
    %v687 = vld [vmem:[#allocation17 + $0x1e0] sm:$0xff]
    %v688 = vld [vmem:[#allocation17 + $0x1e8] sm:$0xff]
    %v689 = vld [vmem:[#allocation17 + $0x1f0] sm:$0xff]
    %v690 = vld [vmem:[#allocation17 + $0x1f8] sm:$0xff]
    %v691 = vunpack.c.l.bf16 %v627
    %v692 = vunpack.c.h.bf16 %v627
    %v693 = vunpack.c.l.bf16 %v628
    %v694 = vunpack.c.h.bf16 %v628
    %v695 = vunpack.c.l.bf16 %v629
    %v696 = vunpack.c.h.bf16 %v629
    %v697 = vunpack.c.l.bf16 %v630
    %v698 = vunpack.c.h.bf16 %v630
    %v699 = vunpack.c.l.bf16 %v631
    %v700 = vunpack.c.h.bf16 %v631
    %v701 = vunpack.c.l.bf16 %v632
    %v702 = vunpack.c.h.bf16 %v632
    %v703 = vunpack.c.l.bf16 %v633
    %v704 = vunpack.c.h.bf16 %v633
    %v705 = vunpack.c.l.bf16 %v634
    %v706 = vunpack.c.h.bf16 %v634
    %v707 = vunpack.c.l.bf16 %v635
    %v708 = vunpack.c.h.bf16 %v635
    %v709 = vunpack.c.l.bf16 %v636
    %v710 = vunpack.c.h.bf16 %v636
    %v711 = vunpack.c.l.bf16 %v637
    %v712 = vunpack.c.h.bf16 %v637
    %v713 = vunpack.c.l.bf16 %v638
    %v714 = vunpack.c.h.bf16 %v638
    %v715 = vunpack.c.l.bf16 %v639
    %v716 = vunpack.c.h.bf16 %v639
    %v717 = vunpack.c.l.bf16 %v640
    %v718 = vunpack.c.h.bf16 %v640
    %v719 = vunpack.c.l.bf16 %v641
    %v720 = vunpack.c.h.bf16 %v641
    %v721 = vunpack.c.l.bf16 %v642
    %v722 = vunpack.c.h.bf16 %v642
    %v723 = vunpack.c.l.bf16 %v643
    %v724 = vunpack.c.h.bf16 %v643
    %v725 = vunpack.c.l.bf16 %v644
    %v726 = vunpack.c.h.bf16 %v644
    %v727 = vunpack.c.l.bf16 %v645
    %v728 = vunpack.c.h.bf16 %v645
    %v729 = vunpack.c.l.bf16 %v646
    %v730 = vunpack.c.h.bf16 %v646
    %v731 = vunpack.c.l.bf16 %v647
    %v732 = vunpack.c.h.bf16 %v647
    %v733 = vunpack.c.l.bf16 %v648
    %v734 = vunpack.c.h.bf16 %v648
    %v735 = vunpack.c.l.bf16 %v649
    %v736 = vunpack.c.h.bf16 %v649
    %v737 = vunpack.c.l.bf16 %v650
    %v738 = vunpack.c.h.bf16 %v650
    %v739 = vunpack.c.l.bf16 %v651
    %v740 = vunpack.c.h.bf16 %v651
    %v741 = vunpack.c.l.bf16 %v652
    %v742 = vunpack.c.h.bf16 %v652
    %v743 = vunpack.c.l.bf16 %v653
    %v744 = vunpack.c.h.bf16 %v653
    %v745 = vunpack.c.l.bf16 %v654
    %v746 = vunpack.c.h.bf16 %v654
    %v747 = vunpack.c.l.bf16 %v655
    %v748 = vunpack.c.h.bf16 %v655
    %v749 = vunpack.c.l.bf16 %v656
    %v750 = vunpack.c.h.bf16 %v656
    %v751 = vunpack.c.l.bf16 %v657
    %v752 = vunpack.c.h.bf16 %v657
    %v753 = vunpack.c.l.bf16 %v658
    %v754 = vunpack.c.h.bf16 %v658
    %v755 = vunpack.c.l.bf16 %v659
    %v756 = vunpack.c.h.bf16 %v659
    %v757 = vunpack.c.l.bf16 %v660
    %v758 = vunpack.c.h.bf16 %v660
    %v759 = vunpack.c.l.bf16 %v661
    %v760 = vunpack.c.h.bf16 %v661
    %v761 = vunpack.c.l.bf16 %v662
    %v762 = vunpack.c.h.bf16 %v662
    %v763 = vunpack.c.l.bf16 %v663
    %v764 = vunpack.c.h.bf16 %v663
    %v765 = vunpack.c.l.bf16 %v664
    %v766 = vunpack.c.h.bf16 %v664
    %v767 = vunpack.c.l.bf16 %v665
    %v768 = vunpack.c.h.bf16 %v665
    %v769 = vunpack.c.l.bf16 %v666
    %v770 = vunpack.c.h.bf16 %v666
    %v771 = vunpack.c.l.bf16 %v667
    %v772 = vunpack.c.h.bf16 %v667
    %v773 = vunpack.c.l.bf16 %v668
    %v774 = vunpack.c.h.bf16 %v668
    %v775 = vunpack.c.l.bf16 %v669
    %v776 = vunpack.c.h.bf16 %v669
    %v777 = vunpack.c.l.bf16 %v670
    %v778 = vunpack.c.h.bf16 %v670
    %v779 = vunpack.c.l.bf16 %v671
    %v780 = vunpack.c.h.bf16 %v671
    %v781 = vunpack.c.l.bf16 %v672
    %v782 = vunpack.c.h.bf16 %v672
    %v783 = vunpack.c.l.bf16 %v673
    %v784 = vunpack.c.h.bf16 %v673
    %v785 = vunpack.c.l.bf16 %v674
    %v786 = vunpack.c.h.bf16 %v674
    %v787 = vunpack.c.l.bf16 %v675
    %v788 = vunpack.c.h.bf16 %v675
    %v789 = vunpack.c.l.bf16 %v676
    %v790 = vunpack.c.h.bf16 %v676
    %v791 = vunpack.c.l.bf16 %v677
    %v792 = vunpack.c.h.bf16 %v677
    %v793 = vunpack.c.l.bf16 %v678
    %v794 = vunpack.c.h.bf16 %v678
    %v795 = vunpack.c.l.bf16 %v679
    %v796 = vunpack.c.h.bf16 %v679
    %v797 = vunpack.c.l.bf16 %v680
    %v798 = vunpack.c.h.bf16 %v680
    %v799 = vunpack.c.l.bf16 %v681
    %v800 = vunpack.c.h.bf16 %v681
    %v801 = vunpack.c.l.bf16 %v682
    %v802 = vunpack.c.h.bf16 %v682
    %v803 = vunpack.c.l.bf16 %v683
    %v804 = vunpack.c.h.bf16 %v683
    %v805 = vunpack.c.l.bf16 %v684
    %v806 = vunpack.c.h.bf16 %v684
    %v807 = vunpack.c.l.bf16 %v685
    %v808 = vunpack.c.h.bf16 %v685
    %v809 = vunpack.c.l.bf16 %v686
    %v810 = vunpack.c.h.bf16 %v686
    %v811 = vunpack.c.l.bf16 %v687
    %v812 = vunpack.c.h.bf16 %v687
    %v813 = vunpack.c.l.bf16 %v688
    %v814 = vunpack.c.h.bf16 %v688
    %v815 = vunpack.c.l.bf16 %v689
    %v816 = vunpack.c.h.bf16 %v689
    %v817 = vunpack.c.l.bf16 %v690
    %v818 = vunpack.c.h.bf16 %v690
    %v819 = vld [vmem:[#allocation19] sm:$0xf]
    %v821 = vlaneseq
    %v822 = vshrl.u32 %v821, 7
    %v823 = vsub.s32 0, %v822
    %v824 = vrot.slane %v819, %v823
    %v825 = vlaneseq
    %v826 = vshrl.u32 %v825, 7
    %v827 = vsub.s32 1, %v826
    %v828 = vrot.slane %v819, %v827
    %v829 = vlaneseq
    %v830 = vshrl.u32 %v829, 7
    %v831 = vsub.s32 2, %v830
    %v832 = vrot.slane %v819, %v831
    %v833 = vlaneseq
    %v834 = vshrl.u32 %v833, 7
    %v835 = vsub.s32 3, %v834
    %v836 = vrot.slane %v819, %v835
    %841 = vmatprep.subr.mxu0 %v692
    %842 = vmatpush1.msra.mxu0 %v691
    %843 = vmatprep.subr.mxu0 %v696
    %844 = vmatpush1.msra.mxu0 %v695
    %845 = vmatprep.subr.mxu0 %v700
    %846 = vmatpush1.msra.mxu0 %v699
    %847 = vmatprep.subr.mxu0 %v704
    %848 = vmatpush1.msra.mxu0 %v703
    %849 = vmatprep.subr.mxu0 %v708
    %850 = vmatpush1.msra.mxu0 %v707
    %851 = vmatprep.subr.mxu0 %v712
    %852 = vmatpush1.msra.mxu0 %v711
    %853 = vmatprep.subr.mxu0 %v716
    %854 = vmatpush1.msra.mxu0 %v715
    %855 = vmatprep.subr.mxu0 %v720
    %856 = vmatpush1.msra.mxu0 %v719
    %857 = vmatprep.subr.mxu0 %v724
    %858 = vmatpush1.msra.mxu0 %v723
    %859 = vmatprep.subr.mxu0 %v728
    %860 = vmatpush1.msra.mxu0 %v727
    %861 = vmatprep.subr.mxu0 %v732
    %862 = vmatpush1.msra.mxu0 %v731
    %863 = vmatprep.subr.mxu0 %v736
    %864 = vmatpush1.msra.mxu0 %v735
    %865 = vmatprep.subr.mxu0 %v740
    %866 = vmatpush1.msra.mxu0 %v739
    %867 = vmatprep.subr.mxu0 %v744
    %868 = vmatpush1.msra.mxu0 %v743
    %869 = vmatprep.subr.mxu0 %v748
    %870 = vmatpush1.msra.mxu0 %v747
    %871 = vmatprep.subr.mxu0 %v752
    %872 = vmatpush1.msra.mxu0 %v751
    %873 = vmatprep.subr.mxu0 %v756
    %874 = vmatpush1.msra.mxu0 %v755
    %875 = vmatprep.subr.mxu0 %v760
    %876 = vmatpush1.msra.mxu0 %v759
    %877 = vmatprep.subr.mxu0 %v764
    %878 = vmatpush1.msra.mxu0 %v763
    %879 = vmatprep.subr.mxu0 %v768
    %880 = vmatpush1.msra.mxu0 %v767
    %881 = vmatprep.subr.mxu0 %v772
    %882 = vmatpush1.msra.mxu0 %v771
    %883 = vmatprep.subr.mxu0 %v776
    %884 = vmatpush1.msra.mxu0 %v775
    %885 = vmatprep.subr.mxu0 %v780
    %886 = vmatpush1.msra.mxu0 %v779
    %887 = vmatprep.subr.mxu0 %v784
    %888 = vmatpush1.msra.mxu0 %v783
    %889 = vmatprep.subr.mxu0 %v788
    %890 = vmatpush1.msra.mxu0 %v787
    %891 = vmatprep.subr.mxu0 %v792
    %892 = vmatpush1.msra.mxu0 %v791
    %893 = vmatprep.subr.mxu0 %v796
    %894 = vmatpush1.msra.mxu0 %v795
    %895 = vmatprep.subr.mxu0 %v800
    %896 = vmatpush1.msra.mxu0 %v799
    %897 = vmatprep.subr.mxu0 %v804
    %898 = vmatpush1.msra.mxu0 %v803
    %899 = vmatprep.subr.mxu0 %v808
    %900 = vmatpush1.msra.mxu0 %v807
    %901 = vmatprep.subr.mxu0 %v812
    %902 = vmatpush1.msra.mxu0 %v811
    %903 = vmatprep.subr.mxu0 %v816
    %904 = vmatpush1.msra.mxu0 %v815
    %905 = vmatprep.mubr.f32.mxu0 %v626
    %906 = vmatmul.mubr.f32.gmra.mrb[0].mxu0 %v625
    %v907 = vpop.f32.mrb[0].mxu0
    %v908 = vadd.f32 %v824, %v907
    %v909 = vpop.f32.mrb[0].mxu0
    %v910 = vadd.f32 %v828, %v909
    %911 = vdwg.mxu0
    %912 = vmatprep.subr.mxu0 %v694
    %913 = vmatpush1.msra.mxu0 %v693
    %914 = vmatprep.subr.mxu0 %v698
    %915 = vmatpush1.msra.mxu0 %v697
    %916 = vmatprep.subr.mxu0 %v702
    %917 = vmatpush1.msra.mxu0 %v701
    %918 = vmatprep.subr.mxu0 %v706
    %919 = vmatpush1.msra.mxu0 %v705
    %920 = vmatprep.subr.mxu0 %v710
    %921 = vmatpush1.msra.mxu0 %v709
    %922 = vmatprep.subr.mxu0 %v714
    %923 = vmatpush1.msra.mxu0 %v713
    %924 = vmatprep.subr.mxu0 %v718
    %925 = vmatpush1.msra.mxu0 %v717
    %926 = vmatprep.subr.mxu0 %v722
    %927 = vmatpush1.msra.mxu0 %v721
    %928 = vmatprep.subr.mxu0 %v726
    %929 = vmatpush1.msra.mxu0 %v725
    %930 = vmatprep.subr.mxu0 %v730
    %931 = vmatpush1.msra.mxu0 %v729
    %932 = vmatprep.subr.mxu0 %v734
    %933 = vmatpush1.msra.mxu0 %v733
    %934 = vmatprep.subr.mxu0 %v738
    %935 = vmatpush1.msra.mxu0 %v737
    %936 = vmatprep.subr.mxu0 %v742
    %937 = vmatpush1.msra.mxu0 %v741
    %938 = vmatprep.subr.mxu0 %v746
    %939 = vmatpush1.msra.mxu0 %v745
    %940 = vmatprep.subr.mxu0 %v750
    %941 = vmatpush1.msra.mxu0 %v749
    %942 = vmatprep.subr.mxu0 %v754
    %943 = vmatpush1.msra.mxu0 %v753
    %944 = vmatprep.subr.mxu0 %v758
    %945 = vmatpush1.msra.mxu0 %v757
    %946 = vmatprep.subr.mxu0 %v762
    %947 = vmatpush1.msra.mxu0 %v761
    %948 = vmatprep.subr.mxu0 %v766
    %949 = vmatpush1.msra.mxu0 %v765
    %950 = vmatprep.subr.mxu0 %v770
    %951 = vmatpush1.msra.mxu0 %v769
    %952 = vmatprep.subr.mxu0 %v774
    %953 = vmatpush1.msra.mxu0 %v773
    %954 = vmatprep.subr.mxu0 %v778
    %955 = vmatpush1.msra.mxu0 %v777
    %956 = vmatprep.subr.mxu0 %v782
    %957 = vmatpush1.msra.mxu0 %v781
    %958 = vmatprep.subr.mxu0 %v786
    %959 = vmatpush1.msra.mxu0 %v785
    %960 = vmatprep.subr.mxu0 %v790
    %961 = vmatpush1.msra.mxu0 %v789
    %962 = vmatprep.subr.mxu0 %v794
    %963 = vmatpush1.msra.mxu0 %v793
    %964 = vmatprep.subr.mxu0 %v798
    %965 = vmatpush1.msra.mxu0 %v797
    %966 = vmatprep.subr.mxu0 %v802
    %967 = vmatpush1.msra.mxu0 %v801
    %968 = vmatprep.subr.mxu0 %v806
    %969 = vmatpush1.msra.mxu0 %v805
    %970 = vmatprep.subr.mxu0 %v810
    %971 = vmatpush1.msra.mxu0 %v809
    %972 = vmatprep.subr.mxu0 %v814
    %973 = vmatpush1.msra.mxu0 %v813
    %974 = vmatprep.subr.mxu0 %v818
    %975 = vmatpush1.msra.mxu0 %v817
    %976 = vmatprep.mubr.f32.mxu0 %v626
    %977 = vmatmul.mubr.f32.gmra.mrb[0].mxu0 %v625
    %v978 = vpop.f32.mrb[0].mxu0
    %v979 = vadd.f32 %v832, %v978
    %v980 = vpop.f32.mrb[0].mxu0
    %v981 = vadd.f32 %v836, %v980
    %982 = vdwg.mxu0
    %v983 = vrot.slane %v908, 4
    %v984 = vadd.f32 %v908, %v983
    %v985 = vrot.slane %v984, 2
    %v986 = vadd.f32 %v984, %v985
    %v987 = vrot.slane %v986, 1
    %v988 = vadd.f32 %v986, %v987
    %v989 = vrot.slane %v910, 4
    %v990 = vadd.f32 %v910, %v989
    %v991 = vrot.slane %v990, 2
    %v992 = vadd.f32 %v990, %v991
    %v993 = vrot.slane %v992, 1
    %v994 = vadd.f32 %v992, %v993
    %v995 = vrot.slane %v979, 4
    %v996 = vadd.f32 %v979, %v995
    %v997 = vrot.slane %v996, 2
    %v998 = vadd.f32 %v996, %v997
    %v999 = vrot.slane %v998, 1
    %v1000 = vadd.f32 %v998, %v999
    %v1001 = vrot.slane %v981, 4
    %v1002 = vadd.f32 %v981, %v1001
    %v1003 = vrot.slane %v1002, 2
    %v1004 = vadd.f32 %v1002, %v1003
    %v1005 = vrot.slane %v1004, 1
    %v1006 = vadd.f32 %v1004, %v1005
    %v1007 = vmul.f32 %v988, %v388
    %v1008 = vmul.f32 %v994, %v388
    %v1009 = vmul.f32 %v1000, %v388
    %v1010 = vmul.f32 %v1006, %v388
    %v1011 = vmul.f32 %v908, %v908
    %v1012 = vmul.f32 %v910, %v910
    %v1013 = vmul.f32 %v979, %v979
    %v1014 = vmul.f32 %v981, %v981
    %v1015 = vrot.slane %v1011, 4
    %v1016 = vadd.f32 %v1011, %v1015
    %v1017 = vrot.slane %v1016, 2
    %v1018 = vadd.f32 %v1016, %v1017
    %v1019 = vrot.slane %v1018, 1
    %v1020 = vadd.f32 %v1018, %v1019
    %v1021 = vrot.slane %v1012, 4
    %v1022 = vadd.f32 %v1012, %v1021
    %v1023 = vrot.slane %v1022, 2
    %v1024 = vadd.f32 %v1022, %v1023
    %v1025 = vrot.slane %v1024, 1
    %v1026 = vadd.f32 %v1024, %v1025
    %v1027 = vrot.slane %v1013, 4
    %v1028 = vadd.f32 %v1013, %v1027
    %v1029 = vrot.slane %v1028, 2
    %v1030 = vadd.f32 %v1028, %v1029
    %v1031 = vrot.slane %v1030, 1
    %v1032 = vadd.f32 %v1030, %v1031
    %v1033 = vrot.slane %v1014, 4
    %v1034 = vadd.f32 %v1014, %v1033
    %v1035 = vrot.slane %v1034, 2
    %v1036 = vadd.f32 %v1034, %v1035
    %v1037 = vrot.slane %v1036, 1
    %v1038 = vadd.f32 %v1036, %v1037
    %v1039 = vmul.f32 %v1020, %v388
    %v1040 = vmul.f32 %v1026, %v388
    %v1041 = vmul.f32 %v1032, %v388
    %v1042 = vmul.f32 %v1038, %v388
    %v1043 = vmul.f32 %v1007, %v1007
    %v1044 = vmul.f32 %v1008, %v1008
    %v1045 = vmul.f32 %v1009, %v1009
    %v1046 = vmul.f32 %v1010, %v1010
    %v1047 = vsub.f32 %v1039, %v1043
    %v1048 = vsub.f32 %v1040, %v1044
    %v1049 = vsub.f32 %v1041, %v1045
    %v1050 = vsub.f32 %v1042, %v1046
    %v1051 = vmax.f32 %v1047, 0.0
    %v1052 = vmax.f32 %v1048, 0.0
    %v1053 = vmax.f32 %v1049, 0.0
    %v1054 = vmax.f32 %v1050, 0.0
    %v1055 = vsub.f32 %v908, %v1007
    %v1056 = vsub.f32 %v910, %v1008
    %v1057 = vsub.f32 %v979, %v1009
    %v1058 = vsub.f32 %v981, %v1010
    %v1059 = vadd.f32 %v1051, 1e-05
    %v1060 = vadd.f32 %v1052, 1e-05
    %v1061 = vadd.f32 %v1053, 1e-05
    %v1062 = vadd.f32 %v1054, 1e-05
    %v1063 = vrsqrt.pop %v1059
    %v1064 = vrsqrt.pop %v1060
    %v1065 = vrsqrt.pop %v1061
    %v1066 = vrsqrt.pop %v1062
    %v1067 = vmul.f32 %v1055, %v1063
    %v1068 = vmul.f32 %v1056, %v1064
    %v1069 = vmul.f32 %v1057, %v1065
    %v1070 = vmul.f32 %v1058, %v1066
    %v1071 = vld [vmem:[#allocation20] sm:$0xf]
    %v1073 = vlaneseq
    %v1074 = vshrl.u32 %v1073, 7
    %v1075 = vsub.s32 0, %v1074
    %v1076 = vrot.slane %v1071, %v1075
    %v1077 = vlaneseq
    %v1078 = vshrl.u32 %v1077, 7
    %v1079 = vsub.s32 1, %v1078
    %v1080 = vrot.slane %v1071, %v1079
    %v1081 = vlaneseq
    %v1082 = vshrl.u32 %v1081, 7
    %v1083 = vsub.s32 2, %v1082
    %v1084 = vrot.slane %v1071, %v1083
    %v1085 = vlaneseq
    %v1086 = vshrl.u32 %v1085, 7
    %v1087 = vsub.s32 3, %v1086
    %v1088 = vrot.slane %v1071, %v1087
    %v1093 = vmul.f32 %v1067, %v1076
    %v1094 = vmul.f32 %v1068, %v1080
    %v1095 = vmul.f32 %v1069, %v1084
    %v1096 = vmul.f32 %v1070, %v1088
    %v1097 = vld [vmem:[#allocation22] sm:$0xf]
    %v1099 = vlaneseq
    %v1100 = vshrl.u32 %v1099, 7
    %v1101 = vsub.s32 0, %v1100
    %v1102 = vrot.slane %v1097, %v1101
    %v1103 = vlaneseq
    %v1104 = vshrl.u32 %v1103, 7
    %v1105 = vsub.s32 1, %v1104
    %v1106 = vrot.slane %v1097, %v1105
    %v1107 = vlaneseq
    %v1108 = vshrl.u32 %v1107, 7
    %v1109 = vsub.s32 2, %v1108
    %v1110 = vrot.slane %v1097, %v1109
    %v1111 = vlaneseq
    %v1112 = vshrl.u32 %v1111, 7
    %v1113 = vsub.s32 3, %v1112
    %v1114 = vrot.slane %v1097, %v1113
    %v1119 = vadd.f32 %v1093, %v1102
    %v1120 = vadd.f32 %v1094, %v1106
    %v1121 = vadd.f32 %v1095, %v1110
    %v1122 = vadd.f32 %v1096, %v1114
    %v1123 = vmax.f32 %v1119, 0.0
    %v1124 = vmax.f32 %v1120, 0.0
    %v1125 = vmax.f32 %v1121, 0.0
    %v1126 = vmax.f32 %v1122, 0.0
    %v1127 = vld [vmem:[#allocation23] sm:$0xff]
    %v1128 = vld [vmem:[#allocation23 + $0x8] sm:$0xff]
    %v1129 = vld [vmem:[#allocation23 + $0x10] sm:$0xff]
    %v1130 = vld [vmem:[#allocation23 + $0x18] sm:$0xff]
    %v1131 = vld [vmem:[#allocation23 + $0x20] sm:$0xff]
    %v1132 = vld [vmem:[#allocation23 + $0x28] sm:$0xff]
    %v1133 = vld [vmem:[#allocation23 + $0x30] sm:$0xff]
    %v1134 = vld [vmem:[#allocation23 + $0x38] sm:$0xff]
    %v1135 = vld [vmem:[#allocation23 + $0x40] sm:$0xff]
    %v1136 = vld [vmem:[#allocation23 + $0x48] sm:$0xff]
    %v1137 = vld [vmem:[#allocation23 + $0x50] sm:$0xff]
    %v1138 = vld [vmem:[#allocation23 + $0x58] sm:$0xff]
    %v1139 = vld [vmem:[#allocation23 + $0x60] sm:$0xff]
    %v1140 = vld [vmem:[#allocation23 + $0x68] sm:$0xff]
    %v1141 = vld [vmem:[#allocation23 + $0x70] sm:$0xff]
    %v1142 = vld [vmem:[#allocation23 + $0x78] sm:$0xff]
    %v1143 = vld [vmem:[#allocation23 + $0x80] sm:$0xff]
    %v1144 = vld [vmem:[#allocation23 + $0x88] sm:$0xff]
    %v1145 = vld [vmem:[#allocation23 + $0x90] sm:$0xff]
    %v1146 = vld [vmem:[#allocation23 + $0x98] sm:$0xff]
    %v1147 = vld [vmem:[#allocation23 + $0xa0] sm:$0xff]
    %v1148 = vld [vmem:[#allocation23 + $0xa8] sm:$0xff]
    %v1149 = vld [vmem:[#allocation23 + $0xb0] sm:$0xff]
    %v1150 = vld [vmem:[#allocation23 + $0xb8] sm:$0xff]
    %v1151 = vld [vmem:[#allocation23 + $0xc0] sm:$0xff]
    %v1152 = vld [vmem:[#allocation23 + $0xc8] sm:$0xff]
    %v1153 = vld [vmem:[#allocation23 + $0xd0] sm:$0xff]
    %v1154 = vld [vmem:[#allocation23 + $0xd8] sm:$0xff]
    %v1155 = vld [vmem:[#allocation23 + $0xe0] sm:$0xff]
    %v1156 = vld [vmem:[#allocation23 + $0xe8] sm:$0xff]
    %v1157 = vld [vmem:[#allocation23 + $0xf0] sm:$0xff]
    %v1158 = vld [vmem:[#allocation23 + $0xf8] sm:$0xff]
    %v1159 = vld [vmem:[#allocation23 + $0x100] sm:$0xff]
    %v1160 = vld [vmem:[#allocation23 + $0x108] sm:$0xff]
    %v1161 = vld [vmem:[#allocation23 + $0x110] sm:$0xff]
    %v1162 = vld [vmem:[#allocation23 + $0x118] sm:$0xff]
    %v1163 = vld [vmem:[#allocation23 + $0x120] sm:$0xff]
    %v1164 = vld [vmem:[#allocation23 + $0x128] sm:$0xff]
    %v1165 = vld [vmem:[#allocation23 + $0x130] sm:$0xff]
    %v1166 = vld [vmem:[#allocation23 + $0x138] sm:$0xff]
    %v1167 = vld [vmem:[#allocation23 + $0x140] sm:$0xff]
    %v1168 = vld [vmem:[#allocation23 + $0x148] sm:$0xff]
    %v1169 = vld [vmem:[#allocation23 + $0x150] sm:$0xff]
    %v1170 = vld [vmem:[#allocation23 + $0x158] sm:$0xff]
    %v1171 = vld [vmem:[#allocation23 + $0x160] sm:$0xff]
    %v1172 = vld [vmem:[#allocation23 + $0x168] sm:$0xff]
    %v1173 = vld [vmem:[#allocation23 + $0x170] sm:$0xff]
    %v1174 = vld [vmem:[#allocation23 + $0x178] sm:$0xff]
    %v1175 = vld [vmem:[#allocation23 + $0x180] sm:$0xff]
    %v1176 = vld [vmem:[#allocation23 + $0x188] sm:$0xff]
    %v1177 = vld [vmem:[#allocation23 + $0x190] sm:$0xff]
    %v1178 = vld [vmem:[#allocation23 + $0x198] sm:$0xff]
    %v1179 = vld [vmem:[#allocation23 + $0x1a0] sm:$0xff]
    %v1180 = vld [vmem:[#allocation23 + $0x1a8] sm:$0xff]
    %v1181 = vld [vmem:[#allocation23 + $0x1b0] sm:$0xff]
    %v1182 = vld [vmem:[#allocation23 + $0x1b8] sm:$0xff]
    %v1183 = vld [vmem:[#allocation23 + $0x1c0] sm:$0xff]
    %v1184 = vld [vmem:[#allocation23 + $0x1c8] sm:$0xff]
    %v1185 = vld [vmem:[#allocation23 + $0x1d0] sm:$0xff]
    %v1186 = vld [vmem:[#allocation23 + $0x1d8] sm:$0xff]
    %v1187 = vld [vmem:[#allocation23 + $0x1e0] sm:$0xff]
    %v1188 = vld [vmem:[#allocation23 + $0x1e8] sm:$0xff]
    %v1189 = vld [vmem:[#allocation23 + $0x1f0] sm:$0xff]
    %v1190 = vld [vmem:[#allocation23 + $0x1f8] sm:$0xff]
    %v1191 = vld [vmem:[#allocation23 + $0x200] sm:$0xff]
    %v1192 = vld [vmem:[#allocation23 + $0x208] sm:$0xff]
    %v1193 = vld [vmem:[#allocation23 + $0x210] sm:$0xff]
    %v1194 = vld [vmem:[#allocation23 + $0x218] sm:$0xff]
    %v1195 = vld [vmem:[#allocation23 + $0x220] sm:$0xff]
    %v1196 = vld [vmem:[#allocation23 + $0x228] sm:$0xff]
    %v1197 = vld [vmem:[#allocation23 + $0x230] sm:$0xff]
    %v1198 = vld [vmem:[#allocation23 + $0x238] sm:$0xff]
    %v1199 = vld [vmem:[#allocation23 + $0x240] sm:$0xff]
    %v1200 = vld [vmem:[#allocation23 + $0x248] sm:$0xff]
    %v1201 = vld [vmem:[#allocation23 + $0x250] sm:$0xff]
    %v1202 = vld [vmem:[#allocation23 + $0x258] sm:$0xff]
    %v1203 = vld [vmem:[#allocation23 + $0x260] sm:$0xff]
    %v1204 = vld [vmem:[#allocation23 + $0x268] sm:$0xff]
    %v1205 = vld [vmem:[#allocation23 + $0x270] sm:$0xff]
    %v1206 = vld [vmem:[#allocation23 + $0x278] sm:$0xff]
    %v1207 = vld [vmem:[#allocation23 + $0x280] sm:$0xff]
    %v1208 = vld [vmem:[#allocation23 + $0x288] sm:$0xff]
    %v1209 = vld [vmem:[#allocation23 + $0x290] sm:$0xff]
    %v1210 = vld [vmem:[#allocation23 + $0x298] sm:$0xff]
    %v1211 = vld [vmem:[#allocation23 + $0x2a0] sm:$0xff]
    %v1212 = vld [vmem:[#allocation23 + $0x2a8] sm:$0xff]
    %v1213 = vld [vmem:[#allocation23 + $0x2b0] sm:$0xff]
    %v1214 = vld [vmem:[#allocation23 + $0x2b8] sm:$0xff]
    %v1215 = vld [vmem:[#allocation23 + $0x2c0] sm:$0xff]
    %v1216 = vld [vmem:[#allocation23 + $0x2c8] sm:$0xff]
    %v1217 = vld [vmem:[#allocation23 + $0x2d0] sm:$0xff]
    %v1218 = vld [vmem:[#allocation23 + $0x2d8] sm:$0xff]
    %v1219 = vld [vmem:[#allocation23 + $0x2e0] sm:$0xff]
    %v1220 = vld [vmem:[#allocation23 + $0x2e8] sm:$0xff]
    %v1221 = vld [vmem:[#allocation23 + $0x2f0] sm:$0xff]
    %v1222 = vld [vmem:[#allocation23 + $0x2f8] sm:$0xff]
    %v1223 = vld [vmem:[#allocation23 + $0x300] sm:$0xff]
    %v1224 = vld [vmem:[#allocation23 + $0x308] sm:$0xff]
    %v1225 = vld [vmem:[#allocation23 + $0x310] sm:$0xff]
    %v1226 = vld [vmem:[#allocation23 + $0x318] sm:$0xff]
    %v1227 = vld [vmem:[#allocation23 + $0x320] sm:$0xff]
    %v1228 = vld [vmem:[#allocation23 + $0x328] sm:$0xff]
    %v1229 = vld [vmem:[#allocation23 + $0x330] sm:$0xff]
    %v1230 = vld [vmem:[#allocation23 + $0x338] sm:$0xff]
    %v1231 = vld [vmem:[#allocation23 + $0x340] sm:$0xff]
    %v1232 = vld [vmem:[#allocation23 + $0x348] sm:$0xff]
    %v1233 = vld [vmem:[#allocation23 + $0x350] sm:$0xff]
    %v1234 = vld [vmem:[#allocation23 + $0x358] sm:$0xff]
    %v1235 = vld [vmem:[#allocation23 + $0x360] sm:$0xff]
    %v1236 = vld [vmem:[#allocation23 + $0x368] sm:$0xff]
    %v1237 = vld [vmem:[#allocation23 + $0x370] sm:$0xff]
    %v1238 = vld [vmem:[#allocation23 + $0x378] sm:$0xff]
    %v1239 = vld [vmem:[#allocation23 + $0x380] sm:$0xff]
    %v1240 = vld [vmem:[#allocation23 + $0x388] sm:$0xff]
    %v1241 = vld [vmem:[#allocation23 + $0x390] sm:$0xff]
    %v1242 = vld [vmem:[#allocation23 + $0x398] sm:$0xff]
    %v1243 = vld [vmem:[#allocation23 + $0x3a0] sm:$0xff]
    %v1244 = vld [vmem:[#allocation23 + $0x3a8] sm:$0xff]
    %v1245 = vld [vmem:[#allocation23 + $0x3b0] sm:$0xff]
    %v1246 = vld [vmem:[#allocation23 + $0x3b8] sm:$0xff]
    %v1247 = vld [vmem:[#allocation23 + $0x3c0] sm:$0xff]
    %v1248 = vld [vmem:[#allocation23 + $0x3c8] sm:$0xff]
    %v1249 = vld [vmem:[#allocation23 + $0x3d0] sm:$0xff]
    %v1250 = vld [vmem:[#allocation23 + $0x3d8] sm:$0xff]
    %v1251 = vld [vmem:[#allocation23 + $0x3e0] sm:$0xff]
    %v1252 = vld [vmem:[#allocation23 + $0x3e8] sm:$0xff]
    %v1253 = vld [vmem:[#allocation23 + $0x3f0] sm:$0xff]
    %v1254 = vld [vmem:[#allocation23 + $0x3f8] sm:$0xff]
    %v1255 = vld [vmem:[#allocation23 + $0x400] sm:$0xff]
    %v1256 = vld [vmem:[#allocation23 + $0x408] sm:$0xff]
    %v1257 = vld [vmem:[#allocation23 + $0x410] sm:$0xff]
    %v1258 = vld [vmem:[#allocation23 + $0x418] sm:$0xff]
    %v1259 = vld [vmem:[#allocation23 + $0x420] sm:$0xff]
    %v1260 = vld [vmem:[#allocation23 + $0x428] sm:$0xff]
    %v1261 = vld [vmem:[#allocation23 + $0x430] sm:$0xff]
    %v1262 = vld [vmem:[#allocation23 + $0x438] sm:$0xff]
    %v1263 = vld [vmem:[#allocation23 + $0x440] sm:$0xff]
    %v1264 = vld [vmem:[#allocation23 + $0x448] sm:$0xff]
    %v1265 = vld [vmem:[#allocation23 + $0x450] sm:$0xff]
    %v1266 = vld [vmem:[#allocation23 + $0x458] sm:$0xff]
    %v1267 = vld [vmem:[#allocation23 + $0x460] sm:$0xff]
    %v1268 = vld [vmem:[#allocation23 + $0x468] sm:$0xff]
    %v1269 = vld [vmem:[#allocation23 + $0x470] sm:$0xff]
    %v1270 = vld [vmem:[#allocation23 + $0x478] sm:$0xff]
    %v1271 = vld [vmem:[#allocation23 + $0x480] sm:$0xff]
    %v1272 = vld [vmem:[#allocation23 + $0x488] sm:$0xff]
    %v1273 = vld [vmem:[#allocation23 + $0x490] sm:$0xff]
    %v1274 = vld [vmem:[#allocation23 + $0x498] sm:$0xff]
    %v1275 = vld [vmem:[#allocation23 + $0x4a0] sm:$0xff]
    %v1276 = vld [vmem:[#allocation23 + $0x4a8] sm:$0xff]
    %v1277 = vld [vmem:[#allocation23 + $0x4b0] sm:$0xff]
    %v1278 = vld [vmem:[#allocation23 + $0x4b8] sm:$0xff]
    %v1279 = vld [vmem:[#allocation23 + $0x4c0] sm:$0xff]
    %v1280 = vld [vmem:[#allocation23 + $0x4c8] sm:$0xff]
    %v1281 = vld [vmem:[#allocation23 + $0x4d0] sm:$0xff]
    %v1282 = vld [vmem:[#allocation23 + $0x4d8] sm:$0xff]
    %v1283 = vld [vmem:[#allocation23 + $0x4e0] sm:$0xff]
    %v1284 = vld [vmem:[#allocation23 + $0x4e8] sm:$0xff]
    %v1285 = vld [vmem:[#allocation23 + $0x4f0] sm:$0xff]
    %v1286 = vld [vmem:[#allocation23 + $0x4f8] sm:$0xff]
    %v1287 = vld [vmem:[#allocation23 + $0x500] sm:$0xff]
    %v1288 = vld [vmem:[#allocation23 + $0x508] sm:$0xff]
    %v1289 = vld [vmem:[#allocation23 + $0x510] sm:$0xff]
    %v1290 = vld [vmem:[#allocation23 + $0x518] sm:$0xff]
    %v1291 = vld [vmem:[#allocation23 + $0x520] sm:$0xff]
    %v1292 = vld [vmem:[#allocation23 + $0x528] sm:$0xff]
    %v1293 = vld [vmem:[#allocation23 + $0x530] sm:$0xff]
    %v1294 = vld [vmem:[#allocation23 + $0x538] sm:$0xff]
    %v1295 = vld [vmem:[#allocation23 + $0x540] sm:$0xff]
    %v1296 = vld [vmem:[#allocation23 + $0x548] sm:$0xff]
    %v1297 = vld [vmem:[#allocation23 + $0x550] sm:$0xff]
    %v1298 = vld [vmem:[#allocation23 + $0x558] sm:$0xff]
    %v1299 = vld [vmem:[#allocation23 + $0x560] sm:$0xff]
    %v1300 = vld [vmem:[#allocation23 + $0x568] sm:$0xff]
    %v1301 = vld [vmem:[#allocation23 + $0x570] sm:$0xff]
    %v1302 = vld [vmem:[#allocation23 + $0x578] sm:$0xff]
    %v1303 = vld [vmem:[#allocation23 + $0x580] sm:$0xff]
    %v1304 = vld [vmem:[#allocation23 + $0x588] sm:$0xff]
    %v1305 = vld [vmem:[#allocation23 + $0x590] sm:$0xff]
    %v1306 = vld [vmem:[#allocation23 + $0x598] sm:$0xff]
    %v1307 = vld [vmem:[#allocation23 + $0x5a0] sm:$0xff]
    %v1308 = vld [vmem:[#allocation23 + $0x5a8] sm:$0xff]
    %v1309 = vld [vmem:[#allocation23 + $0x5b0] sm:$0xff]
    %v1310 = vld [vmem:[#allocation23 + $0x5b8] sm:$0xff]
    %v1311 = vld [vmem:[#allocation23 + $0x5c0] sm:$0xff]
    %v1312 = vld [vmem:[#allocation23 + $0x5c8] sm:$0xff]
    %v1313 = vld [vmem:[#allocation23 + $0x5d0] sm:$0xff]
    %v1314 = vld [vmem:[#allocation23 + $0x5d8] sm:$0xff]
    %v1315 = vld [vmem:[#allocation23 + $0x5e0] sm:$0xff]
    %v1316 = vld [vmem:[#allocation23 + $0x5e8] sm:$0xff]
    %v1317 = vld [vmem:[#allocation23 + $0x5f0] sm:$0xff]
    %v1318 = vld [vmem:[#allocation23 + $0x5f8] sm:$0xff]
    %v1319 = vld [vmem:[#allocation23 + $0x600] sm:$0xff]
    %v1320 = vld [vmem:[#allocation23 + $0x608] sm:$0xff]
    %v1321 = vld [vmem:[#allocation23 + $0x610] sm:$0xff]
    %v1322 = vld [vmem:[#allocation23 + $0x618] sm:$0xff]
    %v1323 = vld [vmem:[#allocation23 + $0x620] sm:$0xff]
    %v1324 = vld [vmem:[#allocation23 + $0x628] sm:$0xff]
    %v1325 = vld [vmem:[#allocation23 + $0x630] sm:$0xff]
    %v1326 = vld [vmem:[#allocation23 + $0x638] sm:$0xff]
    %v1327 = vld [vmem:[#allocation23 + $0x640] sm:$0xff]
    %v1328 = vld [vmem:[#allocation23 + $0x648] sm:$0xff]
    %v1329 = vld [vmem:[#allocation23 + $0x650] sm:$0xff]
    %v1330 = vld [vmem:[#allocation23 + $0x658] sm:$0xff]
    %v1331 = vld [vmem:[#allocation23 + $0x660] sm:$0xff]
    %v1332 = vld [vmem:[#allocation23 + $0x668] sm:$0xff]
    %v1333 = vld [vmem:[#allocation23 + $0x670] sm:$0xff]
    %v1334 = vld [vmem:[#allocation23 + $0x678] sm:$0xff]
    %v1335 = vld [vmem:[#allocation23 + $0x680] sm:$0xff]
    %v1336 = vld [vmem:[#allocation23 + $0x688] sm:$0xff]
    %v1337 = vld [vmem:[#allocation23 + $0x690] sm:$0xff]
    %v1338 = vld [vmem:[#allocation23 + $0x698] sm:$0xff]
    %v1339 = vld [vmem:[#allocation23 + $0x6a0] sm:$0xff]
    %v1340 = vld [vmem:[#allocation23 + $0x6a8] sm:$0xff]
    %v1341 = vld [vmem:[#allocation23 + $0x6b0] sm:$0xff]
    %v1342 = vld [vmem:[#allocation23 + $0x6b8] sm:$0xff]
    %v1343 = vld [vmem:[#allocation23 + $0x6c0] sm:$0xff]
    %v1344 = vld [vmem:[#allocation23 + $0x6c8] sm:$0xff]
    %v1345 = vld [vmem:[#allocation23 + $0x6d0] sm:$0xff]
    %v1346 = vld [vmem:[#allocation23 + $0x6d8] sm:$0xff]
    %v1347 = vld [vmem:[#allocation23 + $0x6e0] sm:$0xff]
    %v1348 = vld [vmem:[#allocation23 + $0x6e8] sm:$0xff]
    %v1349 = vld [vmem:[#allocation23 + $0x6f0] sm:$0xff]
    %v1350 = vld [vmem:[#allocation23 + $0x6f8] sm:$0xff]
    %v1351 = vld [vmem:[#allocation23 + $0x700] sm:$0xff]
    %v1352 = vld [vmem:[#allocation23 + $0x708] sm:$0xff]
    %v1353 = vld [vmem:[#allocation23 + $0x710] sm:$0xff]
    %v1354 = vld [vmem:[#allocation23 + $0x718] sm:$0xff]
    %v1355 = vld [vmem:[#allocation23 + $0x720] sm:$0xff]
    %v1356 = vld [vmem:[#allocation23 + $0x728] sm:$0xff]
    %v1357 = vld [vmem:[#allocation23 + $0x730] sm:$0xff]
    %v1358 = vld [vmem:[#allocation23 + $0x738] sm:$0xff]
    %v1359 = vld [vmem:[#allocation23 + $0x740] sm:$0xff]
    %v1360 = vld [vmem:[#allocation23 + $0x748] sm:$0xff]
    %v1361 = vld [vmem:[#allocation23 + $0x750] sm:$0xff]
    %v1362 = vld [vmem:[#allocation23 + $0x758] sm:$0xff]
    %v1363 = vld [vmem:[#allocation23 + $0x760] sm:$0xff]
    %v1364 = vld [vmem:[#allocation23 + $0x768] sm:$0xff]
    %v1365 = vld [vmem:[#allocation23 + $0x770] sm:$0xff]
    %v1366 = vld [vmem:[#allocation23 + $0x778] sm:$0xff]
    %v1367 = vld [vmem:[#allocation23 + $0x780] sm:$0xff]
    %v1368 = vld [vmem:[#allocation23 + $0x788] sm:$0xff]
    %v1369 = vld [vmem:[#allocation23 + $0x790] sm:$0xff]
    %v1370 = vld [vmem:[#allocation23 + $0x798] sm:$0xff]
    %v1371 = vld [vmem:[#allocation23 + $0x7a0] sm:$0xff]
    %v1372 = vld [vmem:[#allocation23 + $0x7a8] sm:$0xff]
    %v1373 = vld [vmem:[#allocation23 + $0x7b0] sm:$0xff]
    %v1374 = vld [vmem:[#allocation23 + $0x7b8] sm:$0xff]
    %v1375 = vld [vmem:[#allocation23 + $0x7c0] sm:$0xff]
    %v1376 = vld [vmem:[#allocation23 + $0x7c8] sm:$0xff]
    %v1377 = vld [vmem:[#allocation23 + $0x7d0] sm:$0xff]
    %v1378 = vld [vmem:[#allocation23 + $0x7d8] sm:$0xff]
    %v1379 = vld [vmem:[#allocation23 + $0x7e0] sm:$0xff]
    %v1380 = vld [vmem:[#allocation23 + $0x7e8] sm:$0xff]
    %v1381 = vld [vmem:[#allocation23 + $0x7f0] sm:$0xff]
    %v1382 = vld [vmem:[#allocation23 + $0x7f8] sm:$0xff]
    %v1383 = vunpack.c.l.bf16 %v1127
    %v1384 = vunpack.c.h.bf16 %v1127
    %v1385 = vunpack.c.l.bf16 %v1128
    %v1386 = vunpack.c.h.bf16 %v1128
    %v1387 = vunpack.c.l.bf16 %v1129
    %v1388 = vunpack.c.h.bf16 %v1129
    %v1389 = vunpack.c.l.bf16 %v1130
    %v1390 = vunpack.c.h.bf16 %v1130
    %v1391 = vunpack.c.l.bf16 %v1131
    %v1392 = vunpack.c.h.bf16 %v1131
    %v1393 = vunpack.c.l.bf16 %v1132
    %v1394 = vunpack.c.h.bf16 %v1132
    %v1395 = vunpack.c.l.bf16 %v1133
    %v1396 = vunpack.c.h.bf16 %v1133
    %v1397 = vunpack.c.l.bf16 %v1134
    %v1398 = vunpack.c.h.bf16 %v1134
    %v1399 = vunpack.c.l.bf16 %v1135
    %v1400 = vunpack.c.h.bf16 %v1135
    %v1401 = vunpack.c.l.bf16 %v1136
    %v1402 = vunpack.c.h.bf16 %v1136
    %v1403 = vunpack.c.l.bf16 %v1137
    %v1404 = vunpack.c.h.bf16 %v1137
    %v1405 = vunpack.c.l.bf16 %v1138
    %v1406 = vunpack.c.h.bf16 %v1138
    %v1407 = vunpack.c.l.bf16 %v1139
    %v1408 = vunpack.c.h.bf16 %v1139
    %v1409 = vunpack.c.l.bf16 %v1140
    %v1410 = vunpack.c.h.bf16 %v1140
    %v1411 = vunpack.c.l.bf16 %v1141
    %v1412 = vunpack.c.h.bf16 %v1141
    %v1413 = vunpack.c.l.bf16 %v1142
    %v1414 = vunpack.c.h.bf16 %v1142
    %v1415 = vunpack.c.l.bf16 %v1143
    %v1416 = vunpack.c.h.bf16 %v1143
    %v1417 = vunpack.c.l.bf16 %v1144
    %v1418 = vunpack.c.h.bf16 %v1144
    %v1419 = vunpack.c.l.bf16 %v1145
    %v1420 = vunpack.c.h.bf16 %v1145
    %v1421 = vunpack.c.l.bf16 %v1146
    %v1422 = vunpack.c.h.bf16 %v1146
    %v1423 = vunpack.c.l.bf16 %v1147
    %v1424 = vunpack.c.h.bf16 %v1147
    %v1425 = vunpack.c.l.bf16 %v1148
    %v1426 = vunpack.c.h.bf16 %v1148
    %v1427 = vunpack.c.l.bf16 %v1149
    %v1428 = vunpack.c.h.bf16 %v1149
    %v1429 = vunpack.c.l.bf16 %v1150
    %v1430 = vunpack.c.h.bf16 %v1150
    %v1431 = vunpack.c.l.bf16 %v1151
    %v1432 = vunpack.c.h.bf16 %v1151
    %v1433 = vunpack.c.l.bf16 %v1152
    %v1434 = vunpack.c.h.bf16 %v1152
    %v1435 = vunpack.c.l.bf16 %v1153
    %v1436 = vunpack.c.h.bf16 %v1153
    %v1437 = vunpack.c.l.bf16 %v1154
    %v1438 = vunpack.c.h.bf16 %v1154
    %v1439 = vunpack.c.l.bf16 %v1155
    %v1440 = vunpack.c.h.bf16 %v1155
    %v1441 = vunpack.c.l.bf16 %v1156
    %v1442 = vunpack.c.h.bf16 %v1156
    %v1443 = vunpack.c.l.bf16 %v1157
    %v1444 = vunpack.c.h.bf16 %v1157
    %v1445 = vunpack.c.l.bf16 %v1158
    %v1446 = vunpack.c.h.bf16 %v1158
    %v1447 = vunpack.c.l.bf16 %v1159
    %v1448 = vunpack.c.h.bf16 %v1159
    %v1449 = vunpack.c.l.bf16 %v1160
    %v1450 = vunpack.c.h.bf16 %v1160
    %v1451 = vunpack.c.l.bf16 %v1161
    %v1452 = vunpack.c.h.bf16 %v1161
    %v1453 = vunpack.c.l.bf16 %v1162
    %v1454 = vunpack.c.h.bf16 %v1162
    %v1455 = vunpack.c.l.bf16 %v1163
    %v1456 = vunpack.c.h.bf16 %v1163
    %v1457 = vunpack.c.l.bf16 %v1164
    %v1458 = vunpack.c.h.bf16 %v1164
    %v1459 = vunpack.c.l.bf16 %v1165
    %v1460 = vunpack.c.h.bf16 %v1165
    %v1461 = vunpack.c.l.bf16 %v1166
    %v1462 = vunpack.c.h.bf16 %v1166
    %v1463 = vunpack.c.l.bf16 %v1167
    %v1464 = vunpack.c.h.bf16 %v1167
    %v1465 = vunpack.c.l.bf16 %v1168
    %v1466 = vunpack.c.h.bf16 %v1168
    %v1467 = vunpack.c.l.bf16 %v1169
    %v1468 = vunpack.c.h.bf16 %v1169
    %v1469 = vunpack.c.l.bf16 %v1170
    %v1470 = vunpack.c.h.bf16 %v1170
    %v1471 = vunpack.c.l.bf16 %v1171
    %v1472 = vunpack.c.h.bf16 %v1171
    %v1473 = vunpack.c.l.bf16 %v1172
    %v1474 = vunpack.c.h.bf16 %v1172
    %v1475 = vunpack.c.l.bf16 %v1173
    %v1476 = vunpack.c.h.bf16 %v1173
    %v1477 = vunpack.c.l.bf16 %v1174
    %v1478 = vunpack.c.h.bf16 %v1174
    %v1479 = vunpack.c.l.bf16 %v1175
    %v1480 = vunpack.c.h.bf16 %v1175
    %v1481 = vunpack.c.l.bf16 %v1176
    %v1482 = vunpack.c.h.bf16 %v1176
    %v1483 = vunpack.c.l.bf16 %v1177
    %v1484 = vunpack.c.h.bf16 %v1177
    %v1485 = vunpack.c.l.bf16 %v1178
    %v1486 = vunpack.c.h.bf16 %v1178
    %v1487 = vunpack.c.l.bf16 %v1179
    %v1488 = vunpack.c.h.bf16 %v1179
    %v1489 = vunpack.c.l.bf16 %v1180
    %v1490 = vunpack.c.h.bf16 %v1180
    %v1491 = vunpack.c.l.bf16 %v1181
    %v1492 = vunpack.c.h.bf16 %v1181
    %v1493 = vunpack.c.l.bf16 %v1182
    %v1494 = vunpack.c.h.bf16 %v1182
    %v1495 = vunpack.c.l.bf16 %v1183
    %v1496 = vunpack.c.h.bf16 %v1183
    %v1497 = vunpack.c.l.bf16 %v1184
    %v1498 = vunpack.c.h.bf16 %v1184
    %v1499 = vunpack.c.l.bf16 %v1185
    %v1500 = vunpack.c.h.bf16 %v1185
    %v1501 = vunpack.c.l.bf16 %v1186
    %v1502 = vunpack.c.h.bf16 %v1186
    %v1503 = vunpack.c.l.bf16 %v1187
    %v1504 = vunpack.c.h.bf16 %v1187
    %v1505 = vunpack.c.l.bf16 %v1188
    %v1506 = vunpack.c.h.bf16 %v1188
    %v1507 = vunpack.c.l.bf16 %v1189
    %v1508 = vunpack.c.h.bf16 %v1189
    %v1509 = vunpack.c.l.bf16 %v1190
    %v1510 = vunpack.c.h.bf16 %v1190
    %v1511 = vunpack.c.l.bf16 %v1191
    %v1512 = vunpack.c.h.bf16 %v1191
    %v1513 = vunpack.c.l.bf16 %v1192
    %v1514 = vunpack.c.h.bf16 %v1192
    %v1515 = vunpack.c.l.bf16 %v1193
    %v1516 = vunpack.c.h.bf16 %v1193
    %v1517 = vunpack.c.l.bf16 %v1194
    %v1518 = vunpack.c.h.bf16 %v1194
    %v1519 = vunpack.c.l.bf16 %v1195
    %v1520 = vunpack.c.h.bf16 %v1195
    %v1521 = vunpack.c.l.bf16 %v1196
    %v1522 = vunpack.c.h.bf16 %v1196
    %v1523 = vunpack.c.l.bf16 %v1197
    %v1524 = vunpack.c.h.bf16 %v1197
    %v1525 = vunpack.c.l.bf16 %v1198
    %v1526 = vunpack.c.h.bf16 %v1198
    %v1527 = vunpack.c.l.bf16 %v1199
    %v1528 = vunpack.c.h.bf16 %v1199
    %v1529 = vunpack.c.l.bf16 %v1200
    %v1530 = vunpack.c.h.bf16 %v1200
    %v1531 = vunpack.c.l.bf16 %v1201
    %v1532 = vunpack.c.h.bf16 %v1201
    %v1533 = vunpack.c.l.bf16 %v1202
    %v1534 = vunpack.c.h.bf16 %v1202
    %v1535 = vunpack.c.l.bf16 %v1203
    %v1536 = vunpack.c.h.bf16 %v1203
    %v1537 = vunpack.c.l.bf16 %v1204
    %v1538 = vunpack.c.h.bf16 %v1204
    %v1539 = vunpack.c.l.bf16 %v1205
    %v1540 = vunpack.c.h.bf16 %v1205
    %v1541 = vunpack.c.l.bf16 %v1206
    %v1542 = vunpack.c.h.bf16 %v1206
    %v1543 = vunpack.c.l.bf16 %v1207
    %v1544 = vunpack.c.h.bf16 %v1207
    %v1545 = vunpack.c.l.bf16 %v1208
    %v1546 = vunpack.c.h.bf16 %v1208
    %v1547 = vunpack.c.l.bf16 %v1209
    %v1548 = vunpack.c.h.bf16 %v1209
    %v1549 = vunpack.c.l.bf16 %v1210
    %v1550 = vunpack.c.h.bf16 %v1210
    %v1551 = vunpack.c.l.bf16 %v1211
    %v1552 = vunpack.c.h.bf16 %v1211
    %v1553 = vunpack.c.l.bf16 %v1212
    %v1554 = vunpack.c.h.bf16 %v1212
    %v1555 = vunpack.c.l.bf16 %v1213
    %v1556 = vunpack.c.h.bf16 %v1213
    %v1557 = vunpack.c.l.bf16 %v1214
    %v1558 = vunpack.c.h.bf16 %v1214
    %v1559 = vunpack.c.l.bf16 %v1215
    %v1560 = vunpack.c.h.bf16 %v1215
    %v1561 = vunpack.c.l.bf16 %v1216
    %v1562 = vunpack.c.h.bf16 %v1216
    %v1563 = vunpack.c.l.bf16 %v1217
    %v1564 = vunpack.c.h.bf16 %v1217
    %v1565 = vunpack.c.l.bf16 %v1218
    %v1566 = vunpack.c.h.bf16 %v1218
    %v1567 = vunpack.c.l.bf16 %v1219
    %v1568 = vunpack.c.h.bf16 %v1219
    %v1569 = vunpack.c.l.bf16 %v1220
    %v1570 = vunpack.c.h.bf16 %v1220
    %v1571 = vunpack.c.l.bf16 %v1221
    %v1572 = vunpack.c.h.bf16 %v1221
    %v1573 = vunpack.c.l.bf16 %v1222
    %v1574 = vunpack.c.h.bf16 %v1222
    %v1575 = vunpack.c.l.bf16 %v1223
    %v1576 = vunpack.c.h.bf16 %v1223
    %v1577 = vunpack.c.l.bf16 %v1224
    %v1578 = vunpack.c.h.bf16 %v1224
    %v1579 = vunpack.c.l.bf16 %v1225
    %v1580 = vunpack.c.h.bf16 %v1225
    %v1581 = vunpack.c.l.bf16 %v1226
    %v1582 = vunpack.c.h.bf16 %v1226
    %v1583 = vunpack.c.l.bf16 %v1227
    %v1584 = vunpack.c.h.bf16 %v1227
    %v1585 = vunpack.c.l.bf16 %v1228
    %v1586 = vunpack.c.h.bf16 %v1228
    %v1587 = vunpack.c.l.bf16 %v1229
    %v1588 = vunpack.c.h.bf16 %v1229
    %v1589 = vunpack.c.l.bf16 %v1230
    %v1590 = vunpack.c.h.bf16 %v1230
    %v1591 = vunpack.c.l.bf16 %v1231
    %v1592 = vunpack.c.h.bf16 %v1231
    %v1593 = vunpack.c.l.bf16 %v1232
    %v1594 = vunpack.c.h.bf16 %v1232
    %v1595 = vunpack.c.l.bf16 %v1233
    %v1596 = vunpack.c.h.bf16 %v1233
    %v1597 = vunpack.c.l.bf16 %v1234
    %v1598 = vunpack.c.h.bf16 %v1234
    %v1599 = vunpack.c.l.bf16 %v1235
    %v1600 = vunpack.c.h.bf16 %v1235
    %v1601 = vunpack.c.l.bf16 %v1236
    %v1602 = vunpack.c.h.bf16 %v1236
    %v1603 = vunpack.c.l.bf16 %v1237
    %v1604 = vunpack.c.h.bf16 %v1237
    %v1605 = vunpack.c.l.bf16 %v1238
    %v1606 = vunpack.c.h.bf16 %v1238
    %v1607 = vunpack.c.l.bf16 %v1239
    %v1608 = vunpack.c.h.bf16 %v1239
    %v1609 = vunpack.c.l.bf16 %v1240
    %v1610 = vunpack.c.h.bf16 %v1240
    %v1611 = vunpack.c.l.bf16 %v1241
    %v1612 = vunpack.c.h.bf16 %v1241
    %v1613 = vunpack.c.l.bf16 %v1242
    %v1614 = vunpack.c.h.bf16 %v1242
    %v1615 = vunpack.c.l.bf16 %v1243
    %v1616 = vunpack.c.h.bf16 %v1243
    %v1617 = vunpack.c.l.bf16 %v1244
    %v1618 = vunpack.c.h.bf16 %v1244
    %v1619 = vunpack.c.l.bf16 %v1245
    %v1620 = vunpack.c.h.bf16 %v1245
    %v1621 = vunpack.c.l.bf16 %v1246
    %v1622 = vunpack.c.h.bf16 %v1246
    %v1623 = vunpack.c.l.bf16 %v1247
    %v1624 = vunpack.c.h.bf16 %v1247
    %v1625 = vunpack.c.l.bf16 %v1248
    %v1626 = vunpack.c.h.bf16 %v1248
    %v1627 = vunpack.c.l.bf16 %v1249
    %v1628 = vunpack.c.h.bf16 %v1249
    %v1629 = vunpack.c.l.bf16 %v1250
    %v1630 = vunpack.c.h.bf16 %v1250
    %v1631 = vunpack.c.l.bf16 %v1251
    %v1632 = vunpack.c.h.bf16 %v1251
    %v1633 = vunpack.c.l.bf16 %v1252
    %v1634 = vunpack.c.h.bf16 %v1252
    %v1635 = vunpack.c.l.bf16 %v1253
    %v1636 = vunpack.c.h.bf16 %v1253
    %v1637 = vunpack.c.l.bf16 %v1254
    %v1638 = vunpack.c.h.bf16 %v1254
    %v1639 = vunpack.c.l.bf16 %v1255
    %v1640 = vunpack.c.h.bf16 %v1255
    %v1641 = vunpack.c.l.bf16 %v1256
    %v1642 = vunpack.c.h.bf16 %v1256
    %v1643 = vunpack.c.l.bf16 %v1257
    %v1644 = vunpack.c.h.bf16 %v1257
    %v1645 = vunpack.c.l.bf16 %v1258
    %v1646 = vunpack.c.h.bf16 %v1258
    %v1647 = vunpack.c.l.bf16 %v1259
    %v1648 = vunpack.c.h.bf16 %v1259
    %v1649 = vunpack.c.l.bf16 %v1260
    %v1650 = vunpack.c.h.bf16 %v1260
    %v1651 = vunpack.c.l.bf16 %v1261
    %v1652 = vunpack.c.h.bf16 %v1261
    %v1653 = vunpack.c.l.bf16 %v1262
    %v1654 = vunpack.c.h.bf16 %v1262
    %v1655 = vunpack.c.l.bf16 %v1263
    %v1656 = vunpack.c.h.bf16 %v1263
    %v1657 = vunpack.c.l.bf16 %v1264
    %v1658 = vunpack.c.h.bf16 %v1264
    %v1659 = vunpack.c.l.bf16 %v1265
    %v1660 = vunpack.c.h.bf16 %v1265
    %v1661 = vunpack.c.l.bf16 %v1266
    %v1662 = vunpack.c.h.bf16 %v1266
    %v1663 = vunpack.c.l.bf16 %v1267
    %v1664 = vunpack.c.h.bf16 %v1267
    %v1665 = vunpack.c.l.bf16 %v1268
    %v1666 = vunpack.c.h.bf16 %v1268
    %v1667 = vunpack.c.l.bf16 %v1269
    %v1668 = vunpack.c.h.bf16 %v1269
    %v1669 = vunpack.c.l.bf16 %v1270
    %v1670 = vunpack.c.h.bf16 %v1270
    %v1671 = vunpack.c.l.bf16 %v1271
    %v1672 = vunpack.c.h.bf16 %v1271
    %v1673 = vunpack.c.l.bf16 %v1272
    %v1674 = vunpack.c.h.bf16 %v1272
    %v1675 = vunpack.c.l.bf16 %v1273
    %v1676 = vunpack.c.h.bf16 %v1273
    %v1677 = vunpack.c.l.bf16 %v1274
    %v1678 = vunpack.c.h.bf16 %v1274
    %v1679 = vunpack.c.l.bf16 %v1275
    %v1680 = vunpack.c.h.bf16 %v1275
    %v1681 = vunpack.c.l.bf16 %v1276
    %v1682 = vunpack.c.h.bf16 %v1276
    %v1683 = vunpack.c.l.bf16 %v1277
    %v1684 = vunpack.c.h.bf16 %v1277
    %v1685 = vunpack.c.l.bf16 %v1278
    %v1686 = vunpack.c.h.bf16 %v1278
    %v1687 = vunpack.c.l.bf16 %v1279
    %v1688 = vunpack.c.h.bf16 %v1279
    %v1689 = vunpack.c.l.bf16 %v1280
    %v1690 = vunpack.c.h.bf16 %v1280
    %v1691 = vunpack.c.l.bf16 %v1281
    %v1692 = vunpack.c.h.bf16 %v1281
    %v1693 = vunpack.c.l.bf16 %v1282
    %v1694 = vunpack.c.h.bf16 %v1282
    %v1695 = vunpack.c.l.bf16 %v1283
    %v1696 = vunpack.c.h.bf16 %v1283
    %v1697 = vunpack.c.l.bf16 %v1284
    %v1698 = vunpack.c.h.bf16 %v1284
    %v1699 = vunpack.c.l.bf16 %v1285
    %v1700 = vunpack.c.h.bf16 %v1285
    %v1701 = vunpack.c.l.bf16 %v1286
    %v1702 = vunpack.c.h.bf16 %v1286
    %v1703 = vunpack.c.l.bf16 %v1287
    %v1704 = vunpack.c.h.bf16 %v1287
    %v1705 = vunpack.c.l.bf16 %v1288
    %v1706 = vunpack.c.h.bf16 %v1288
    %v1707 = vunpack.c.l.bf16 %v1289
    %v1708 = vunpack.c.h.bf16 %v1289
    %v1709 = vunpack.c.l.bf16 %v1290
    %v1710 = vunpack.c.h.bf16 %v1290
    %v1711 = vunpack.c.l.bf16 %v1291
    %v1712 = vunpack.c.h.bf16 %v1291
    %v1713 = vunpack.c.l.bf16 %v1292
    %v1714 = vunpack.c.h.bf16 %v1292
    %v1715 = vunpack.c.l.bf16 %v1293
    %v1716 = vunpack.c.h.bf16 %v1293
    %v1717 = vunpack.c.l.bf16 %v1294
    %v1718 = vunpack.c.h.bf16 %v1294
    %v1719 = vunpack.c.l.bf16 %v1295
    %v1720 = vunpack.c.h.bf16 %v1295
    %v1721 = vunpack.c.l.bf16 %v1296
    %v1722 = vunpack.c.h.bf16 %v1296
    %v1723 = vunpack.c.l.bf16 %v1297
    %v1724 = vunpack.c.h.bf16 %v1297
    %v1725 = vunpack.c.l.bf16 %v1298
    %v1726 = vunpack.c.h.bf16 %v1298
    %v1727 = vunpack.c.l.bf16 %v1299
    %v1728 = vunpack.c.h.bf16 %v1299
    %v1729 = vunpack.c.l.bf16 %v1300
    %v1730 = vunpack.c.h.bf16 %v1300
    %v1731 = vunpack.c.l.bf16 %v1301
    %v1732 = vunpack.c.h.bf16 %v1301
    %v1733 = vunpack.c.l.bf16 %v1302
    %v1734 = vunpack.c.h.bf16 %v1302
    %v1735 = vunpack.c.l.bf16 %v1303
    %v1736 = vunpack.c.h.bf16 %v1303
    %v1737 = vunpack.c.l.bf16 %v1304
    %v1738 = vunpack.c.h.bf16 %v1304
    %v1739 = vunpack.c.l.bf16 %v1305
    %v1740 = vunpack.c.h.bf16 %v1305
    %v1741 = vunpack.c.l.bf16 %v1306
    %v1742 = vunpack.c.h.bf16 %v1306
    %v1743 = vunpack.c.l.bf16 %v1307
    %v1744 = vunpack.c.h.bf16 %v1307
    %v1745 = vunpack.c.l.bf16 %v1308
    %v1746 = vunpack.c.h.bf16 %v1308
    %v1747 = vunpack.c.l.bf16 %v1309
    %v1748 = vunpack.c.h.bf16 %v1309
    %v1749 = vunpack.c.l.bf16 %v1310
    %v1750 = vunpack.c.h.bf16 %v1310
    %v1751 = vunpack.c.l.bf16 %v1311
    %v1752 = vunpack.c.h.bf16 %v1311
    %v1753 = vunpack.c.l.bf16 %v1312
    %v1754 = vunpack.c.h.bf16 %v1312
    %v1755 = vunpack.c.l.bf16 %v1313
    %v1756 = vunpack.c.h.bf16 %v1313
    %v1757 = vunpack.c.l.bf16 %v1314
    %v1758 = vunpack.c.h.bf16 %v1314
    %v1759 = vunpack.c.l.bf16 %v1315
    %v1760 = vunpack.c.h.bf16 %v1315
    %v1761 = vunpack.c.l.bf16 %v1316
    %v1762 = vunpack.c.h.bf16 %v1316
    %v1763 = vunpack.c.l.bf16 %v1317
    %v1764 = vunpack.c.h.bf16 %v1317
    %v1765 = vunpack.c.l.bf16 %v1318
    %v1766 = vunpack.c.h.bf16 %v1318
    %v1767 = vunpack.c.l.bf16 %v1319
    %v1768 = vunpack.c.h.bf16 %v1319
    %v1769 = vunpack.c.l.bf16 %v1320
    %v1770 = vunpack.c.h.bf16 %v1320
    %v1771 = vunpack.c.l.bf16 %v1321
    %v1772 = vunpack.c.h.bf16 %v1321
    %v1773 = vunpack.c.l.bf16 %v1322
    %v1774 = vunpack.c.h.bf16 %v1322
    %v1775 = vunpack.c.l.bf16 %v1323
    %v1776 = vunpack.c.h.bf16 %v1323
    %v1777 = vunpack.c.l.bf16 %v1324
    %v1778 = vunpack.c.h.bf16 %v1324
    %v1779 = vunpack.c.l.bf16 %v1325
    %v1780 = vunpack.c.h.bf16 %v1325
    %v1781 = vunpack.c.l.bf16 %v1326
    %v1782 = vunpack.c.h.bf16 %v1326
    %v1783 = vunpack.c.l.bf16 %v1327
    %v1784 = vunpack.c.h.bf16 %v1327
    %v1785 = vunpack.c.l.bf16 %v1328
    %v1786 = vunpack.c.h.bf16 %v1328
    %v1787 = vunpack.c.l.bf16 %v1329
    %v1788 = vunpack.c.h.bf16 %v1329
    %v1789 = vunpack.c.l.bf16 %v1330
    %v1790 = vunpack.c.h.bf16 %v1330
    %v1791 = vunpack.c.l.bf16 %v1331
    %v1792 = vunpack.c.h.bf16 %v1331
    %v1793 = vunpack.c.l.bf16 %v1332
    %v1794 = vunpack.c.h.bf16 %v1332
    %v1795 = vunpack.c.l.bf16 %v1333
    %v1796 = vunpack.c.h.bf16 %v1333
    %v1797 = vunpack.c.l.bf16 %v1334
    %v1798 = vunpack.c.h.bf16 %v1334
    %v1799 = vunpack.c.l.bf16 %v1335
    %v1800 = vunpack.c.h.bf16 %v1335
    %v1801 = vunpack.c.l.bf16 %v1336
    %v1802 = vunpack.c.h.bf16 %v1336
    %v1803 = vunpack.c.l.bf16 %v1337
    %v1804 = vunpack.c.h.bf16 %v1337
    %v1805 = vunpack.c.l.bf16 %v1338
    %v1806 = vunpack.c.h.bf16 %v1338
    %v1807 = vunpack.c.l.bf16 %v1339
    %v1808 = vunpack.c.h.bf16 %v1339
    %v1809 = vunpack.c.l.bf16 %v1340
    %v1810 = vunpack.c.h.bf16 %v1340
    %v1811 = vunpack.c.l.bf16 %v1341
    %v1812 = vunpack.c.h.bf16 %v1341
    %v1813 = vunpack.c.l.bf16 %v1342
    %v1814 = vunpack.c.h.bf16 %v1342
    %v1815 = vunpack.c.l.bf16 %v1343
    %v1816 = vunpack.c.h.bf16 %v1343
    %v1817 = vunpack.c.l.bf16 %v1344
    %v1818 = vunpack.c.h.bf16 %v1344
    %v1819 = vunpack.c.l.bf16 %v1345
    %v1820 = vunpack.c.h.bf16 %v1345
    %v1821 = vunpack.c.l.bf16 %v1346
    %v1822 = vunpack.c.h.bf16 %v1346
    %v1823 = vunpack.c.l.bf16 %v1347
    %v1824 = vunpack.c.h.bf16 %v1347
    %v1825 = vunpack.c.l.bf16 %v1348
    %v1826 = vunpack.c.h.bf16 %v1348
    %v1827 = vunpack.c.l.bf16 %v1349
    %v1828 = vunpack.c.h.bf16 %v1349
    %v1829 = vunpack.c.l.bf16 %v1350
    %v1830 = vunpack.c.h.bf16 %v1350
    %v1831 = vunpack.c.l.bf16 %v1351
    %v1832 = vunpack.c.h.bf16 %v1351
    %v1833 = vunpack.c.l.bf16 %v1352
    %v1834 = vunpack.c.h.bf16 %v1352
    %v1835 = vunpack.c.l.bf16 %v1353
    %v1836 = vunpack.c.h.bf16 %v1353
    %v1837 = vunpack.c.l.bf16 %v1354
    %v1838 = vunpack.c.h.bf16 %v1354
    %v1839 = vunpack.c.l.bf16 %v1355
    %v1840 = vunpack.c.h.bf16 %v1355
    %v1841 = vunpack.c.l.bf16 %v1356
    %v1842 = vunpack.c.h.bf16 %v1356
    %v1843 = vunpack.c.l.bf16 %v1357
    %v1844 = vunpack.c.h.bf16 %v1357
    %v1845 = vunpack.c.l.bf16 %v1358
    %v1846 = vunpack.c.h.bf16 %v1358
    %v1847 = vunpack.c.l.bf16 %v1359
    %v1848 = vunpack.c.h.bf16 %v1359
    %v1849 = vunpack.c.l.bf16 %v1360
    %v1850 = vunpack.c.h.bf16 %v1360
    %v1851 = vunpack.c.l.bf16 %v1361
    %v1852 = vunpack.c.h.bf16 %v1361
    %v1853 = vunpack.c.l.bf16 %v1362
    %v1854 = vunpack.c.h.bf16 %v1362
    %v1855 = vunpack.c.l.bf16 %v1363
    %v1856 = vunpack.c.h.bf16 %v1363
    %v1857 = vunpack.c.l.bf16 %v1364
    %v1858 = vunpack.c.h.bf16 %v1364
    %v1859 = vunpack.c.l.bf16 %v1365
    %v1860 = vunpack.c.h.bf16 %v1365
    %v1861 = vunpack.c.l.bf16 %v1366
    %v1862 = vunpack.c.h.bf16 %v1366
    %v1863 = vunpack.c.l.bf16 %v1367
    %v1864 = vunpack.c.h.bf16 %v1367
    %v1865 = vunpack.c.l.bf16 %v1368
    %v1866 = vunpack.c.h.bf16 %v1368
    %v1867 = vunpack.c.l.bf16 %v1369
    %v1868 = vunpack.c.h.bf16 %v1369
    %v1869 = vunpack.c.l.bf16 %v1370
    %v1870 = vunpack.c.h.bf16 %v1370
    %v1871 = vunpack.c.l.bf16 %v1371
    %v1872 = vunpack.c.h.bf16 %v1371
    %v1873 = vunpack.c.l.bf16 %v1372
    %v1874 = vunpack.c.h.bf16 %v1372
    %v1875 = vunpack.c.l.bf16 %v1373
    %v1876 = vunpack.c.h.bf16 %v1373
    %v1877 = vunpack.c.l.bf16 %v1374
    %v1878 = vunpack.c.h.bf16 %v1374
    %v1879 = vunpack.c.l.bf16 %v1375
    %v1880 = vunpack.c.h.bf16 %v1375
    %v1881 = vunpack.c.l.bf16 %v1376
    %v1882 = vunpack.c.h.bf16 %v1376
    %v1883 = vunpack.c.l.bf16 %v1377
    %v1884 = vunpack.c.h.bf16 %v1377
    %v1885 = vunpack.c.l.bf16 %v1378
    %v1886 = vunpack.c.h.bf16 %v1378
    %v1887 = vunpack.c.l.bf16 %v1379
    %v1888 = vunpack.c.h.bf16 %v1379
    %v1889 = vunpack.c.l.bf16 %v1380
    %v1890 = vunpack.c.h.bf16 %v1380
    %v1891 = vunpack.c.l.bf16 %v1381
    %v1892 = vunpack.c.h.bf16 %v1381
    %v1893 = vunpack.c.l.bf16 %v1382
    %v1894 = vunpack.c.h.bf16 %v1382
    %v1895 = vld [vmem:[#allocation25] sm:$0xff]
    %v1897 = vlaneseq
    %v1898 = vshrl.u32 %v1897, 7
    %v1899 = vsub.s32 0, %v1898
    %v1900 = vrot.slane %v1895, %v1899
    %v1901 = vlaneseq
    %v1902 = vshrl.u32 %v1901, 7
    %v1903 = vsub.s32 1, %v1902
    %v1904 = vrot.slane %v1895, %v1903
    %v1905 = vlaneseq
    %v1906 = vshrl.u32 %v1905, 7
    %v1907 = vsub.s32 2, %v1906
    %v1908 = vrot.slane %v1895, %v1907
    %v1909 = vlaneseq
    %v1910 = vshrl.u32 %v1909, 7
    %v1911 = vsub.s32 3, %v1910
    %v1912 = vrot.slane %v1895, %v1911
    %v1913 = vlaneseq
    %v1914 = vshrl.u32 %v1913, 7
    %v1915 = vsub.s32 4, %v1914
    %v1916 = vrot.slane %v1895, %v1915
    %v1917 = vlaneseq
    %v1918 = vshrl.u32 %v1917, 7
    %v1919 = vsub.s32 5, %v1918
    %v1920 = vrot.slane %v1895, %v1919
    %v1921 = vlaneseq
    %v1922 = vshrl.u32 %v1921, 7
    %v1923 = vsub.s32 6, %v1922
    %v1924 = vrot.slane %v1895, %v1923
    %v1925 = vlaneseq
    %v1926 = vshrl.u32 %v1925, 7
    %v1927 = vsub.s32 7, %v1926
    %v1928 = vrot.slane %v1895, %v1927
    %1937 = vmatprep.subr.mxu0 %v1384
    %1938 = vmatpush1.msra.mxu0 %v1383
    %1939 = vmatprep.subr.mxu0 %v1392
    %1940 = vmatpush1.msra.mxu0 %v1391
    %1941 = vmatprep.subr.mxu0 %v1400
    %1942 = vmatpush1.msra.mxu0 %v1399
    %1943 = vmatprep.subr.mxu0 %v1408
    %1944 = vmatpush1.msra.mxu0 %v1407
    %1945 = vmatprep.subr.mxu0 %v1416
    %1946 = vmatpush1.msra.mxu0 %v1415
    %1947 = vmatprep.subr.mxu0 %v1424
    %1948 = vmatpush1.msra.mxu0 %v1423
    %1949 = vmatprep.subr.mxu0 %v1432
    %1950 = vmatpush1.msra.mxu0 %v1431
    %1951 = vmatprep.subr.mxu0 %v1440
    %1952 = vmatpush1.msra.mxu0 %v1439
    %1953 = vmatprep.subr.mxu0 %v1448
    %1954 = vmatpush1.msra.mxu0 %v1447
    %1955 = vmatprep.subr.mxu0 %v1456
    %1956 = vmatpush1.msra.mxu0 %v1455
    %1957 = vmatprep.subr.mxu0 %v1464
    %1958 = vmatpush1.msra.mxu0 %v1463
    %1959 = vmatprep.subr.mxu0 %v1472
    %1960 = vmatpush1.msra.mxu0 %v1471
    %1961 = vmatprep.subr.mxu0 %v1480
    %1962 = vmatpush1.msra.mxu0 %v1479
    %1963 = vmatprep.subr.mxu0 %v1488
    %1964 = vmatpush1.msra.mxu0 %v1487
    %1965 = vmatprep.subr.mxu0 %v1496
    %1966 = vmatpush1.msra.mxu0 %v1495
    %1967 = vmatprep.subr.mxu0 %v1504
    %1968 = vmatpush1.msra.mxu0 %v1503
    %1969 = vmatprep.subr.mxu0 %v1512
    %1970 = vmatpush1.msra.mxu0 %v1511
    %1971 = vmatprep.subr.mxu0 %v1520
    %1972 = vmatpush1.msra.mxu0 %v1519
    %1973 = vmatprep.subr.mxu0 %v1528
    %1974 = vmatpush1.msra.mxu0 %v1527
    %1975 = vmatprep.subr.mxu0 %v1536
    %1976 = vmatpush1.msra.mxu0 %v1535
    %1977 = vmatprep.subr.mxu0 %v1544
    %1978 = vmatpush1.msra.mxu0 %v1543
    %1979 = vmatprep.subr.mxu0 %v1552
    %1980 = vmatpush1.msra.mxu0 %v1551
    %1981 = vmatprep.subr.mxu0 %v1560
    %1982 = vmatpush1.msra.mxu0 %v1559
    %1983 = vmatprep.subr.mxu0 %v1568
    %1984 = vmatpush1.msra.mxu0 %v1567
    %1985 = vmatprep.subr.mxu0 %v1576
    %1986 = vmatpush1.msra.mxu0 %v1575
    %1987 = vmatprep.subr.mxu0 %v1584
    %1988 = vmatpush1.msra.mxu0 %v1583
    %1989 = vmatprep.subr.mxu0 %v1592
    %1990 = vmatpush1.msra.mxu0 %v1591
    %1991 = vmatprep.subr.mxu0 %v1600
    %1992 = vmatpush1.msra.mxu0 %v1599
    %1993 = vmatprep.subr.mxu0 %v1608
    %1994 = vmatpush1.msra.mxu0 %v1607
    %1995 = vmatprep.subr.mxu0 %v1616
    %1996 = vmatpush1.msra.mxu0 %v1615
    %1997 = vmatprep.subr.mxu0 %v1624
    %1998 = vmatpush1.msra.mxu0 %v1623
    %1999 = vmatprep.subr.mxu0 %v1632
    %2000 = vmatpush1.msra.mxu0 %v1631
    %2001 = vmatprep.mubr.f32.mxu0 %v1124
    %2002 = vmatmul.mubr.f32.gmra.mrb[0].mxu0 %v1123
    %v2003 = vpop.f32.mrb[0].mxu0
    %v2004 = vadd.f32 %v1900, %v2003
    %v2005 = vpop.f32.mrb[0].mxu0
    %v2006 = vadd.f32 %v1904, %v2005
    %2007 = vdwg.mxu0
    %2008 = vmatprep.subr.mxu0 %v1640
    %2009 = vmatpush1.msra.mxu0 %v1639
    %2010 = vmatprep.subr.mxu0 %v1648
    %2011 = vmatpush1.msra.mxu0 %v1647
    %2012 = vmatprep.subr.mxu0 %v1656
    %2013 = vmatpush1.msra.mxu0 %v1655
    %2014 = vmatprep.subr.mxu0 %v1664
    %2015 = vmatpush1.msra.mxu0 %v1663
    %2016 = vmatprep.subr.mxu0 %v1672
    %2017 = vmatpush1.msra.mxu0 %v1671
    %2018 = vmatprep.subr.mxu0 %v1680
    %2019 = vmatpush1.msra.mxu0 %v1679
    %2020 = vmatprep.subr.mxu0 %v1688
    %2021 = vmatpush1.msra.mxu0 %v1687
    %2022 = vmatprep.subr.mxu0 %v1696
    %2023 = vmatpush1.msra.mxu0 %v1695
    %2024 = vmatprep.subr.mxu0 %v1704
    %2025 = vmatpush1.msra.mxu0 %v1703
    %2026 = vmatprep.subr.mxu0 %v1712
    %2027 = vmatpush1.msra.mxu0 %v1711
    %2028 = vmatprep.subr.mxu0 %v1720
    %2029 = vmatpush1.msra.mxu0 %v1719
    %2030 = vmatprep.subr.mxu0 %v1728
    %2031 = vmatpush1.msra.mxu0 %v1727
    %2032 = vmatprep.subr.mxu0 %v1736
    %2033 = vmatpush1.msra.mxu0 %v1735
    %2034 = vmatprep.subr.mxu0 %v1744
    %2035 = vmatpush1.msra.mxu0 %v1743
    %2036 = vmatprep.subr.mxu0 %v1752
    %2037 = vmatpush1.msra.mxu0 %v1751
    %2038 = vmatprep.subr.mxu0 %v1760
    %2039 = vmatpush1.msra.mxu0 %v1759
    %2040 = vmatprep.subr.mxu0 %v1768
    %2041 = vmatpush1.msra.mxu0 %v1767
    %2042 = vmatprep.subr.mxu0 %v1776
    %2043 = vmatpush1.msra.mxu0 %v1775
    %2044 = vmatprep.subr.mxu0 %v1784
    %2045 = vmatpush1.msra.mxu0 %v1783
    %2046 = vmatprep.subr.mxu0 %v1792
    %2047 = vmatpush1.msra.mxu0 %v1791
    %2048 = vmatprep.subr.mxu0 %v1800
    %2049 = vmatpush1.msra.mxu0 %v1799
    %2050 = vmatprep.subr.mxu0 %v1808
    %2051 = vmatpush1.msra.mxu0 %v1807
    %2052 = vmatprep.subr.mxu0 %v1816
    %2053 = vmatpush1.msra.mxu0 %v1815
    %2054 = vmatprep.subr.mxu0 %v1824
    %2055 = vmatpush1.msra.mxu0 %v1823
    %2056 = vmatprep.subr.mxu0 %v1832
    %2057 = vmatpush1.msra.mxu0 %v1831
    %2058 = vmatprep.subr.mxu0 %v1840
    %2059 = vmatpush1.msra.mxu0 %v1839
    %2060 = vmatprep.subr.mxu0 %v1848
    %2061 = vmatpush1.msra.mxu0 %v1847
    %2062 = vmatprep.subr.mxu0 %v1856
    %2063 = vmatpush1.msra.mxu0 %v1855
    %2064 = vmatprep.subr.mxu0 %v1864
    %2065 = vmatpush1.msra.mxu0 %v1863
    %2066 = vmatprep.subr.mxu0 %v1872
    %2067 = vmatpush1.msra.mxu0 %v1871
    %2068 = vmatprep.subr.mxu0 %v1880
    %2069 = vmatpush1.msra.mxu0 %v1879
    %2070 = vmatprep.subr.mxu0 %v1888
    %2071 = vmatpush1.msra.mxu0 %v1887
    %2072 = vmatprep.mubr.f32.mxu0 %v1126
    %2073 = vmatmul.mubr.f32.gmra.mrb[0].mxu0 %v1125
    %v2074 = vpop.f32.mrb[0].mxu0
    %v2075 = vadd.f32 %v2004, %v2074
    %v2076 = vpop.f32.mrb[0].mxu0
    %v2077 = vadd.f32 %v2006, %v2076
    %2078 = vdwg.mxu0
    %2079 = vmatprep.subr.mxu0 %v1386
    %2080 = vmatpush1.msra.mxu0 %v1385
    %2081 = vmatprep.subr.mxu0 %v1394
    %2082 = vmatpush1.msra.mxu0 %v1393
    %2083 = vmatprep.subr.mxu0 %v1402
    %2084 = vmatpush1.msra.mxu0 %v1401
    %2085 = vmatprep.subr.mxu0 %v1410
    %2086 = vmatpush1.msra.mxu0 %v1409
    %2087 = vmatprep.subr.mxu0 %v1418
    %2088 = vmatpush1.msra.mxu0 %v1417
    %2089 = vmatprep.subr.mxu0 %v1426
    %2090 = vmatpush1.msra.mxu0 %v1425
    %2091 = vmatprep.subr.mxu0 %v1434
    %2092 = vmatpush1.msra.mxu0 %v1433
    %2093 = vmatprep.subr.mxu0 %v1442
    %2094 = vmatpush1.msra.mxu0 %v1441
    %2095 = vmatprep.subr.mxu0 %v1450
    %2096 = vmatpush1.msra.mxu0 %v1449
    %2097 = vmatprep.subr.mxu0 %v1458
    %2098 = vmatpush1.msra.mxu0 %v1457
    %2099 = vmatprep.subr.mxu0 %v1466
    %2100 = vmatpush1.msra.mxu0 %v1465
    %2101 = vmatprep.subr.mxu0 %v1474
    %2102 = vmatpush1.msra.mxu0 %v1473
    %2103 = vmatprep.subr.mxu0 %v1482
    %2104 = vmatpush1.msra.mxu0 %v1481
    %2105 = vmatprep.subr.mxu0 %v1490
    %2106 = vmatpush1.msra.mxu0 %v1489
    %2107 = vmatprep.subr.mxu0 %v1498
    %2108 = vmatpush1.msra.mxu0 %v1497
    %2109 = vmatprep.subr.mxu0 %v1506
    %2110 = vmatpush1.msra.mxu0 %v1505
    %2111 = vmatprep.subr.mxu0 %v1514
    %2112 = vmatpush1.msra.mxu0 %v1513
    %2113 = vmatprep.subr.mxu0 %v1522
    %2114 = vmatpush1.msra.mxu0 %v1521
    %2115 = vmatprep.subr.mxu0 %v1530
    %2116 = vmatpush1.msra.mxu0 %v1529
    %2117 = vmatprep.subr.mxu0 %v1538
    %2118 = vmatpush1.msra.mxu0 %v1537
    %2119 = vmatprep.subr.mxu0 %v1546
    %2120 = vmatpush1.msra.mxu0 %v1545
    %2121 = vmatprep.subr.mxu0 %v1554
    %2122 = vmatpush1.msra.mxu0 %v1553
    %2123 = vmatprep.subr.mxu0 %v1562
    %2124 = vmatpush1.msra.mxu0 %v1561
    %2125 = vmatprep.subr.mxu0 %v1570
    %2126 = vmatpush1.msra.mxu0 %v1569
    %2127 = vmatprep.subr.mxu0 %v1578
    %2128 = vmatpush1.msra.mxu0 %v1577
    %2129 = vmatprep.subr.mxu0 %v1586
    %2130 = vmatpush1.msra.mxu0 %v1585
    %2131 = vmatprep.subr.mxu0 %v1594
    %2132 = vmatpush1.msra.mxu0 %v1593
    %2133 = vmatprep.subr.mxu0 %v1602
    %2134 = vmatpush1.msra.mxu0 %v1601
    %2135 = vmatprep.subr.mxu0 %v1610
    %2136 = vmatpush1.msra.mxu0 %v1609
    %2137 = vmatprep.subr.mxu0 %v1618
    %2138 = vmatpush1.msra.mxu0 %v1617
    %2139 = vmatprep.subr.mxu0 %v1626
    %2140 = vmatpush1.msra.mxu0 %v1625
    %2141 = vmatprep.subr.mxu0 %v1634
    %2142 = vmatpush1.msra.mxu0 %v1633
    %2143 = vmatprep.mubr.f32.mxu0 %v1124
    %2144 = vmatmul.mubr.f32.gmra.mrb[0].mxu0 %v1123
    %v2145 = vpop.f32.mrb[0].mxu0
    %v2146 = vadd.f32 %v1908, %v2145
    %v2147 = vpop.f32.mrb[0].mxu0
    %v2148 = vadd.f32 %v1912, %v2147
    %2149 = vdwg.mxu0
    %2150 = vmatprep.subr.mxu0 %v1642
    %2151 = vmatpush1.msra.mxu0 %v1641
    %2152 = vmatprep.subr.mxu0 %v1650
    %2153 = vmatpush1.msra.mxu0 %v1649
    %2154 = vmatprep.subr.mxu0 %v1658
    %2155 = vmatpush1.msra.mxu0 %v1657
    %2156 = vmatprep.subr.mxu0 %v1666
    %2157 = vmatpush1.msra.mxu0 %v1665
    %2158 = vmatprep.subr.mxu0 %v1674
    %2159 = vmatpush1.msra.mxu0 %v1673
    %2160 = vmatprep.subr.mxu0 %v1682
    %2161 = vmatpush1.msra.mxu0 %v1681
    %2162 = vmatprep.subr.mxu0 %v1690
    %2163 = vmatpush1.msra.mxu0 %v1689
    %2164 = vmatprep.subr.mxu0 %v1698
    %2165 = vmatpush1.msra.mxu0 %v1697
    %2166 = vmatprep.subr.mxu0 %v1706
    %2167 = vmatpush1.msra.mxu0 %v1705
    %2168 = vmatprep.subr.mxu0 %v1714
    %2169 = vmatpush1.msra.mxu0 %v1713
    %2170 = vmatprep.subr.mxu0 %v1722
    %2171 = vmatpush1.msra.mxu0 %v1721
    %2172 = vmatprep.subr.mxu0 %v1730
    %2173 = vmatpush1.msra.mxu0 %v1729
    %2174 = vmatprep.subr.mxu0 %v1738
    %2175 = vmatpush1.msra.mxu0 %v1737
    %2176 = vmatprep.subr.mxu0 %v1746
    %2177 = vmatpush1.msra.mxu0 %v1745
    %2178 = vmatprep.subr.mxu0 %v1754
    %2179 = vmatpush1.msra.mxu0 %v1753
    %2180 = vmatprep.subr.mxu0 %v1762
    %2181 = vmatpush1.msra.mxu0 %v1761
    %2182 = vmatprep.subr.mxu0 %v1770
    %2183 = vmatpush1.msra.mxu0 %v1769
    %2184 = vmatprep.subr.mxu0 %v1778
    %2185 = vmatpush1.msra.mxu0 %v1777
    %2186 = vmatprep.subr.mxu0 %v1786
    %2187 = vmatpush1.msra.mxu0 %v1785
    %2188 = vmatprep.subr.mxu0 %v1794
    %2189 = vmatpush1.msra.mxu0 %v1793
    %2190 = vmatprep.subr.mxu0 %v1802
    %2191 = vmatpush1.msra.mxu0 %v1801
    %2192 = vmatprep.subr.mxu0 %v1810
    %2193 = vmatpush1.msra.mxu0 %v1809
    %2194 = vmatprep.subr.mxu0 %v1818
    %2195 = vmatpush1.msra.mxu0 %v1817
    %2196 = vmatprep.subr.mxu0 %v1826
    %2197 = vmatpush1.msra.mxu0 %v1825
    %2198 = vmatprep.subr.mxu0 %v1834
    %2199 = vmatpush1.msra.mxu0 %v1833
    %2200 = vmatprep.subr.mxu0 %v1842
    %2201 = vmatpush1.msra.mxu0 %v1841
    %2202 = vmatprep.subr.mxu0 %v1850
    %2203 = vmatpush1.msra.mxu0 %v1849
    %2204 = vmatprep.subr.mxu0 %v1858
    %2205 = vmatpush1.msra.mxu0 %v1857
    %2206 = vmatprep.subr.mxu0 %v1866
    %2207 = vmatpush1.msra.mxu0 %v1865
    %2208 = vmatprep.subr.mxu0 %v1874
    %2209 = vmatpush1.msra.mxu0 %v1873
    %2210 = vmatprep.subr.mxu0 %v1882
    %2211 = vmatpush1.msra.mxu0 %v1881
    %2212 = vmatprep.subr.mxu0 %v1890
    %2213 = vmatpush1.msra.mxu0 %v1889
    %2214 = vmatprep.mubr.f32.mxu0 %v1126
    %2215 = vmatmul.mubr.f32.gmra.mrb[0].mxu0 %v1125
    %v2216 = vpop.f32.mrb[0].mxu0
    %v2217 = vadd.f32 %v2146, %v2216
    %v2218 = vpop.f32.mrb[0].mxu0
    %v2219 = vadd.f32 %v2148, %v2218
    %2220 = vdwg.mxu0
    %2221 = vmatprep.subr.mxu0 %v1388
    %2222 = vmatpush1.msra.mxu0 %v1387
    %2223 = vmatprep.subr.mxu0 %v1396
    %2224 = vmatpush1.msra.mxu0 %v1395
    %2225 = vmatprep.subr.mxu0 %v1404
    %2226 = vmatpush1.msra.mxu0 %v1403
    %2227 = vmatprep.subr.mxu0 %v1412
    %2228 = vmatpush1.msra.mxu0 %v1411
    %2229 = vmatprep.subr.mxu0 %v1420
    %2230 = vmatpush1.msra.mxu0 %v1419
    %2231 = vmatprep.subr.mxu0 %v1428
    %2232 = vmatpush1.msra.mxu0 %v1427
    %2233 = vmatprep.subr.mxu0 %v1436
    %2234 = vmatpush1.msra.mxu0 %v1435
    %2235 = vmatprep.subr.mxu0 %v1444
    %2236 = vmatpush1.msra.mxu0 %v1443
    %2237 = vmatprep.subr.mxu0 %v1452
    %2238 = vmatpush1.msra.mxu0 %v1451
    %2239 = vmatprep.subr.mxu0 %v1460
    %2240 = vmatpush1.msra.mxu0 %v1459
    %2241 = vmatprep.subr.mxu0 %v1468
    %2242 = vmatpush1.msra.mxu0 %v1467
    %2243 = vmatprep.subr.mxu0 %v1476
    %2244 = vmatpush1.msra.mxu0 %v1475
    %2245 = vmatprep.subr.mxu0 %v1484
    %2246 = vmatpush1.msra.mxu0 %v1483
    %2247 = vmatprep.subr.mxu0 %v1492
    %2248 = vmatpush1.msra.mxu0 %v1491
    %2249 = vmatprep.subr.mxu0 %v1500
    %2250 = vmatpush1.msra.mxu0 %v1499
    %2251 = vmatprep.subr.mxu0 %v1508
    %2252 = vmatpush1.msra.mxu0 %v1507
    %2253 = vmatprep.subr.mxu0 %v1516
    %2254 = vmatpush1.msra.mxu0 %v1515
    %2255 = vmatprep.subr.mxu0 %v1524
    %2256 = vmatpush1.msra.mxu0 %v1523
    %2257 = vmatprep.subr.mxu0 %v1532
    %2258 = vmatpush1.msra.mxu0 %v1531
    %2259 = vmatprep.subr.mxu0 %v1540
    %2260 = vmatpush1.msra.mxu0 %v1539
    %2261 = vmatprep.subr.mxu0 %v1548
    %2262 = vmatpush1.msra.mxu0 %v1547
    %2263 = vmatprep.subr.mxu0 %v1556
    %2264 = vmatpush1.msra.mxu0 %v1555
    %2265 = vmatprep.subr.mxu0 %v1564
    %2266 = vmatpush1.msra.mxu0 %v1563
    %2267 = vmatprep.subr.mxu0 %v1572
    %2268 = vmatpush1.msra.mxu0 %v1571
    %2269 = vmatprep.subr.mxu0 %v1580
    %2270 = vmatpush1.msra.mxu0 %v1579
    %2271 = vmatprep.subr.mxu0 %v1588
    %2272 = vmatpush1.msra.mxu0 %v1587
    %2273 = vmatprep.subr.mxu0 %v1596
    %2274 = vmatpush1.msra.mxu0 %v1595
    %2275 = vmatprep.subr.mxu0 %v1604
    %2276 = vmatpush1.msra.mxu0 %v1603
    %2277 = vmatprep.subr.mxu0 %v1612
    %2278 = vmatpush1.msra.mxu0 %v1611
    %2279 = vmatprep.subr.mxu0 %v1620
    %2280 = vmatpush1.msra.mxu0 %v1619
    %2281 = vmatprep.subr.mxu0 %v1628
    %2282 = vmatpush1.msra.mxu0 %v1627
    %2283 = vmatprep.subr.mxu0 %v1636
    %2284 = vmatpush1.msra.mxu0 %v1635
    %2285 = vmatprep.mubr.f32.mxu0 %v1124
    %2286 = vmatmul.mubr.f32.gmra.mrb[0].mxu0 %v1123
    %v2287 = vpop.f32.mrb[0].mxu0
    %v2288 = vadd.f32 %v1916, %v2287
    %v2289 = vpop.f32.mrb[0].mxu0
    %v2290 = vadd.f32 %v1920, %v2289
    %2291 = vdwg.mxu0
    %2292 = vmatprep.subr.mxu0 %v1644
    %2293 = vmatpush1.msra.mxu0 %v1643
    %2294 = vmatprep.subr.mxu0 %v1652
    %2295 = vmatpush1.msra.mxu0 %v1651
    %2296 = vmatprep.subr.mxu0 %v1660
    %2297 = vmatpush1.msra.mxu0 %v1659
    %2298 = vmatprep.subr.mxu0 %v1668
    %2299 = vmatpush1.msra.mxu0 %v1667
    %2300 = vmatprep.subr.mxu0 %v1676
    %2301 = vmatpush1.msra.mxu0 %v1675
    %2302 = vmatprep.subr.mxu0 %v1684
    %2303 = vmatpush1.msra.mxu0 %v1683
    %2304 = vmatprep.subr.mxu0 %v1692
    %2305 = vmatpush1.msra.mxu0 %v1691
    %2306 = vmatprep.subr.mxu0 %v1700
    %2307 = vmatpush1.msra.mxu0 %v1699
    %2308 = vmatprep.subr.mxu0 %v1708
    %2309 = vmatpush1.msra.mxu0 %v1707
    %2310 = vmatprep.subr.mxu0 %v1716
    %2311 = vmatpush1.msra.mxu0 %v1715
    %2312 = vmatprep.subr.mxu0 %v1724
    %2313 = vmatpush1.msra.mxu0 %v1723
    %2314 = vmatprep.subr.mxu0 %v1732
    %2315 = vmatpush1.msra.mxu0 %v1731
    %2316 = vmatprep.subr.mxu0 %v1740
    %2317 = vmatpush1.msra.mxu0 %v1739
    %2318 = vmatprep.subr.mxu0 %v1748
    %2319 = vmatpush1.msra.mxu0 %v1747
    %2320 = vmatprep.subr.mxu0 %v1756
    %2321 = vmatpush1.msra.mxu0 %v1755
    %2322 = vmatprep.subr.mxu0 %v1764
    %2323 = vmatpush1.msra.mxu0 %v1763
    %2324 = vmatprep.subr.mxu0 %v1772
    %2325 = vmatpush1.msra.mxu0 %v1771
    %2326 = vmatprep.subr.mxu0 %v1780
    %2327 = vmatpush1.msra.mxu0 %v1779
    %2328 = vmatprep.subr.mxu0 %v1788
    %2329 = vmatpush1.msra.mxu0 %v1787
    %2330 = vmatprep.subr.mxu0 %v1796
    %2331 = vmatpush1.msra.mxu0 %v1795
    %2332 = vmatprep.subr.mxu0 %v1804
    %2333 = vmatpush1.msra.mxu0 %v1803
    %2334 = vmatprep.subr.mxu0 %v1812
    %2335 = vmatpush1.msra.mxu0 %v1811
    %2336 = vmatprep.subr.mxu0 %v1820
    %2337 = vmatpush1.msra.mxu0 %v1819
    %2338 = vmatprep.subr.mxu0 %v1828
    %2339 = vmatpush1.msra.mxu0 %v1827
    %2340 = vmatprep.subr.mxu0 %v1836
    %2341 = vmatpush1.msra.mxu0 %v1835
    %2342 = vmatprep.subr.mxu0 %v1844
    %2343 = vmatpush1.msra.mxu0 %v1843
    %2344 = vmatprep.subr.mxu0 %v1852
    %2345 = vmatpush1.msra.mxu0 %v1851
    %2346 = vmatprep.subr.mxu0 %v1860
    %2347 = vmatpush1.msra.mxu0 %v1859
    %2348 = vmatprep.subr.mxu0 %v1868
    %2349 = vmatpush1.msra.mxu0 %v1867
    %2350 = vmatprep.subr.mxu0 %v1876
    %2351 = vmatpush1.msra.mxu0 %v1875
    %2352 = vmatprep.subr.mxu0 %v1884
    %2353 = vmatpush1.msra.mxu0 %v1883
    %2354 = vmatprep.subr.mxu0 %v1892
    %2355 = vmatpush1.msra.mxu0 %v1891
    %2356 = vmatprep.mubr.f32.mxu0 %v1126
    %2357 = vmatmul.mubr.f32.gmra.mrb[0].mxu0 %v1125
    %v2358 = vpop.f32.mrb[0].mxu0
    %v2359 = vadd.f32 %v2288, %v2358
    %v2360 = vpop.f32.mrb[0].mxu0
    %v2361 = vadd.f32 %v2290, %v2360
    %2362 = vdwg.mxu0
    %2363 = vmatprep.subr.mxu0 %v1390
    %2364 = vmatpush1.msra.mxu0 %v1389
    %2365 = vmatprep.subr.mxu0 %v1398
    %2366 = vmatpush1.msra.mxu0 %v1397
    %2367 = vmatprep.subr.mxu0 %v1406
    %2368 = vmatpush1.msra.mxu0 %v1405
    %2369 = vmatprep.subr.mxu0 %v1414
    %2370 = vmatpush1.msra.mxu0 %v1413
    %2371 = vmatprep.subr.mxu0 %v1422
    %2372 = vmatpush1.msra.mxu0 %v1421
    %2373 = vmatprep.subr.mxu0 %v1430
    %2374 = vmatpush1.msra.mxu0 %v1429
    %2375 = vmatprep.subr.mxu0 %v1438
    %2376 = vmatpush1.msra.mxu0 %v1437
    %2377 = vmatprep.subr.mxu0 %v1446
    %2378 = vmatpush1.msra.mxu0 %v1445
    %2379 = vmatprep.subr.mxu0 %v1454
    %2380 = vmatpush1.msra.mxu0 %v1453
    %2381 = vmatprep.subr.mxu0 %v1462
    %2382 = vmatpush1.msra.mxu0 %v1461
    %2383 = vmatprep.subr.mxu0 %v1470
    %2384 = vmatpush1.msra.mxu0 %v1469
    %2385 = vmatprep.subr.mxu0 %v1478
    %2386 = vmatpush1.msra.mxu0 %v1477
    %2387 = vmatprep.subr.mxu0 %v1486
    %2388 = vmatpush1.msra.mxu0 %v1485
    %2389 = vmatprep.subr.mxu0 %v1494
    %2390 = vmatpush1.msra.mxu0 %v1493
    %2391 = vmatprep.subr.mxu0 %v1502
    %2392 = vmatpush1.msra.mxu0 %v1501
    %2393 = vmatprep.subr.mxu0 %v1510
    %2394 = vmatpush1.msra.mxu0 %v1509
    %2395 = vmatprep.subr.mxu0 %v1518
    %2396 = vmatpush1.msra.mxu0 %v1517
    %2397 = vmatprep.subr.mxu0 %v1526
    %2398 = vmatpush1.msra.mxu0 %v1525
    %2399 = vmatprep.subr.mxu0 %v1534
    %2400 = vmatpush1.msra.mxu0 %v1533
    %2401 = vmatprep.subr.mxu0 %v1542
    %2402 = vmatpush1.msra.mxu0 %v1541
    %2403 = vmatprep.subr.mxu0 %v1550
    %2404 = vmatpush1.msra.mxu0 %v1549
    %2405 = vmatprep.subr.mxu0 %v1558
    %2406 = vmatpush1.msra.mxu0 %v1557
    %2407 = vmatprep.subr.mxu0 %v1566
    %2408 = vmatpush1.msra.mxu0 %v1565
    %2409 = vmatprep.subr.mxu0 %v1574
    %2410 = vmatpush1.msra.mxu0 %v1573
    %2411 = vmatprep.subr.mxu0 %v1582
    %2412 = vmatpush1.msra.mxu0 %v1581
    %2413 = vmatprep.subr.mxu0 %v1590
    %2414 = vmatpush1.msra.mxu0 %v1589
    %2415 = vmatprep.subr.mxu0 %v1598
    %2416 = vmatpush1.msra.mxu0 %v1597
    %2417 = vmatprep.subr.mxu0 %v1606
    %2418 = vmatpush1.msra.mxu0 %v1605
    %2419 = vmatprep.subr.mxu0 %v1614
    %2420 = vmatpush1.msra.mxu0 %v1613
    %2421 = vmatprep.subr.mxu0 %v1622
    %2422 = vmatpush1.msra.mxu0 %v1621
    %2423 = vmatprep.subr.mxu0 %v1630
    %2424 = vmatpush1.msra.mxu0 %v1629
    %2425 = vmatprep.subr.mxu0 %v1638
    %2426 = vmatpush1.msra.mxu0 %v1637
    %2427 = vmatprep.mubr.f32.mxu0 %v1124
    %2428 = vmatmul.mubr.f32.gmra.mrb[0].mxu0 %v1123
    %v2429 = vpop.f32.mrb[0].mxu0
    %v2430 = vadd.f32 %v1924, %v2429
    %v2431 = vpop.f32.mrb[0].mxu0
    %v2432 = vadd.f32 %v1928, %v2431
    %2433 = vdwg.mxu0
    %2434 = vmatprep.subr.mxu0 %v1646
    %2435 = vmatpush1.msra.mxu0 %v1645
    %2436 = vmatprep.subr.mxu0 %v1654
    %2437 = vmatpush1.msra.mxu0 %v1653
    %2438 = vmatprep.subr.mxu0 %v1662
    %2439 = vmatpush1.msra.mxu0 %v1661
    %2440 = vmatprep.subr.mxu0 %v1670
    %2441 = vmatpush1.msra.mxu0 %v1669
    %2442 = vmatprep.subr.mxu0 %v1678
    %2443 = vmatpush1.msra.mxu0 %v1677
    %2444 = vmatprep.subr.mxu0 %v1686
    %2445 = vmatpush1.msra.mxu0 %v1685
    %2446 = vmatprep.subr.mxu0 %v1694
    %2447 = vmatpush1.msra.mxu0 %v1693
    %2448 = vmatprep.subr.mxu0 %v1702
    %2449 = vmatpush1.msra.mxu0 %v1701
    %2450 = vmatprep.subr.mxu0 %v1710
    %2451 = vmatpush1.msra.mxu0 %v1709
    %2452 = vmatprep.subr.mxu0 %v1718
    %2453 = vmatpush1.msra.mxu0 %v1717
    %2454 = vmatprep.subr.mxu0 %v1726
    %2455 = vmatpush1.msra.mxu0 %v1725
    %2456 = vmatprep.subr.mxu0 %v1734
    %2457 = vmatpush1.msra.mxu0 %v1733
    %2458 = vmatprep.subr.mxu0 %v1742
    %2459 = vmatpush1.msra.mxu0 %v1741
    %2460 = vmatprep.subr.mxu0 %v1750
    %2461 = vmatpush1.msra.mxu0 %v1749
    %2462 = vmatprep.subr.mxu0 %v1758
    %2463 = vmatpush1.msra.mxu0 %v1757
    %2464 = vmatprep.subr.mxu0 %v1766
    %2465 = vmatpush1.msra.mxu0 %v1765
    %2466 = vmatprep.subr.mxu0 %v1774
    %2467 = vmatpush1.msra.mxu0 %v1773
    %2468 = vmatprep.subr.mxu0 %v1782
    %2469 = vmatpush1.msra.mxu0 %v1781
    %2470 = vmatprep.subr.mxu0 %v1790
    %2471 = vmatpush1.msra.mxu0 %v1789
    %2472 = vmatprep.subr.mxu0 %v1798
    %2473 = vmatpush1.msra.mxu0 %v1797
    %2474 = vmatprep.subr.mxu0 %v1806
    %2475 = vmatpush1.msra.mxu0 %v1805
    %2476 = vmatprep.subr.mxu0 %v1814
    %2477 = vmatpush1.msra.mxu0 %v1813
    %2478 = vmatprep.subr.mxu0 %v1822
    %2479 = vmatpush1.msra.mxu0 %v1821
    %2480 = vmatprep.subr.mxu0 %v1830
    %2481 = vmatpush1.msra.mxu0 %v1829
    %2482 = vmatprep.subr.mxu0 %v1838
    %2483 = vmatpush1.msra.mxu0 %v1837
    %2484 = vmatprep.subr.mxu0 %v1846
    %2485 = vmatpush1.msra.mxu0 %v1845
    %2486 = vmatprep.subr.mxu0 %v1854
    %2487 = vmatpush1.msra.mxu0 %v1853
    %2488 = vmatprep.subr.mxu0 %v1862
    %2489 = vmatpush1.msra.mxu0 %v1861
    %2490 = vmatprep.subr.mxu0 %v1870
    %2491 = vmatpush1.msra.mxu0 %v1869
    %2492 = vmatprep.subr.mxu0 %v1878
    %2493 = vmatpush1.msra.mxu0 %v1877
    %2494 = vmatprep.subr.mxu0 %v1886
    %2495 = vmatpush1.msra.mxu0 %v1885
    %2496 = vmatprep.subr.mxu0 %v1894
    %2497 = vmatpush1.msra.mxu0 %v1893
    %2498 = vmatprep.mubr.f32.mxu0 %v1126
    %2499 = vmatmul.mubr.f32.gmra.mrb[0].mxu0 %v1125
    %v2500 = vpop.f32.mrb[0].mxu0
    %v2501 = vadd.f32 %v2430, %v2500
    %v2502 = vpop.f32.mrb[0].mxu0
    %v2503 = vadd.f32 %v2432, %v2502
    %2504 = vdwg.mxu0
    %v2505 = vrot.slane %v2075, 4
    %v2506 = vadd.f32 %v2075, %v2505
    %v2507 = vrot.slane %v2506, 2
    %v2508 = vadd.f32 %v2506, %v2507
    %v2509 = vrot.slane %v2508, 1
    %v2510 = vadd.f32 %v2508, %v2509
    %v2511 = vrot.slane %v2077, 4
    %v2512 = vadd.f32 %v2077, %v2511
    %v2513 = vrot.slane %v2512, 2
    %v2514 = vadd.f32 %v2512, %v2513
    %v2515 = vrot.slane %v2514, 1
    %v2516 = vadd.f32 %v2514, %v2515
    %v2517 = vrot.slane %v2217, 4
    %v2518 = vadd.f32 %v2217, %v2517
    %v2519 = vrot.slane %v2518, 2
    %v2520 = vadd.f32 %v2518, %v2519
    %v2521 = vrot.slane %v2520, 1
    %v2522 = vadd.f32 %v2520, %v2521
    %v2523 = vrot.slane %v2219, 4
    %v2524 = vadd.f32 %v2219, %v2523
    %v2525 = vrot.slane %v2524, 2
    %v2526 = vadd.f32 %v2524, %v2525
    %v2527 = vrot.slane %v2526, 1
    %v2528 = vadd.f32 %v2526, %v2527
    %v2529 = vrot.slane %v2359, 4
    %v2530 = vadd.f32 %v2359, %v2529
    %v2531 = vrot.slane %v2530, 2
    %v2532 = vadd.f32 %v2530, %v2531
    %v2533 = vrot.slane %v2532, 1
    %v2534 = vadd.f32 %v2532, %v2533
    %v2535 = vrot.slane %v2361, 4
    %v2536 = vadd.f32 %v2361, %v2535
    %v2537 = vrot.slane %v2536, 2
    %v2538 = vadd.f32 %v2536, %v2537
    %v2539 = vrot.slane %v2538, 1
    %v2540 = vadd.f32 %v2538, %v2539
    %v2541 = vrot.slane %v2501, 4
    %v2542 = vadd.f32 %v2501, %v2541
    %v2543 = vrot.slane %v2542, 2
    %v2544 = vadd.f32 %v2542, %v2543
    %v2545 = vrot.slane %v2544, 1
    %v2546 = vadd.f32 %v2544, %v2545
    %v2547 = vrot.slane %v2503, 4
    %v2548 = vadd.f32 %v2503, %v2547
    %v2549 = vrot.slane %v2548, 2
    %v2550 = vadd.f32 %v2548, %v2549
    %v2551 = vrot.slane %v2550, 1
    %v2552 = vadd.f32 %v2550, %v2551
    %v2553 = vmul.f32 %v2510, %v388
    %v2554 = vmul.f32 %v2516, %v388
    %v2555 = vmul.f32 %v2522, %v388
    %v2556 = vmul.f32 %v2528, %v388
    %v2557 = vmul.f32 %v2534, %v388
    %v2558 = vmul.f32 %v2540, %v388
    %v2559 = vmul.f32 %v2546, %v388
    %v2560 = vmul.f32 %v2552, %v388
    %v2561 = vmul.f32 %v2075, %v2075
    %v2562 = vmul.f32 %v2077, %v2077
    %v2563 = vmul.f32 %v2217, %v2217
    %v2564 = vmul.f32 %v2219, %v2219
    %v2565 = vmul.f32 %v2359, %v2359
    %v2566 = vmul.f32 %v2361, %v2361
    %v2567 = vmul.f32 %v2501, %v2501
    %v2568 = vmul.f32 %v2503, %v2503
    %v2569 = vrot.slane %v2561, 4
    %v2570 = vadd.f32 %v2561, %v2569
    %v2571 = vrot.slane %v2570, 2
    %v2572 = vadd.f32 %v2570, %v2571
    %v2573 = vrot.slane %v2572, 1
    %v2574 = vadd.f32 %v2572, %v2573
    %v2575 = vrot.slane %v2562, 4
    %v2576 = vadd.f32 %v2562, %v2575
    %v2577 = vrot.slane %v2576, 2
    %v2578 = vadd.f32 %v2576, %v2577
    %v2579 = vrot.slane %v2578, 1
    %v2580 = vadd.f32 %v2578, %v2579
    %v2581 = vrot.slane %v2563, 4
    %v2582 = vadd.f32 %v2563, %v2581
    %v2583 = vrot.slane %v2582, 2
    %v2584 = vadd.f32 %v2582, %v2583
    %v2585 = vrot.slane %v2584, 1
    %v2586 = vadd.f32 %v2584, %v2585
    %v2587 = vrot.slane %v2564, 4
    %v2588 = vadd.f32 %v2564, %v2587
    %v2589 = vrot.slane %v2588, 2
    %v2590 = vadd.f32 %v2588, %v2589
    %v2591 = vrot.slane %v2590, 1
    %v2592 = vadd.f32 %v2590, %v2591
    %v2593 = vrot.slane %v2565, 4
    %v2594 = vadd.f32 %v2565, %v2593
    %v2595 = vrot.slane %v2594, 2
    %v2596 = vadd.f32 %v2594, %v2595
    %v2597 = vrot.slane %v2596, 1
    %v2598 = vadd.f32 %v2596, %v2597
    %v2599 = vrot.slane %v2566, 4
    %v2600 = vadd.f32 %v2566, %v2599
    %v2601 = vrot.slane %v2600, 2
    %v2602 = vadd.f32 %v2600, %v2601
    %v2603 = vrot.slane %v2602, 1
    %v2604 = vadd.f32 %v2602, %v2603
    %v2605 = vrot.slane %v2567, 4
    %v2606 = vadd.f32 %v2567, %v2605
    %v2607 = vrot.slane %v2606, 2
    %v2608 = vadd.f32 %v2606, %v2607
    %v2609 = vrot.slane %v2608, 1
    %v2610 = vadd.f32 %v2608, %v2609
    %v2611 = vrot.slane %v2568, 4
    %v2612 = vadd.f32 %v2568, %v2611
    %v2613 = vrot.slane %v2612, 2
    %v2614 = vadd.f32 %v2612, %v2613
    %v2615 = vrot.slane %v2614, 1
    %v2616 = vadd.f32 %v2614, %v2615
    %v2617 = vmul.f32 %v2574, %v388
    %v2618 = vmul.f32 %v2580, %v388
    %v2619 = vmul.f32 %v2586, %v388
    %v2620 = vmul.f32 %v2592, %v388
    %v2621 = vmul.f32 %v2598, %v388
    %v2622 = vmul.f32 %v2604, %v388
    %v2623 = vmul.f32 %v2610, %v388
    %v2624 = vmul.f32 %v2616, %v388
    %v2625 = vmul.f32 %v2553, %v2553
    %v2626 = vmul.f32 %v2554, %v2554
    %v2627 = vmul.f32 %v2555, %v2555
    %v2628 = vmul.f32 %v2556, %v2556
    %v2629 = vmul.f32 %v2557, %v2557
    %v2630 = vmul.f32 %v2558, %v2558
    %v2631 = vmul.f32 %v2559, %v2559
    %v2632 = vmul.f32 %v2560, %v2560
    %v2633 = vsub.f32 %v2617, %v2625
    %v2634 = vsub.f32 %v2618, %v2626
    %v2635 = vsub.f32 %v2619, %v2627
    %v2636 = vsub.f32 %v2620, %v2628
    %v2637 = vsub.f32 %v2621, %v2629
    %v2638 = vsub.f32 %v2622, %v2630
    %v2639 = vsub.f32 %v2623, %v2631
    %v2640 = vsub.f32 %v2624, %v2632
    %v2641 = vmax.f32 %v2633, 0.0
    %v2642 = vmax.f32 %v2634, 0.0
    %v2643 = vmax.f32 %v2635, 0.0
    %v2644 = vmax.f32 %v2636, 0.0
    %v2645 = vmax.f32 %v2637, 0.0
    %v2646 = vmax.f32 %v2638, 0.0
    %v2647 = vmax.f32 %v2639, 0.0
    %v2648 = vmax.f32 %v2640, 0.0
    %v2649 = vsub.f32 %v2075, %v2553
    %v2650 = vsub.f32 %v2077, %v2554
    %v2651 = vsub.f32 %v2217, %v2555
    %v2652 = vsub.f32 %v2219, %v2556
    %v2653 = vsub.f32 %v2359, %v2557
    %v2654 = vsub.f32 %v2361, %v2558
    %v2655 = vsub.f32 %v2501, %v2559
    %v2656 = vsub.f32 %v2503, %v2560
    %v2657 = vadd.f32 %v2641, 1e-05
    %v2658 = vadd.f32 %v2642, 1e-05
    %v2659 = vadd.f32 %v2643, 1e-05
    %v2660 = vadd.f32 %v2644, 1e-05
    %v2661 = vadd.f32 %v2645, 1e-05
    %v2662 = vadd.f32 %v2646, 1e-05
    %v2663 = vadd.f32 %v2647, 1e-05
    %v2664 = vadd.f32 %v2648, 1e-05
    %v2665 = vrsqrt.pop %v2657
    %v2666 = vrsqrt.pop %v2658
    %v2667 = vrsqrt.pop %v2659
    %v2668 = vrsqrt.pop %v2660
    %v2669 = vrsqrt.pop %v2661
    %v2670 = vrsqrt.pop %v2662
    %v2671 = vrsqrt.pop %v2663
    %v2672 = vrsqrt.pop %v2664
    %v2673 = vmul.f32 %v2649, %v2665
    %v2674 = vmul.f32 %v2650, %v2666
    %v2675 = vmul.f32 %v2651, %v2667
    %v2676 = vmul.f32 %v2652, %v2668
    %v2677 = vmul.f32 %v2653, %v2669
    %v2678 = vmul.f32 %v2654, %v2670
    %v2679 = vmul.f32 %v2655, %v2671
    %v2680 = vmul.f32 %v2656, %v2672
    %v2681 = vld [vmem:[#allocation26] sm:$0xff]
    %v2683 = vlaneseq
    %v2684 = vshrl.u32 %v2683, 7
    %v2685 = vsub.s32 0, %v2684
    %v2686 = vrot.slane %v2681, %v2685
    %v2687 = vlaneseq
    %v2688 = vshrl.u32 %v2687, 7
    %v2689 = vsub.s32 1, %v2688
    %v2690 = vrot.slane %v2681, %v2689
    %v2691 = vlaneseq
    %v2692 = vshrl.u32 %v2691, 7
    %v2693 = vsub.s32 2, %v2692
    %v2694 = vrot.slane %v2681, %v2693
    %v2695 = vlaneseq
    %v2696 = vshrl.u32 %v2695, 7
    %v2697 = vsub.s32 3, %v2696
    %v2698 = vrot.slane %v2681, %v2697
    %v2699 = vlaneseq
    %v2700 = vshrl.u32 %v2699, 7
    %v2701 = vsub.s32 4, %v2700
    %v2702 = vrot.slane %v2681, %v2701
    %v2703 = vlaneseq
    %v2704 = vshrl.u32 %v2703, 7
    %v2705 = vsub.s32 5, %v2704
    %v2706 = vrot.slane %v2681, %v2705
    %v2707 = vlaneseq
    %v2708 = vshrl.u32 %v2707, 7
    %v2709 = vsub.s32 6, %v2708
    %v2710 = vrot.slane %v2681, %v2709
    %v2711 = vlaneseq
    %v2712 = vshrl.u32 %v2711, 7
    %v2713 = vsub.s32 7, %v2712
    %v2714 = vrot.slane %v2681, %v2713
    %v2723 = vmul.f32 %v2673, %v2686
    %v2724 = vmul.f32 %v2674, %v2690
    %v2725 = vmul.f32 %v2675, %v2694
    %v2726 = vmul.f32 %v2676, %v2698
    %v2727 = vmul.f32 %v2677, %v2702
    %v2728 = vmul.f32 %v2678, %v2706
    %v2729 = vmul.f32 %v2679, %v2710
    %v2730 = vmul.f32 %v2680, %v2714
    %v2731 = vld [vmem:[#allocation28] sm:$0xff]
    %v2733 = vlaneseq
    %v2734 = vshrl.u32 %v2733, 7
    %v2735 = vsub.s32 0, %v2734
    %v2736 = vrot.slane %v2731, %v2735
    %v2737 = vlaneseq
    %v2738 = vshrl.u32 %v2737, 7
    %v2739 = vsub.s32 1, %v2738
    %v2740 = vrot.slane %v2731, %v2739
    %v2741 = vlaneseq
    %v2742 = vshrl.u32 %v2741, 7
    %v2743 = vsub.s32 2, %v2742
    %v2744 = vrot.slane %v2731, %v2743
    %v2745 = vlaneseq
    %v2746 = vshrl.u32 %v2745, 7
    %v2747 = vsub.s32 3, %v2746
    %v2748 = vrot.slane %v2731, %v2747
    %v2749 = vlaneseq
    %v2750 = vshrl.u32 %v2749, 7
    %v2751 = vsub.s32 4, %v2750
    %v2752 = vrot.slane %v2731, %v2751
    %v2753 = vlaneseq
    %v2754 = vshrl.u32 %v2753, 7
    %v2755 = vsub.s32 5, %v2754
    %v2756 = vrot.slane %v2731, %v2755
    %v2757 = vlaneseq
    %v2758 = vshrl.u32 %v2757, 7
    %v2759 = vsub.s32 6, %v2758
    %v2760 = vrot.slane %v2731, %v2759
    %v2761 = vlaneseq
    %v2762 = vshrl.u32 %v2761, 7
    %v2763 = vsub.s32 7, %v2762
    %v2764 = vrot.slane %v2731, %v2763
    %v2773 = vadd.f32 %v2723, %v2736
    %v2774 = vadd.f32 %v2724, %v2740
    %v2775 = vadd.f32 %v2725, %v2744
    %v2776 = vadd.f32 %v2726, %v2748
    %v2777 = vadd.f32 %v2727, %v2752
    %v2778 = vadd.f32 %v2728, %v2756
    %v2779 = vadd.f32 %v2729, %v2760
    %v2780 = vadd.f32 %v2730, %v2764
    %v2781 = vmax.f32 %v2773, 0.0
    %v2782 = vmax.f32 %v2774, 0.0
    %v2783 = vmax.f32 %v2775, 0.0
    %v2784 = vmax.f32 %v2776, 0.0
    %v2785 = vmax.f32 %v2777, 0.0
    %v2786 = vmax.f32 %v2778, 0.0
    %v2787 = vmax.f32 %v2779, 0.0
    %v2788 = vmax.f32 %v2780, 0.0
    %v2789 = vld [vmem:[#allocation29] sm:$0xff]
    %v2790 = vld [vmem:[#allocation29 + $0x8] sm:$0xff]
    %v2791 = vld [vmem:[#allocation29 + $0x10] sm:$0xff]
    %v2792 = vld [vmem:[#allocation29 + $0x18] sm:$0xf]
    %v2793 = vld [vmem:[#allocation29 + $0x1c] sm:$0xff]
    %v2794 = vld [vmem:[#allocation29 + $0x24] sm:$0xff]
    %v2795 = vld [vmem:[#allocation29 + $0x2c] sm:$0xff]
    %v2796 = vld [vmem:[#allocation29 + $0x34] sm:$0xf]
    %v2797 = vld [vmem:[#allocation29 + $0x38] sm:$0xff]
    %v2798 = vld [vmem:[#allocation29 + $0x40] sm:$0xff]
    %v2799 = vld [vmem:[#allocation29 + $0x48] sm:$0xff]
    %v2800 = vld [vmem:[#allocation29 + $0x50] sm:$0xf]
    %v2801 = vld [vmem:[#allocation29 + $0x54] sm:$0xff]
    %v2802 = vld [vmem:[#allocation29 + $0x5c] sm:$0xff]
    %v2803 = vld [vmem:[#allocation29 + $0x64] sm:$0xff]
    %v2804 = vld [vmem:[#allocation29 + $0x6c] sm:$0xf]
    %v2805 = vld [vmem:[#allocation29 + $0x70] sm:$0xff]
    %v2806 = vld [vmem:[#allocation29 + $0x78] sm:$0xff]
    %v2807 = vld [vmem:[#allocation29 + $0x80] sm:$0xff]
    %v2808 = vld [vmem:[#allocation29 + $0x88] sm:$0xf]
    %v2809 = vld [vmem:[#allocation29 + $0x8c] sm:$0xff]
    %v2810 = vld [vmem:[#allocation29 + $0x94] sm:$0xff]
    %v2811 = vld [vmem:[#allocation29 + $0x9c] sm:$0xff]
    %v2812 = vld [vmem:[#allocation29 + $0xa4] sm:$0xf]
    %v2813 = vld [vmem:[#allocation29 + $0xa8] sm:$0xff]
    %v2814 = vld [vmem:[#allocation29 + $0xb0] sm:$0xff]
    %v2815 = vld [vmem:[#allocation29 + $0xb8] sm:$0xff]
    %v2816 = vld [vmem:[#allocation29 + $0xc0] sm:$0xf]
    %v2817 = vld [vmem:[#allocation29 + $0xc4] sm:$0xff]
    %v2818 = vld [vmem:[#allocation29 + $0xcc] sm:$0xff]
    %v2819 = vld [vmem:[#allocation29 + $0xd4] sm:$0xff]
    %v2820 = vld [vmem:[#allocation29 + $0xdc] sm:$0xf]
    %v2821 = vld [vmem:[#allocation29 + $0xe0] sm:$0xff]
    %v2822 = vld [vmem:[#allocation29 + $0xe8] sm:$0xff]
    %v2823 = vld [vmem:[#allocation29 + $0xf0] sm:$0xff]
    %v2824 = vld [vmem:[#allocation29 + $0xf8] sm:$0xf]
    %v2825 = vld [vmem:[#allocation29 + $0xfc] sm:$0xff]
    %v2826 = vld [vmem:[#allocation29 + $0x104] sm:$0xff]
    %v2827 = vld [vmem:[#allocation29 + $0x10c] sm:$0xff]
    %v2828 = vld [vmem:[#allocation29 + $0x114] sm:$0xf]
    %v2829 = vld [vmem:[#allocation29 + $0x118] sm:$0xff]
    %v2830 = vld [vmem:[#allocation29 + $0x120] sm:$0xff]
    %v2831 = vld [vmem:[#allocation29 + $0x128] sm:$0xff]
    %v2832 = vld [vmem:[#allocation29 + $0x130] sm:$0xf]
    %v2833 = vld [vmem:[#allocation29 + $0x134] sm:$0xff]
    %v2834 = vld [vmem:[#allocation29 + $0x13c] sm:$0xff]
    %v2835 = vld [vmem:[#allocation29 + $0x144] sm:$0xff]
    %v2836 = vld [vmem:[#allocation29 + $0x14c] sm:$0xf]
    %v2837 = vld [vmem:[#allocation29 + $0x150] sm:$0xff]
    %v2838 = vld [vmem:[#allocation29 + $0x158] sm:$0xff]
    %v2839 = vld [vmem:[#allocation29 + $0x160] sm:$0xff]
    %v2840 = vld [vmem:[#allocation29 + $0x168] sm:$0xf]
    %v2841 = vld [vmem:[#allocation29 + $0x16c] sm:$0xff]
    %v2842 = vld [vmem:[#allocation29 + $0x174] sm:$0xff]
    %v2843 = vld [vmem:[#allocation29 + $0x17c] sm:$0xff]
    %v2844 = vld [vmem:[#allocation29 + $0x184] sm:$0xf]
    %v2845 = vld [vmem:[#allocation29 + $0x188] sm:$0xff]
    %v2846 = vld [vmem:[#allocation29 + $0x190] sm:$0xff]
    %v2847 = vld [vmem:[#allocation29 + $0x198] sm:$0xff]
    %v2848 = vld [vmem:[#allocation29 + $0x1a0] sm:$0xf]
    %v2849 = vld [vmem:[#allocation29 + $0x1a4] sm:$0xff]
    %v2850 = vld [vmem:[#allocation29 + $0x1ac] sm:$0xff]
    %v2851 = vld [vmem:[#allocation29 + $0x1b4] sm:$0xff]
    %v2852 = vld [vmem:[#allocation29 + $0x1bc] sm:$0xf]
    %v2853 = vld [vmem:[#allocation29 + $0x1c0] sm:$0xff]
    %v2854 = vld [vmem:[#allocation29 + $0x1c8] sm:$0xff]
    %v2855 = vld [vmem:[#allocation29 + $0x1d0] sm:$0xff]
    %v2856 = vld [vmem:[#allocation29 + $0x1d8] sm:$0xf]
    %v2857 = vld [vmem:[#allocation29 + $0x1dc] sm:$0xff]
    %v2858 = vld [vmem:[#allocation29 + $0x1e4] sm:$0xff]
    %v2859 = vld [vmem:[#allocation29 + $0x1ec] sm:$0xff]
    %v2860 = vld [vmem:[#allocation29 + $0x1f4] sm:$0xf]
    %v2861 = vld [vmem:[#allocation29 + $0x1f8] sm:$0xff]
    %v2862 = vld [vmem:[#allocation29 + $0x200] sm:$0xff]
    %v2863 = vld [vmem:[#allocation29 + $0x208] sm:$0xff]
    %v2864 = vld [vmem:[#allocation29 + $0x210] sm:$0xf]
    %v2865 = vld [vmem:[#allocation29 + $0x214] sm:$0xff]
    %v2866 = vld [vmem:[#allocation29 + $0x21c] sm:$0xff]
    %v2867 = vld [vmem:[#allocation29 + $0x224] sm:$0xff]
    %v2868 = vld [vmem:[#allocation29 + $0x22c] sm:$0xf]
    %v2869 = vld [vmem:[#allocation29 + $0x230] sm:$0xff]
    %v2870 = vld [vmem:[#allocation29 + $0x238] sm:$0xff]
    %v2871 = vld [vmem:[#allocation29 + $0x240] sm:$0xff]
    %v2872 = vld [vmem:[#allocation29 + $0x248] sm:$0xf]
    %v2873 = vld [vmem:[#allocation29 + $0x24c] sm:$0xff]
    %v2874 = vld [vmem:[#allocation29 + $0x254] sm:$0xff]
    %v2875 = vld [vmem:[#allocation29 + $0x25c] sm:$0xff]
    %v2876 = vld [vmem:[#allocation29 + $0x264] sm:$0xf]
    %v2877 = vld [vmem:[#allocation29 + $0x268] sm:$0xff]
    %v2878 = vld [vmem:[#allocation29 + $0x270] sm:$0xff]
    %v2879 = vld [vmem:[#allocation29 + $0x278] sm:$0xff]
    %v2880 = vld [vmem:[#allocation29 + $0x280] sm:$0xf]
    %v2881 = vld [vmem:[#allocation29 + $0x284] sm:$0xff]
    %v2882 = vld [vmem:[#allocation29 + $0x28c] sm:$0xff]
    %v2883 = vld [vmem:[#allocation29 + $0x294] sm:$0xff]
    %v2884 = vld [vmem:[#allocation29 + $0x29c] sm:$0xf]
    %v2885 = vld [vmem:[#allocation29 + $0x2a0] sm:$0xff]
    %v2886 = vld [vmem:[#allocation29 + $0x2a8] sm:$0xff]
    %v2887 = vld [vmem:[#allocation29 + $0x2b0] sm:$0xff]
    %v2888 = vld [vmem:[#allocation29 + $0x2b8] sm:$0xf]
    %v2889 = vld [vmem:[#allocation29 + $0x2bc] sm:$0xff]
    %v2890 = vld [vmem:[#allocation29 + $0x2c4] sm:$0xff]
    %v2891 = vld [vmem:[#allocation29 + $0x2cc] sm:$0xff]
    %v2892 = vld [vmem:[#allocation29 + $0x2d4] sm:$0xf]
    %v2893 = vld [vmem:[#allocation29 + $0x2d8] sm:$0xff]
    %v2894 = vld [vmem:[#allocation29 + $0x2e0] sm:$0xff]
    %v2895 = vld [vmem:[#allocation29 + $0x2e8] sm:$0xff]
    %v2896 = vld [vmem:[#allocation29 + $0x2f0] sm:$0xf]
    %v2897 = vld [vmem:[#allocation29 + $0x2f4] sm:$0xff]
    %v2898 = vld [vmem:[#allocation29 + $0x2fc] sm:$0xff]
    %v2899 = vld [vmem:[#allocation29 + $0x304] sm:$0xff]
    %v2900 = vld [vmem:[#allocation29 + $0x30c] sm:$0xf]
    %v2901 = vld [vmem:[#allocation29 + $0x310] sm:$0xff]
    %v2902 = vld [vmem:[#allocation29 + $0x318] sm:$0xff]
    %v2903 = vld [vmem:[#allocation29 + $0x320] sm:$0xff]
    %v2904 = vld [vmem:[#allocation29 + $0x328] sm:$0xf]
    %v2905 = vld [vmem:[#allocation29 + $0x32c] sm:$0xff]
    %v2906 = vld [vmem:[#allocation29 + $0x334] sm:$0xff]
    %v2907 = vld [vmem:[#allocation29 + $0x33c] sm:$0xff]
    %v2908 = vld [vmem:[#allocation29 + $0x344] sm:$0xf]
    %v2909 = vld [vmem:[#allocation29 + $0x348] sm:$0xff]
    %v2910 = vld [vmem:[#allocation29 + $0x350] sm:$0xff]
    %v2911 = vld [vmem:[#allocation29 + $0x358] sm:$0xff]
    %v2912 = vld [vmem:[#allocation29 + $0x360] sm:$0xf]
    %v2913 = vld [vmem:[#allocation29 + $0x364] sm:$0xff]
    %v2914 = vld [vmem:[#allocation29 + $0x36c] sm:$0xff]
    %v2915 = vld [vmem:[#allocation29 + $0x374] sm:$0xff]
    %v2916 = vld [vmem:[#allocation29 + $0x37c] sm:$0xf]
    %v2917 = vld [vmem:[#allocation29 + $0x380] sm:$0xff]
    %v2918 = vld [vmem:[#allocation29 + $0x388] sm:$0xff]
    %v2919 = vld [vmem:[#allocation29 + $0x390] sm:$0xff]
    %v2920 = vld [vmem:[#allocation29 + $0x398] sm:$0xf]
    %v2921 = vld [vmem:[#allocation29 + $0x39c] sm:$0xff]
    %v2922 = vld [vmem:[#allocation29 + $0x3a4] sm:$0xff]
    %v2923 = vld [vmem:[#allocation29 + $0x3ac] sm:$0xff]
    %v2924 = vld [vmem:[#allocation29 + $0x3b4] sm:$0xf]
    %v2925 = vld [vmem:[#allocation29 + $0x3b8] sm:$0xff]
    %v2926 = vld [vmem:[#allocation29 + $0x3c0] sm:$0xff]
    %v2927 = vld [vmem:[#allocation29 + $0x3c8] sm:$0xff]
    %v2928 = vld [vmem:[#allocation29 + $0x3d0] sm:$0xf]
    %v2929 = vld [vmem:[#allocation29 + $0x3d4] sm:$0xff]
    %v2930 = vld [vmem:[#allocation29 + $0x3dc] sm:$0xff]
    %v2931 = vld [vmem:[#allocation29 + $0x3e4] sm:$0xff]
    %v2932 = vld [vmem:[#allocation29 + $0x3ec] sm:$0xf]
    %v2933 = vld [vmem:[#allocation29 + $0x3f0] sm:$0xff]
    %v2934 = vld [vmem:[#allocation29 + $0x3f8] sm:$0xff]
    %v2935 = vld [vmem:[#allocation29 + $0x400] sm:$0xff]
    %v2936 = vld [vmem:[#allocation29 + $0x408] sm:$0xf]
    %v2937 = vld [vmem:[#allocation29 + $0x40c] sm:$0xff]
    %v2938 = vld [vmem:[#allocation29 + $0x414] sm:$0xff]
    %v2939 = vld [vmem:[#allocation29 + $0x41c] sm:$0xff]
    %v2940 = vld [vmem:[#allocation29 + $0x424] sm:$0xf]
    %v2941 = vld [vmem:[#allocation29 + $0x428] sm:$0xff]
    %v2942 = vld [vmem:[#allocation29 + $0x430] sm:$0xff]
    %v2943 = vld [vmem:[#allocation29 + $0x438] sm:$0xff]
    %v2944 = vld [vmem:[#allocation29 + $0x440] sm:$0xf]
    %v2945 = vld [vmem:[#allocation29 + $0x444] sm:$0xff]
    %v2946 = vld [vmem:[#allocation29 + $0x44c] sm:$0xff]
    %v2947 = vld [vmem:[#allocation29 + $0x454] sm:$0xff]
    %v2948 = vld [vmem:[#allocation29 + $0x45c] sm:$0xf]
    %v2949 = vld [vmem:[#allocation29 + $0x460] sm:$0xff]
    %v2950 = vld [vmem:[#allocation29 + $0x468] sm:$0xff]
    %v2951 = vld [vmem:[#allocation29 + $0x470] sm:$0xff]
    %v2952 = vld [vmem:[#allocation29 + $0x478] sm:$0xf]
    %v2953 = vld [vmem:[#allocation29 + $0x47c] sm:$0xff]
    %v2954 = vld [vmem:[#allocation29 + $0x484] sm:$0xff]
    %v2955 = vld [vmem:[#allocation29 + $0x48c] sm:$0xff]
    %v2956 = vld [vmem:[#allocation29 + $0x494] sm:$0xf]
    %v2957 = vld [vmem:[#allocation29 + $0x498] sm:$0xff]
    %v2958 = vld [vmem:[#allocation29 + $0x4a0] sm:$0xff]
    %v2959 = vld [vmem:[#allocation29 + $0x4a8] sm:$0xff]
    %v2960 = vld [vmem:[#allocation29 + $0x4b0] sm:$0xf]
    %v2961 = vld [vmem:[#allocation29 + $0x4b4] sm:$0xff]
    %v2962 = vld [vmem:[#allocation29 + $0x4bc] sm:$0xff]
    %v2963 = vld [vmem:[#allocation29 + $0x4c4] sm:$0xff]
    %v2964 = vld [vmem:[#allocation29 + $0x4cc] sm:$0xf]
    %v2965 = vld [vmem:[#allocation29 + $0x4d0] sm:$0xff]
    %v2966 = vld [vmem:[#allocation29 + $0x4d8] sm:$0xff]
    %v2967 = vld [vmem:[#allocation29 + $0x4e0] sm:$0xff]
    %v2968 = vld [vmem:[#allocation29 + $0x4e8] sm:$0xf]
    %v2969 = vld [vmem:[#allocation29 + $0x4ec] sm:$0xff]
    %v2970 = vld [vmem:[#allocation29 + $0x4f4] sm:$0xff]
    %v2971 = vld [vmem:[#allocation29 + $0x4fc] sm:$0xff]
    %v2972 = vld [vmem:[#allocation29 + $0x504] sm:$0xf]
    %v2973 = vld [vmem:[#allocation29 + $0x508] sm:$0xff]
    %v2974 = vld [vmem:[#allocation29 + $0x510] sm:$0xff]
    %v2975 = vld [vmem:[#allocation29 + $0x518] sm:$0xff]
    %v2976 = vld [vmem:[#allocation29 + $0x520] sm:$0xf]
    %v2977 = vld [vmem:[#allocation29 + $0x524] sm:$0xff]
    %v2978 = vld [vmem:[#allocation29 + $0x52c] sm:$0xff]
    %v2979 = vld [vmem:[#allocation29 + $0x534] sm:$0xff]
    %v2980 = vld [vmem:[#allocation29 + $0x53c] sm:$0xf]
    %v2981 = vld [vmem:[#allocation29 + $0x540] sm:$0xff]
    %v2982 = vld [vmem:[#allocation29 + $0x548] sm:$0xff]
    %v2983 = vld [vmem:[#allocation29 + $0x550] sm:$0xff]
    %v2984 = vld [vmem:[#allocation29 + $0x558] sm:$0xf]
    %v2985 = vld [vmem:[#allocation29 + $0x55c] sm:$0xff]
    %v2986 = vld [vmem:[#allocation29 + $0x564] sm:$0xff]
    %v2987 = vld [vmem:[#allocation29 + $0x56c] sm:$0xff]
    %v2988 = vld [vmem:[#allocation29 + $0x574] sm:$0xf]
    %v2989 = vld [vmem:[#allocation29 + $0x578] sm:$0xff]
    %v2990 = vld [vmem:[#allocation29 + $0x580] sm:$0xff]
    %v2991 = vld [vmem:[#allocation29 + $0x588] sm:$0xff]
    %v2992 = vld [vmem:[#allocation29 + $0x590] sm:$0xf]
    %v2993 = vld [vmem:[#allocation29 + $0x594] sm:$0xff]
    %v2994 = vld [vmem:[#allocation29 + $0x59c] sm:$0xff]
    %v2995 = vld [vmem:[#allocation29 + $0x5a4] sm:$0xff]
    %v2996 = vld [vmem:[#allocation29 + $0x5ac] sm:$0xf]
    %v2997 = vld [vmem:[#allocation29 + $0x5b0] sm:$0xff]
    %v2998 = vld [vmem:[#allocation29 + $0x5b8] sm:$0xff]
    %v2999 = vld [vmem:[#allocation29 + $0x5c0] sm:$0xff]
    %v3000 = vld [vmem:[#allocation29 + $0x5c8] sm:$0xf]
    %v3001 = vld [vmem:[#allocation29 + $0x5cc] sm:$0xff]
    %v3002 = vld [vmem:[#allocation29 + $0x5d4] sm:$0xff]
    %v3003 = vld [vmem:[#allocation29 + $0x5dc] sm:$0xff]
    %v3004 = vld [vmem:[#allocation29 + $0x5e4] sm:$0xf]
    %v3005 = vld [vmem:[#allocation29 + $0x5e8] sm:$0xff]
    %v3006 = vld [vmem:[#allocation29 + $0x5f0] sm:$0xff]
    %v3007 = vld [vmem:[#allocation29 + $0x5f8] sm:$0xff]
    %v3008 = vld [vmem:[#allocation29 + $0x600] sm:$0xf]
    %v3009 = vld [vmem:[#allocation29 + $0x604] sm:$0xff]
    %v3010 = vld [vmem:[#allocation29 + $0x60c] sm:$0xff]
    %v3011 = vld [vmem:[#allocation29 + $0x614] sm:$0xff]
    %v3012 = vld [vmem:[#allocation29 + $0x61c] sm:$0xf]
    %v3013 = vld [vmem:[#allocation29 + $0x620] sm:$0xff]
    %v3014 = vld [vmem:[#allocation29 + $0x628] sm:$0xff]
    %v3015 = vld [vmem:[#allocation29 + $0x630] sm:$0xff]
    %v3016 = vld [vmem:[#allocation29 + $0x638] sm:$0xf]
    %v3017 = vld [vmem:[#allocation29 + $0x63c] sm:$0xff]
    %v3018 = vld [vmem:[#allocation29 + $0x644] sm:$0xff]
    %v3019 = vld [vmem:[#allocation29 + $0x64c] sm:$0xff]
    %v3020 = vld [vmem:[#allocation29 + $0x654] sm:$0xf]
    %v3021 = vld [vmem:[#allocation29 + $0x658] sm:$0xff]
    %v3022 = vld [vmem:[#allocation29 + $0x660] sm:$0xff]
    %v3023 = vld [vmem:[#allocation29 + $0x668] sm:$0xff]
    %v3024 = vld [vmem:[#allocation29 + $0x670] sm:$0xf]
    %v3025 = vld [vmem:[#allocation29 + $0x674] sm:$0xff]
    %v3026 = vld [vmem:[#allocation29 + $0x67c] sm:$0xff]
    %v3027 = vld [vmem:[#allocation29 + $0x684] sm:$0xff]
    %v3028 = vld [vmem:[#allocation29 + $0x68c] sm:$0xf]
    %v3029 = vld [vmem:[#allocation29 + $0x690] sm:$0xff]
    %v3030 = vld [vmem:[#allocation29 + $0x698] sm:$0xff]
    %v3031 = vld [vmem:[#allocation29 + $0x6a0] sm:$0xff]
    %v3032 = vld [vmem:[#allocation29 + $0x6a8] sm:$0xf]
    %v3033 = vld [vmem:[#allocation29 + $0x6ac] sm:$0xff]
    %v3034 = vld [vmem:[#allocation29 + $0x6b4] sm:$0xff]
    %v3035 = vld [vmem:[#allocation29 + $0x6bc] sm:$0xff]
    %v3036 = vld [vmem:[#allocation29 + $0x6c4] sm:$0xf]
    %v3037 = vld [vmem:[#allocation29 + $0x6c8] sm:$0xff]
    %v3038 = vld [vmem:[#allocation29 + $0x6d0] sm:$0xff]
    %v3039 = vld [vmem:[#allocation29 + $0x6d8] sm:$0xff]
    %v3040 = vld [vmem:[#allocation29 + $0x6e0] sm:$0xf]
    %v3041 = vld [vmem:[#allocation29 + $0x6e4] sm:$0xff]
    %v3042 = vld [vmem:[#allocation29 + $0x6ec] sm:$0xff]
    %v3043 = vld [vmem:[#allocation29 + $0x6f4] sm:$0xff]
    %v3044 = vld [vmem:[#allocation29 + $0x6fc] sm:$0xf]
    %v3045 = vld [vmem:[#allocation29 + $0x700] sm:$0xff]
    %v3046 = vld [vmem:[#allocation29 + $0x708] sm:$0xff]
    %v3047 = vld [vmem:[#allocation29 + $0x710] sm:$0xff]
    %v3048 = vld [vmem:[#allocation29 + $0x718] sm:$0xf]
    %v3049 = vld [vmem:[#allocation29 + $0x71c] sm:$0xff]
    %v3050 = vld [vmem:[#allocation29 + $0x724] sm:$0xff]
    %v3051 = vld [vmem:[#allocation29 + $0x72c] sm:$0xff]
    %v3052 = vld [vmem:[#allocation29 + $0x734] sm:$0xf]
    %v3053 = vld [vmem:[#allocation29 + $0x738] sm:$0xff]
    %v3054 = vld [vmem:[#allocation29 + $0x740] sm:$0xff]
    %v3055 = vld [vmem:[#allocation29 + $0x748] sm:$0xff]
    %v3056 = vld [vmem:[#allocation29 + $0x750] sm:$0xf]
    %v3057 = vld [vmem:[#allocation29 + $0x754] sm:$0xff]
    %v3058 = vld [vmem:[#allocation29 + $0x75c] sm:$0xff]
    %v3059 = vld [vmem:[#allocation29 + $0x764] sm:$0xff]
    %v3060 = vld [vmem:[#allocation29 + $0x76c] sm:$0xf]
    %v3061 = vld [vmem:[#allocation29 + $0x770] sm:$0xff]
    %v3062 = vld [vmem:[#allocation29 + $0x778] sm:$0xff]
    %v3063 = vld [vmem:[#allocation29 + $0x780] sm:$0xff]
    %v3064 = vld [vmem:[#allocation29 + $0x788] sm:$0xf]
    %v3065 = vld [vmem:[#allocation29 + $0x78c] sm:$0xff]
    %v3066 = vld [vmem:[#allocation29 + $0x794] sm:$0xff]
    %v3067 = vld [vmem:[#allocation29 + $0x79c] sm:$0xff]
    %v3068 = vld [vmem:[#allocation29 + $0x7a4] sm:$0xf]
    %v3069 = vld [vmem:[#allocation29 + $0x7a8] sm:$0xff]
    %v3070 = vld [vmem:[#allocation29 + $0x7b0] sm:$0xff]
    %v3071 = vld [vmem:[#allocation29 + $0x7b8] sm:$0xff]
    %v3072 = vld [vmem:[#allocation29 + $0x7c0] sm:$0xf]
    %v3073 = vld [vmem:[#allocation29 + $0x7c4] sm:$0xff]
    %v3074 = vld [vmem:[#allocation29 + $0x7cc] sm:$0xff]
    %v3075 = vld [vmem:[#allocation29 + $0x7d4] sm:$0xff]
    %v3076 = vld [vmem:[#allocation29 + $0x7dc] sm:$0xf]
    %v3077 = vld [vmem:[#allocation29 + $0x7e0] sm:$0xff]
    %v3078 = vld [vmem:[#allocation29 + $0x7e8] sm:$0xff]
    %v3079 = vld [vmem:[#allocation29 + $0x7f0] sm:$0xff]
    %v3080 = vld [vmem:[#allocation29 + $0x7f8] sm:$0xf]
    %v3081 = vld [vmem:[#allocation29 + $0x7fc] sm:$0xff]
    %v3082 = vld [vmem:[#allocation29 + $0x804] sm:$0xff]
    %v3083 = vld [vmem:[#allocation29 + $0x80c] sm:$0xff]
    %v3084 = vld [vmem:[#allocation29 + $0x814] sm:$0xf]
    %v3085 = vld [vmem:[#allocation29 + $0x818] sm:$0xff]
    %v3086 = vld [vmem:[#allocation29 + $0x820] sm:$0xff]
    %v3087 = vld [vmem:[#allocation29 + $0x828] sm:$0xff]
    %v3088 = vld [vmem:[#allocation29 + $0x830] sm:$0xf]
    %v3089 = vld [vmem:[#allocation29 + $0x834] sm:$0xff]
    %v3090 = vld [vmem:[#allocation29 + $0x83c] sm:$0xff]
    %v3091 = vld [vmem:[#allocation29 + $0x844] sm:$0xff]
    %v3092 = vld [vmem:[#allocation29 + $0x84c] sm:$0xf]
    %v3093 = vld [vmem:[#allocation29 + $0x850] sm:$0xff]
    %v3094 = vld [vmem:[#allocation29 + $0x858] sm:$0xff]
    %v3095 = vld [vmem:[#allocation29 + $0x860] sm:$0xff]
    %v3096 = vld [vmem:[#allocation29 + $0x868] sm:$0xf]
    %v3097 = vld [vmem:[#allocation29 + $0x86c] sm:$0xff]
    %v3098 = vld [vmem:[#allocation29 + $0x874] sm:$0xff]
    %v3099 = vld [vmem:[#allocation29 + $0x87c] sm:$0xff]
    %v3100 = vld [vmem:[#allocation29 + $0x884] sm:$0xf]
    %v3101 = vld [vmem:[#allocation29 + $0x888] sm:$0xff]
    %v3102 = vld [vmem:[#allocation29 + $0x890] sm:$0xff]
    %v3103 = vld [vmem:[#allocation29 + $0x898] sm:$0xff]
    %v3104 = vld [vmem:[#allocation29 + $0x8a0] sm:$0xf]
    %v3105 = vld [vmem:[#allocation29 + $0x8a4] sm:$0xff]
    %v3106 = vld [vmem:[#allocation29 + $0x8ac] sm:$0xff]
    %v3107 = vld [vmem:[#allocation29 + $0x8b4] sm:$0xff]
    %v3108 = vld [vmem:[#allocation29 + $0x8bc] sm:$0xf]
    %v3109 = vld [vmem:[#allocation29 + $0x8c0] sm:$0xff]
    %v3110 = vld [vmem:[#allocation29 + $0x8c8] sm:$0xff]
    %v3111 = vld [vmem:[#allocation29 + $0x8d0] sm:$0xff]
    %v3112 = vld [vmem:[#allocation29 + $0x8d8] sm:$0xf]
    %v3113 = vld [vmem:[#allocation29 + $0x8dc] sm:$0xff]
    %v3114 = vld [vmem:[#allocation29 + $0x8e4] sm:$0xff]
    %v3115 = vld [vmem:[#allocation29 + $0x8ec] sm:$0xff]
    %v3116 = vld [vmem:[#allocation29 + $0x8f4] sm:$0xf]
    %v3117 = vld [vmem:[#allocation29 + $0x8f8] sm:$0xff]
    %v3118 = vld [vmem:[#allocation29 + $0x900] sm:$0xff]
    %v3119 = vld [vmem:[#allocation29 + $0x908] sm:$0xff]
    %v3120 = vld [vmem:[#allocation29 + $0x910] sm:$0xf]
    %v3121 = vld [vmem:[#allocation29 + $0x914] sm:$0xff]
    %v3122 = vld [vmem:[#allocation29 + $0x91c] sm:$0xff]
    %v3123 = vld [vmem:[#allocation29 + $0x924] sm:$0xff]
    %v3124 = vld [vmem:[#allocation29 + $0x92c] sm:$0xf]
    %v3125 = vld [vmem:[#allocation29 + $0x930] sm:$0xff]
    %v3126 = vld [vmem:[#allocation29 + $0x938] sm:$0xff]
    %v3127 = vld [vmem:[#allocation29 + $0x940] sm:$0xff]
    %v3128 = vld [vmem:[#allocation29 + $0x948] sm:$0xf]
    %v3129 = vld [vmem:[#allocation29 + $0x94c] sm:$0xff]
    %v3130 = vld [vmem:[#allocation29 + $0x954] sm:$0xff]
    %v3131 = vld [vmem:[#allocation29 + $0x95c] sm:$0xff]
    %v3132 = vld [vmem:[#allocation29 + $0x964] sm:$0xf]
    %v3133 = vld [vmem:[#allocation29 + $0x968] sm:$0xff]
    %v3134 = vld [vmem:[#allocation29 + $0x970] sm:$0xff]
    %v3135 = vld [vmem:[#allocation29 + $0x978] sm:$0xff]
    %v3136 = vld [vmem:[#allocation29 + $0x980] sm:$0xf]
    %v3137 = vld [vmem:[#allocation29 + $0x984] sm:$0xff]
    %v3138 = vld [vmem:[#allocation29 + $0x98c] sm:$0xff]
    %v3139 = vld [vmem:[#allocation29 + $0x994] sm:$0xff]
    %v3140 = vld [vmem:[#allocation29 + $0x99c] sm:$0xf]
    %v3141 = vld [vmem:[#allocation29 + $0x9a0] sm:$0xff]
    %v3142 = vld [vmem:[#allocation29 + $0x9a8] sm:$0xff]
    %v3143 = vld [vmem:[#allocation29 + $0x9b0] sm:$0xff]
    %v3144 = vld [vmem:[#allocation29 + $0x9b8] sm:$0xf]
    %v3145 = vld [vmem:[#allocation29 + $0x9bc] sm:$0xff]
    %v3146 = vld [vmem:[#allocation29 + $0x9c4] sm:$0xff]
    %v3147 = vld [vmem:[#allocation29 + $0x9cc] sm:$0xff]
    %v3148 = vld [vmem:[#allocation29 + $0x9d4] sm:$0xf]
    %v3149 = vld [vmem:[#allocation29 + $0x9d8] sm:$0xff]
    %v3150 = vld [vmem:[#allocation29 + $0x9e0] sm:$0xff]
    %v3151 = vld [vmem:[#allocation29 + $0x9e8] sm:$0xff]
    %v3152 = vld [vmem:[#allocation29 + $0x9f0] sm:$0xf]
    %v3153 = vld [vmem:[#allocation29 + $0x9f4] sm:$0xff]
    %v3154 = vld [vmem:[#allocation29 + $0x9fc] sm:$0xff]
    %v3155 = vld [vmem:[#allocation29 + $0xa04] sm:$0xff]
    %v3156 = vld [vmem:[#allocation29 + $0xa0c] sm:$0xf]
    %v3157 = vld [vmem:[#allocation29 + $0xa10] sm:$0xff]
    %v3158 = vld [vmem:[#allocation29 + $0xa18] sm:$0xff]
    %v3159 = vld [vmem:[#allocation29 + $0xa20] sm:$0xff]
    %v3160 = vld [vmem:[#allocation29 + $0xa28] sm:$0xf]
    %v3161 = vld [vmem:[#allocation29 + $0xa2c] sm:$0xff]
    %v3162 = vld [vmem:[#allocation29 + $0xa34] sm:$0xff]
    %v3163 = vld [vmem:[#allocation29 + $0xa3c] sm:$0xff]
    %v3164 = vld [vmem:[#allocation29 + $0xa44] sm:$0xf]
    %v3165 = vld [vmem:[#allocation29 + $0xa48] sm:$0xff]
    %v3166 = vld [vmem:[#allocation29 + $0xa50] sm:$0xff]
    %v3167 = vld [vmem:[#allocation29 + $0xa58] sm:$0xff]
    %v3168 = vld [vmem:[#allocation29 + $0xa60] sm:$0xf]
    %v3169 = vld [vmem:[#allocation29 + $0xa64] sm:$0xff]
    %v3170 = vld [vmem:[#allocation29 + $0xa6c] sm:$0xff]
    %v3171 = vld [vmem:[#allocation29 + $0xa74] sm:$0xff]
    %v3172 = vld [vmem:[#allocation29 + $0xa7c] sm:$0xf]
    %v3173 = vld [vmem:[#allocation29 + $0xa80] sm:$0xff]
    %v3174 = vld [vmem:[#allocation29 + $0xa88] sm:$0xff]
    %v3175 = vld [vmem:[#allocation29 + $0xa90] sm:$0xff]
    %v3176 = vld [vmem:[#allocation29 + $0xa98] sm:$0xf]
    %v3177 = vld [vmem:[#allocation29 + $0xa9c] sm:$0xff]
    %v3178 = vld [vmem:[#allocation29 + $0xaa4] sm:$0xff]
    %v3179 = vld [vmem:[#allocation29 + $0xaac] sm:$0xff]
    %v3180 = vld [vmem:[#allocation29 + $0xab4] sm:$0xf]
    %v3181 = vld [vmem:[#allocation29 + $0xab8] sm:$0xff]
    %v3182 = vld [vmem:[#allocation29 + $0xac0] sm:$0xff]
    %v3183 = vld [vmem:[#allocation29 + $0xac8] sm:$0xff]
    %v3184 = vld [vmem:[#allocation29 + $0xad0] sm:$0xf]
    %v3185 = vld [vmem:[#allocation29 + $0xad4] sm:$0xff]
    %v3186 = vld [vmem:[#allocation29 + $0xadc] sm:$0xff]
    %v3187 = vld [vmem:[#allocation29 + $0xae4] sm:$0xff]
    %v3188 = vld [vmem:[#allocation29 + $0xaec] sm:$0xf]
    %v3189 = vld [vmem:[#allocation29 + $0xaf0] sm:$0xff]
    %v3190 = vld [vmem:[#allocation29 + $0xaf8] sm:$0xff]
    %v3191 = vld [vmem:[#allocation29 + $0xb00] sm:$0xff]
    %v3192 = vld [vmem:[#allocation29 + $0xb08] sm:$0xf]
    %v3193 = vld [vmem:[#allocation29 + $0xb0c] sm:$0xff]
    %v3194 = vld [vmem:[#allocation29 + $0xb14] sm:$0xff]
    %v3195 = vld [vmem:[#allocation29 + $0xb1c] sm:$0xff]
    %v3196 = vld [vmem:[#allocation29 + $0xb24] sm:$0xf]
    %v3197 = vld [vmem:[#allocation29 + $0xb28] sm:$0xff]
    %v3198 = vld [vmem:[#allocation29 + $0xb30] sm:$0xff]
    %v3199 = vld [vmem:[#allocation29 + $0xb38] sm:$0xff]
    %v3200 = vld [vmem:[#allocation29 + $0xb40] sm:$0xf]
    %v3201 = vld [vmem:[#allocation29 + $0xb44] sm:$0xff]
    %v3202 = vld [vmem:[#allocation29 + $0xb4c] sm:$0xff]
    %v3203 = vld [vmem:[#allocation29 + $0xb54] sm:$0xff]
    %v3204 = vld [vmem:[#allocation29 + $0xb5c] sm:$0xf]
    %v3205 = vld [vmem:[#allocation29 + $0xb60] sm:$0xff]
    %v3206 = vld [vmem:[#allocation29 + $0xb68] sm:$0xff]
    %v3207 = vld [vmem:[#allocation29 + $0xb70] sm:$0xff]
    %v3208 = vld [vmem:[#allocation29 + $0xb78] sm:$0xf]
    %v3209 = vld [vmem:[#allocation29 + $0xb7c] sm:$0xff]
    %v3210 = vld [vmem:[#allocation29 + $0xb84] sm:$0xff]
    %v3211 = vld [vmem:[#allocation29 + $0xb8c] sm:$0xff]
    %v3212 = vld [vmem:[#allocation29 + $0xb94] sm:$0xf]
    %v3213 = vld [vmem:[#allocation29 + $0xb98] sm:$0xff]
    %v3214 = vld [vmem:[#allocation29 + $0xba0] sm:$0xff]
    %v3215 = vld [vmem:[#allocation29 + $0xba8] sm:$0xff]
    %v3216 = vld [vmem:[#allocation29 + $0xbb0] sm:$0xf]
    %v3217 = vld [vmem:[#allocation29 + $0xbb4] sm:$0xff]
    %v3218 = vld [vmem:[#allocation29 + $0xbbc] sm:$0xff]
    %v3219 = vld [vmem:[#allocation29 + $0xbc4] sm:$0xff]
    %v3220 = vld [vmem:[#allocation29 + $0xbcc] sm:$0xf]
    %v3221 = vld [vmem:[#allocation29 + $0xbd0] sm:$0xff]
    %v3222 = vld [vmem:[#allocation29 + $0xbd8] sm:$0xff]
    %v3223 = vld [vmem:[#allocation29 + $0xbe0] sm:$0xff]
    %v3224 = vld [vmem:[#allocation29 + $0xbe8] sm:$0xf]
    %v3225 = vld [vmem:[#allocation29 + $0xbec] sm:$0xff]
    %v3226 = vld [vmem:[#allocation29 + $0xbf4] sm:$0xff]
    %v3227 = vld [vmem:[#allocation29 + $0xbfc] sm:$0xff]
    %v3228 = vld [vmem:[#allocation29 + $0xc04] sm:$0xf]
    %v3229 = vld [vmem:[#allocation29 + $0xc08] sm:$0xff]
    %v3230 = vld [vmem:[#allocation29 + $0xc10] sm:$0xff]
    %v3231 = vld [vmem:[#allocation29 + $0xc18] sm:$0xff]
    %v3232 = vld [vmem:[#allocation29 + $0xc20] sm:$0xf]
    %v3233 = vld [vmem:[#allocation29 + $0xc24] sm:$0xff]
    %v3234 = vld [vmem:[#allocation29 + $0xc2c] sm:$0xff]
    %v3235 = vld [vmem:[#allocation29 + $0xc34] sm:$0xff]
    %v3236 = vld [vmem:[#allocation29 + $0xc3c] sm:$0xf]
    %v3237 = vld [vmem:[#allocation29 + $0xc40] sm:$0xff]
    %v3238 = vld [vmem:[#allocation29 + $0xc48] sm:$0xff]
    %v3239 = vld [vmem:[#allocation29 + $0xc50] sm:$0xff]
    %v3240 = vld [vmem:[#allocation29 + $0xc58] sm:$0xf]
    %v3241 = vld [vmem:[#allocation29 + $0xc5c] sm:$0xff]
    %v3242 = vld [vmem:[#allocation29 + $0xc64] sm:$0xff]
    %v3243 = vld [vmem:[#allocation29 + $0xc6c] sm:$0xff]
    %v3244 = vld [vmem:[#allocation29 + $0xc74] sm:$0xf]
    %v3245 = vld [vmem:[#allocation29 + $0xc78] sm:$0xff]
    %v3246 = vld [vmem:[#allocation29 + $0xc80] sm:$0xff]
    %v3247 = vld [vmem:[#allocation29 + $0xc88] sm:$0xff]
    %v3248 = vld [vmem:[#allocation29 + $0xc90] sm:$0xf]
    %v3249 = vld [vmem:[#allocation29 + $0xc94] sm:$0xff]
    %v3250 = vld [vmem:[#allocation29 + $0xc9c] sm:$0xff]
    %v3251 = vld [vmem:[#allocation29 + $0xca4] sm:$0xff]
    %v3252 = vld [vmem:[#allocation29 + $0xcac] sm:$0xf]
    %v3253 = vld [vmem:[#allocation29 + $0xcb0] sm:$0xff]
    %v3254 = vld [vmem:[#allocation29 + $0xcb8] sm:$0xff]
    %v3255 = vld [vmem:[#allocation29 + $0xcc0] sm:$0xff]
    %v3256 = vld [vmem:[#allocation29 + $0xcc8] sm:$0xf]
    %v3257 = vld [vmem:[#allocation29 + $0xccc] sm:$0xff]
    %v3258 = vld [vmem:[#allocation29 + $0xcd4] sm:$0xff]
    %v3259 = vld [vmem:[#allocation29 + $0xcdc] sm:$0xff]
    %v3260 = vld [vmem:[#allocation29 + $0xce4] sm:$0xf]
    %v3261 = vld [vmem:[#allocation29 + $0xce8] sm:$0xff]
    %v3262 = vld [vmem:[#allocation29 + $0xcf0] sm:$0xff]
    %v3263 = vld [vmem:[#allocation29 + $0xcf8] sm:$0xff]
    %v3264 = vld [vmem:[#allocation29 + $0xd00] sm:$0xf]
    %v3265 = vld [vmem:[#allocation29 + $0xd04] sm:$0xff]
    %v3266 = vld [vmem:[#allocation29 + $0xd0c] sm:$0xff]
    %v3267 = vld [vmem:[#allocation29 + $0xd14] sm:$0xff]
    %v3268 = vld [vmem:[#allocation29 + $0xd1c] sm:$0xf]
    %v3269 = vld [vmem:[#allocation29 + $0xd20] sm:$0xff]
    %v3270 = vld [vmem:[#allocation29 + $0xd28] sm:$0xff]
    %v3271 = vld [vmem:[#allocation29 + $0xd30] sm:$0xff]
    %v3272 = vld [vmem:[#allocation29 + $0xd38] sm:$0xf]
    %v3273 = vld [vmem:[#allocation29 + $0xd3c] sm:$0xff]
    %v3274 = vld [vmem:[#allocation29 + $0xd44] sm:$0xff]
    %v3275 = vld [vmem:[#allocation29 + $0xd4c] sm:$0xff]
    %v3276 = vld [vmem:[#allocation29 + $0xd54] sm:$0xf]
    %v3277 = vld [vmem:[#allocation29 + $0xd58] sm:$0xff]
    %v3278 = vld [vmem:[#allocation29 + $0xd60] sm:$0xff]
    %v3279 = vld [vmem:[#allocation29 + $0xd68] sm:$0xff]
    %v3280 = vld [vmem:[#allocation29 + $0xd70] sm:$0xf]
    %v3281 = vld [vmem:[#allocation29 + $0xd74] sm:$0xff]
    %v3282 = vld [vmem:[#allocation29 + $0xd7c] sm:$0xff]
    %v3283 = vld [vmem:[#allocation29 + $0xd84] sm:$0xff]
    %v3284 = vld [vmem:[#allocation29 + $0xd8c] sm:$0xf]
    %v3285 = vld [vmem:[#allocation29 + $0xd90] sm:$0xff]
    %v3286 = vld [vmem:[#allocation29 + $0xd98] sm:$0xff]
    %v3287 = vld [vmem:[#allocation29 + $0xda0] sm:$0xff]
    %v3288 = vld [vmem:[#allocation29 + $0xda8] sm:$0xf]
    %v3289 = vld [vmem:[#allocation29 + $0xdac] sm:$0xff]
    %v3290 = vld [vmem:[#allocation29 + $0xdb4] sm:$0xff]
    %v3291 = vld [vmem:[#allocation29 + $0xdbc] sm:$0xff]
    %v3292 = vld [vmem:[#allocation29 + $0xdc4] sm:$0xf]
    %v3293 = vld [vmem:[#allocation29 + $0xdc8] sm:$0xff]
    %v3294 = vld [vmem:[#allocation29 + $0xdd0] sm:$0xff]
    %v3295 = vld [vmem:[#allocation29 + $0xdd8] sm:$0xff]
    %v3296 = vld [vmem:[#allocation29 + $0xde0] sm:$0xf]
    %v3297 = vld [vmem:[#allocation29 + $0xde4] sm:$0xff]
    %v3298 = vld [vmem:[#allocation29 + $0xdec] sm:$0xff]
    %v3299 = vld [vmem:[#allocation29 + $0xdf4] sm:$0xff]
    %v3300 = vld [vmem:[#allocation29 + $0xdfc] sm:$0xf]
    %v3301 = vunpack.c.l.bf16 %v2789
    %v3302 = vunpack.c.h.bf16 %v2789
    %v3303 = vunpack.c.l.bf16 %v2790
    %v3304 = vunpack.c.h.bf16 %v2790
    %v3305 = vunpack.c.l.bf16 %v2791
    %v3306 = vunpack.c.h.bf16 %v2791
    %v3307 = vunpack.c.l.bf16 %v2792
    %v3308 = vunpack.c.l.bf16 %v2793
    %v3309 = vunpack.c.h.bf16 %v2793
    %v3310 = vunpack.c.l.bf16 %v2794
    %v3311 = vunpack.c.h.bf16 %v2794
    %v3312 = vunpack.c.l.bf16 %v2795
    %v3313 = vunpack.c.h.bf16 %v2795
    %v3314 = vunpack.c.l.bf16 %v2796
    %v3315 = vunpack.c.l.bf16 %v2797
    %v3316 = vunpack.c.h.bf16 %v2797
    %v3317 = vunpack.c.l.bf16 %v2798
    %v3318 = vunpack.c.h.bf16 %v2798
    %v3319 = vunpack.c.l.bf16 %v2799
    %v3320 = vunpack.c.h.bf16 %v2799
    %v3321 = vunpack.c.l.bf16 %v2800
    %v3322 = vunpack.c.l.bf16 %v2801
    %v3323 = vunpack.c.h.bf16 %v2801
    %v3324 = vunpack.c.l.bf16 %v2802
    %v3325 = vunpack.c.h.bf16 %v2802
    %v3326 = vunpack.c.l.bf16 %v2803
    %v3327 = vunpack.c.h.bf16 %v2803
    %v3328 = vunpack.c.l.bf16 %v2804
    %v3329 = vunpack.c.l.bf16 %v2805
    %v3330 = vunpack.c.h.bf16 %v2805
    %v3331 = vunpack.c.l.bf16 %v2806
    %v3332 = vunpack.c.h.bf16 %v2806
    %v3333 = vunpack.c.l.bf16 %v2807
    %v3334 = vunpack.c.h.bf16 %v2807
    %v3335 = vunpack.c.l.bf16 %v2808
    %v3336 = vunpack.c.l.bf16 %v2809
    %v3337 = vunpack.c.h.bf16 %v2809
    %v3338 = vunpack.c.l.bf16 %v2810
    %v3339 = vunpack.c.h.bf16 %v2810
    %v3340 = vunpack.c.l.bf16 %v2811
    %v3341 = vunpack.c.h.bf16 %v2811
    %v3342 = vunpack.c.l.bf16 %v2812
    %v3343 = vunpack.c.l.bf16 %v2813
    %v3344 = vunpack.c.h.bf16 %v2813
    %v3345 = vunpack.c.l.bf16 %v2814
    %v3346 = vunpack.c.h.bf16 %v2814
    %v3347 = vunpack.c.l.bf16 %v2815
    %v3348 = vunpack.c.h.bf16 %v2815
    %v3349 = vunpack.c.l.bf16 %v2816
    %v3350 = vunpack.c.l.bf16 %v2817
    %v3351 = vunpack.c.h.bf16 %v2817
    %v3352 = vunpack.c.l.bf16 %v2818
    %v3353 = vunpack.c.h.bf16 %v2818
    %v3354 = vunpack.c.l.bf16 %v2819
    %v3355 = vunpack.c.h.bf16 %v2819
    %v3356 = vunpack.c.l.bf16 %v2820
    %v3357 = vunpack.c.l.bf16 %v2821
    %v3358 = vunpack.c.h.bf16 %v2821
    %v3359 = vunpack.c.l.bf16 %v2822
    %v3360 = vunpack.c.h.bf16 %v2822
    %v3361 = vunpack.c.l.bf16 %v2823
    %v3362 = vunpack.c.h.bf16 %v2823
    %v3363 = vunpack.c.l.bf16 %v2824
    %v3364 = vunpack.c.l.bf16 %v2825
    %v3365 = vunpack.c.h.bf16 %v2825
    %v3366 = vunpack.c.l.bf16 %v2826
    %v3367 = vunpack.c.h.bf16 %v2826
    %v3368 = vunpack.c.l.bf16 %v2827
    %v3369 = vunpack.c.h.bf16 %v2827
    %v3370 = vunpack.c.l.bf16 %v2828
    %v3371 = vunpack.c.l.bf16 %v2829
    %v3372 = vunpack.c.h.bf16 %v2829
    %v3373 = vunpack.c.l.bf16 %v2830
    %v3374 = vunpack.c.h.bf16 %v2830
    %v3375 = vunpack.c.l.bf16 %v2831
    %v3376 = vunpack.c.h.bf16 %v2831
    %v3377 = vunpack.c.l.bf16 %v2832
    %v3378 = vunpack.c.l.bf16 %v2833
    %v3379 = vunpack.c.h.bf16 %v2833
    %v3380 = vunpack.c.l.bf16 %v2834
    %v3381 = vunpack.c.h.bf16 %v2834
    %v3382 = vunpack.c.l.bf16 %v2835
    %v3383 = vunpack.c.h.bf16 %v2835
    %v3384 = vunpack.c.l.bf16 %v2836
    %v3385 = vunpack.c.l.bf16 %v2837
    %v3386 = vunpack.c.h.bf16 %v2837
    %v3387 = vunpack.c.l.bf16 %v2838
    %v3388 = vunpack.c.h.bf16 %v2838
    %v3389 = vunpack.c.l.bf16 %v2839
    %v3390 = vunpack.c.h.bf16 %v2839
    %v3391 = vunpack.c.l.bf16 %v2840
    %v3392 = vunpack.c.l.bf16 %v2841
    %v3393 = vunpack.c.h.bf16 %v2841
    %v3394 = vunpack.c.l.bf16 %v2842
    %v3395 = vunpack.c.h.bf16 %v2842
    %v3396 = vunpack.c.l.bf16 %v2843
    %v3397 = vunpack.c.h.bf16 %v2843
    %v3398 = vunpack.c.l.bf16 %v2844
    %v3399 = vunpack.c.l.bf16 %v2845
    %v3400 = vunpack.c.h.bf16 %v2845
    %v3401 = vunpack.c.l.bf16 %v2846
    %v3402 = vunpack.c.h.bf16 %v2846
    %v3403 = vunpack.c.l.bf16 %v2847
    %v3404 = vunpack.c.h.bf16 %v2847
    %v3405 = vunpack.c.l.bf16 %v2848
    %v3406 = vunpack.c.l.bf16 %v2849
    %v3407 = vunpack.c.h.bf16 %v2849
    %v3408 = vunpack.c.l.bf16 %v2850
    %v3409 = vunpack.c.h.bf16 %v2850
    %v3410 = vunpack.c.l.bf16 %v2851
    %v3411 = vunpack.c.h.bf16 %v2851
    %v3412 = vunpack.c.l.bf16 %v2852
    %v3413 = vunpack.c.l.bf16 %v2853
    %v3414 = vunpack.c.h.bf16 %v2853
    %v3415 = vunpack.c.l.bf16 %v2854
    %v3416 = vunpack.c.h.bf16 %v2854
    %v3417 = vunpack.c.l.bf16 %v2855
    %v3418 = vunpack.c.h.bf16 %v2855
    %v3419 = vunpack.c.l.bf16 %v2856
    %v3420 = vunpack.c.l.bf16 %v2857
    %v3421 = vunpack.c.h.bf16 %v2857
    %v3422 = vunpack.c.l.bf16 %v2858
    %v3423 = vunpack.c.h.bf16 %v2858
    %v3424 = vunpack.c.l.bf16 %v2859
    %v3425 = vunpack.c.h.bf16 %v2859
    %v3426 = vunpack.c.l.bf16 %v2860
    %v3427 = vunpack.c.l.bf16 %v2861
    %v3428 = vunpack.c.h.bf16 %v2861
    %v3429 = vunpack.c.l.bf16 %v2862
    %v3430 = vunpack.c.h.bf16 %v2862
    %v3431 = vunpack.c.l.bf16 %v2863
    %v3432 = vunpack.c.h.bf16 %v2863
    %v3433 = vunpack.c.l.bf16 %v2864
    %v3434 = vunpack.c.l.bf16 %v2865
    %v3435 = vunpack.c.h.bf16 %v2865
    %v3436 = vunpack.c.l.bf16 %v2866
    %v3437 = vunpack.c.h.bf16 %v2866
    %v3438 = vunpack.c.l.bf16 %v2867
    %v3439 = vunpack.c.h.bf16 %v2867
    %v3440 = vunpack.c.l.bf16 %v2868
    %v3441 = vunpack.c.l.bf16 %v2869
    %v3442 = vunpack.c.h.bf16 %v2869
    %v3443 = vunpack.c.l.bf16 %v2870
    %v3444 = vunpack.c.h.bf16 %v2870
    %v3445 = vunpack.c.l.bf16 %v2871
    %v3446 = vunpack.c.h.bf16 %v2871
    %v3447 = vunpack.c.l.bf16 %v2872
    %v3448 = vunpack.c.l.bf16 %v2873
    %v3449 = vunpack.c.h.bf16 %v2873
    %v3450 = vunpack.c.l.bf16 %v2874
    %v3451 = vunpack.c.h.bf16 %v2874
    %v3452 = vunpack.c.l.bf16 %v2875
    %v3453 = vunpack.c.h.bf16 %v2875
    %v3454 = vunpack.c.l.bf16 %v2876
    %v3455 = vunpack.c.l.bf16 %v2877
    %v3456 = vunpack.c.h.bf16 %v2877
    %v3457 = vunpack.c.l.bf16 %v2878
    %v3458 = vunpack.c.h.bf16 %v2878
    %v3459 = vunpack.c.l.bf16 %v2879
    %v3460 = vunpack.c.h.bf16 %v2879
    %v3461 = vunpack.c.l.bf16 %v2880
    %v3462 = vunpack.c.l.bf16 %v2881
    %v3463 = vunpack.c.h.bf16 %v2881
    %v3464 = vunpack.c.l.bf16 %v2882
    %v3465 = vunpack.c.h.bf16 %v2882
    %v3466 = vunpack.c.l.bf16 %v2883
    %v3467 = vunpack.c.h.bf16 %v2883
    %v3468 = vunpack.c.l.bf16 %v2884
    %v3469 = vunpack.c.l.bf16 %v2885
    %v3470 = vunpack.c.h.bf16 %v2885
    %v3471 = vunpack.c.l.bf16 %v2886
    %v3472 = vunpack.c.h.bf16 %v2886
    %v3473 = vunpack.c.l.bf16 %v2887
    %v3474 = vunpack.c.h.bf16 %v2887
    %v3475 = vunpack.c.l.bf16 %v2888
    %v3476 = vunpack.c.l.bf16 %v2889
    %v3477 = vunpack.c.h.bf16 %v2889
    %v3478 = vunpack.c.l.bf16 %v2890
    %v3479 = vunpack.c.h.bf16 %v2890
    %v3480 = vunpack.c.l.bf16 %v2891
    %v3481 = vunpack.c.h.bf16 %v2891
    %v3482 = vunpack.c.l.bf16 %v2892
    %v3483 = vunpack.c.l.bf16 %v2893
    %v3484 = vunpack.c.h.bf16 %v2893
    %v3485 = vunpack.c.l.bf16 %v2894
    %v3486 = vunpack.c.h.bf16 %v2894
    %v3487 = vunpack.c.l.bf16 %v2895
    %v3488 = vunpack.c.h.bf16 %v2895
    %v3489 = vunpack.c.l.bf16 %v2896
    %v3490 = vunpack.c.l.bf16 %v2897
    %v3491 = vunpack.c.h.bf16 %v2897
    %v3492 = vunpack.c.l.bf16 %v2898
    %v3493 = vunpack.c.h.bf16 %v2898
    %v3494 = vunpack.c.l.bf16 %v2899
    %v3495 = vunpack.c.h.bf16 %v2899
    %v3496 = vunpack.c.l.bf16 %v2900
    %v3497 = vunpack.c.l.bf16 %v2901
    %v3498 = vunpack.c.h.bf16 %v2901
    %v3499 = vunpack.c.l.bf16 %v2902
    %v3500 = vunpack.c.h.bf16 %v2902
    %v3501 = vunpack.c.l.bf16 %v2903
    %v3502 = vunpack.c.h.bf16 %v2903
    %v3503 = vunpack.c.l.bf16 %v2904
    %v3504 = vunpack.c.l.bf16 %v2905
    %v3505 = vunpack.c.h.bf16 %v2905
    %v3506 = vunpack.c.l.bf16 %v2906
    %v3507 = vunpack.c.h.bf16 %v2906
    %v3508 = vunpack.c.l.bf16 %v2907
    %v3509 = vunpack.c.h.bf16 %v2907
    %v3510 = vunpack.c.l.bf16 %v2908
    %v3511 = vunpack.c.l.bf16 %v2909
    %v3512 = vunpack.c.h.bf16 %v2909
    %v3513 = vunpack.c.l.bf16 %v2910
    %v3514 = vunpack.c.h.bf16 %v2910
    %v3515 = vunpack.c.l.bf16 %v2911
    %v3516 = vunpack.c.h.bf16 %v2911
    %v3517 = vunpack.c.l.bf16 %v2912
    %v3518 = vunpack.c.l.bf16 %v2913
    %v3519 = vunpack.c.h.bf16 %v2913
    %v3520 = vunpack.c.l.bf16 %v2914
    %v3521 = vunpack.c.h.bf16 %v2914
    %v3522 = vunpack.c.l.bf16 %v2915
    %v3523 = vunpack.c.h.bf16 %v2915
    %v3524 = vunpack.c.l.bf16 %v2916
    %v3525 = vunpack.c.l.bf16 %v2917
    %v3526 = vunpack.c.h.bf16 %v2917
    %v3527 = vunpack.c.l.bf16 %v2918
    %v3528 = vunpack.c.h.bf16 %v2918
    %v3529 = vunpack.c.l.bf16 %v2919
    %v3530 = vunpack.c.h.bf16 %v2919
    %v3531 = vunpack.c.l.bf16 %v2920
    %v3532 = vunpack.c.l.bf16 %v2921
    %v3533 = vunpack.c.h.bf16 %v2921
    %v3534 = vunpack.c.l.bf16 %v2922
    %v3535 = vunpack.c.h.bf16 %v2922
    %v3536 = vunpack.c.l.bf16 %v2923
    %v3537 = vunpack.c.h.bf16 %v2923
    %v3538 = vunpack.c.l.bf16 %v2924
    %v3539 = vunpack.c.l.bf16 %v2925
    %v3540 = vunpack.c.h.bf16 %v2925
    %v3541 = vunpack.c.l.bf16 %v2926
    %v3542 = vunpack.c.h.bf16 %v2926
    %v3543 = vunpack.c.l.bf16 %v2927
    %v3544 = vunpack.c.h.bf16 %v2927
    %v3545 = vunpack.c.l.bf16 %v2928
    %v3546 = vunpack.c.l.bf16 %v2929
    %v3547 = vunpack.c.h.bf16 %v2929
    %v3548 = vunpack.c.l.bf16 %v2930
    %v3549 = vunpack.c.h.bf16 %v2930
    %v3550 = vunpack.c.l.bf16 %v2931
    %v3551 = vunpack.c.h.bf16 %v2931
    %v3552 = vunpack.c.l.bf16 %v2932
    %v3553 = vunpack.c.l.bf16 %v2933
    %v3554 = vunpack.c.h.bf16 %v2933
    %v3555 = vunpack.c.l.bf16 %v2934
    %v3556 = vunpack.c.h.bf16 %v2934
    %v3557 = vunpack.c.l.bf16 %v2935
    %v3558 = vunpack.c.h.bf16 %v2935
    %v3559 = vunpack.c.l.bf16 %v2936
    %v3560 = vunpack.c.l.bf16 %v2937
    %v3561 = vunpack.c.h.bf16 %v2937
    %v3562 = vunpack.c.l.bf16 %v2938
    %v3563 = vunpack.c.h.bf16 %v2938
    %v3564 = vunpack.c.l.bf16 %v2939
    %v3565 = vunpack.c.h.bf16 %v2939
    %v3566 = vunpack.c.l.bf16 %v2940
    %v3567 = vunpack.c.l.bf16 %v2941
    %v3568 = vunpack.c.h.bf16 %v2941
    %v3569 = vunpack.c.l.bf16 %v2942
    %v3570 = vunpack.c.h.bf16 %v2942
    %v3571 = vunpack.c.l.bf16 %v2943
    %v3572 = vunpack.c.h.bf16 %v2943
    %v3573 = vunpack.c.l.bf16 %v2944
    %v3574 = vunpack.c.l.bf16 %v2945
    %v3575 = vunpack.c.h.bf16 %v2945
    %v3576 = vunpack.c.l.bf16 %v2946
    %v3577 = vunpack.c.h.bf16 %v2946
    %v3578 = vunpack.c.l.bf16 %v2947
    %v3579 = vunpack.c.h.bf16 %v2947
    %v3580 = vunpack.c.l.bf16 %v2948
    %v3581 = vunpack.c.l.bf16 %v2949
    %v3582 = vunpack.c.h.bf16 %v2949
    %v3583 = vunpack.c.l.bf16 %v2950
    %v3584 = vunpack.c.h.bf16 %v2950
    %v3585 = vunpack.c.l.bf16 %v2951
    %v3586 = vunpack.c.h.bf16 %v2951
    %v3587 = vunpack.c.l.bf16 %v2952
    %v3588 = vunpack.c.l.bf16 %v2953
    %v3589 = vunpack.c.h.bf16 %v2953
    %v3590 = vunpack.c.l.bf16 %v2954
    %v3591 = vunpack.c.h.bf16 %v2954
    %v3592 = vunpack.c.l.bf16 %v2955
    %v3593 = vunpack.c.h.bf16 %v2955
    %v3594 = vunpack.c.l.bf16 %v2956
    %v3595 = vunpack.c.l.bf16 %v2957
    %v3596 = vunpack.c.h.bf16 %v2957
    %v3597 = vunpack.c.l.bf16 %v2958
    %v3598 = vunpack.c.h.bf16 %v2958
    %v3599 = vunpack.c.l.bf16 %v2959
    %v3600 = vunpack.c.h.bf16 %v2959
    %v3601 = vunpack.c.l.bf16 %v2960
    %v3602 = vunpack.c.l.bf16 %v2961
    %v3603 = vunpack.c.h.bf16 %v2961
    %v3604 = vunpack.c.l.bf16 %v2962
    %v3605 = vunpack.c.h.bf16 %v2962
    %v3606 = vunpack.c.l.bf16 %v2963
    %v3607 = vunpack.c.h.bf16 %v2963
    %v3608 = vunpack.c.l.bf16 %v2964
    %v3609 = vunpack.c.l.bf16 %v2965
    %v3610 = vunpack.c.h.bf16 %v2965
    %v3611 = vunpack.c.l.bf16 %v2966
    %v3612 = vunpack.c.h.bf16 %v2966
    %v3613 = vunpack.c.l.bf16 %v2967
    %v3614 = vunpack.c.h.bf16 %v2967
    %v3615 = vunpack.c.l.bf16 %v2968
    %v3616 = vunpack.c.l.bf16 %v2969
    %v3617 = vunpack.c.h.bf16 %v2969
    %v3618 = vunpack.c.l.bf16 %v2970
    %v3619 = vunpack.c.h.bf16 %v2970
    %v3620 = vunpack.c.l.bf16 %v2971
    %v3621 = vunpack.c.h.bf16 %v2971
    %v3622 = vunpack.c.l.bf16 %v2972
    %v3623 = vunpack.c.l.bf16 %v2973
    %v3624 = vunpack.c.h.bf16 %v2973
    %v3625 = vunpack.c.l.bf16 %v2974
    %v3626 = vunpack.c.h.bf16 %v2974
    %v3627 = vunpack.c.l.bf16 %v2975
    %v3628 = vunpack.c.h.bf16 %v2975
    %v3629 = vunpack.c.l.bf16 %v2976
    %v3630 = vunpack.c.l.bf16 %v2977
    %v3631 = vunpack.c.h.bf16 %v2977
    %v3632 = vunpack.c.l.bf16 %v2978
    %v3633 = vunpack.c.h.bf16 %v2978
    %v3634 = vunpack.c.l.bf16 %v2979
    %v3635 = vunpack.c.h.bf16 %v2979
    %v3636 = vunpack.c.l.bf16 %v2980
    %v3637 = vunpack.c.l.bf16 %v2981
    %v3638 = vunpack.c.h.bf16 %v2981
    %v3639 = vunpack.c.l.bf16 %v2982
    %v3640 = vunpack.c.h.bf16 %v2982
    %v3641 = vunpack.c.l.bf16 %v2983
    %v3642 = vunpack.c.h.bf16 %v2983
    %v3643 = vunpack.c.l.bf16 %v2984
    %v3644 = vunpack.c.l.bf16 %v2985
    %v3645 = vunpack.c.h.bf16 %v2985
    %v3646 = vunpack.c.l.bf16 %v2986
    %v3647 = vunpack.c.h.bf16 %v2986
    %v3648 = vunpack.c.l.bf16 %v2987
    %v3649 = vunpack.c.h.bf16 %v2987
    %v3650 = vunpack.c.l.bf16 %v2988
    %v3651 = vunpack.c.l.bf16 %v2989
    %v3652 = vunpack.c.h.bf16 %v2989
    %v3653 = vunpack.c.l.bf16 %v2990
    %v3654 = vunpack.c.h.bf16 %v2990
    %v3655 = vunpack.c.l.bf16 %v2991
    %v3656 = vunpack.c.h.bf16 %v2991
    %v3657 = vunpack.c.l.bf16 %v2992
    %v3658 = vunpack.c.l.bf16 %v2993
    %v3659 = vunpack.c.h.bf16 %v2993
    %v3660 = vunpack.c.l.bf16 %v2994
    %v3661 = vunpack.c.h.bf16 %v2994
    %v3662 = vunpack.c.l.bf16 %v2995
    %v3663 = vunpack.c.h.bf16 %v2995
    %v3664 = vunpack.c.l.bf16 %v2996
    %v3665 = vunpack.c.l.bf16 %v2997
    %v3666 = vunpack.c.h.bf16 %v2997
    %v3667 = vunpack.c.l.bf16 %v2998
    %v3668 = vunpack.c.h.bf16 %v2998
    %v3669 = vunpack.c.l.bf16 %v2999
    %v3670 = vunpack.c.h.bf16 %v2999
    %v3671 = vunpack.c.l.bf16 %v3000
    %v3672 = vunpack.c.l.bf16 %v3001
    %v3673 = vunpack.c.h.bf16 %v3001
    %v3674 = vunpack.c.l.bf16 %v3002
    %v3675 = vunpack.c.h.bf16 %v3002
    %v3676 = vunpack.c.l.bf16 %v3003
    %v3677 = vunpack.c.h.bf16 %v3003
    %v3678 = vunpack.c.l.bf16 %v3004
    %v3679 = vunpack.c.l.bf16 %v3005
    %v3680 = vunpack.c.h.bf16 %v3005
    %v3681 = vunpack.c.l.bf16 %v3006
    %v3682 = vunpack.c.h.bf16 %v3006
    %v3683 = vunpack.c.l.bf16 %v3007
    %v3684 = vunpack.c.h.bf16 %v3007
    %v3685 = vunpack.c.l.bf16 %v3008
    %v3686 = vunpack.c.l.bf16 %v3009
    %v3687 = vunpack.c.h.bf16 %v3009
    %v3688 = vunpack.c.l.bf16 %v3010
    %v3689 = vunpack.c.h.bf16 %v3010
    %v3690 = vunpack.c.l.bf16 %v3011
    %v3691 = vunpack.c.h.bf16 %v3011
    %v3692 = vunpack.c.l.bf16 %v3012
    %v3693 = vunpack.c.l.bf16 %v3013
    %v3694 = vunpack.c.h.bf16 %v3013
    %v3695 = vunpack.c.l.bf16 %v3014
    %v3696 = vunpack.c.h.bf16 %v3014
    %v3697 = vunpack.c.l.bf16 %v3015
    %v3698 = vunpack.c.h.bf16 %v3015
    %v3699 = vunpack.c.l.bf16 %v3016
    %v3700 = vunpack.c.l.bf16 %v3017
    %v3701 = vunpack.c.h.bf16 %v3017
    %v3702 = vunpack.c.l.bf16 %v3018
    %v3703 = vunpack.c.h.bf16 %v3018
    %v3704 = vunpack.c.l.bf16 %v3019
    %v3705 = vunpack.c.h.bf16 %v3019
    %v3706 = vunpack.c.l.bf16 %v3020
    %v3707 = vunpack.c.l.bf16 %v3021
    %v3708 = vunpack.c.h.bf16 %v3021
    %v3709 = vunpack.c.l.bf16 %v3022
    %v3710 = vunpack.c.h.bf16 %v3022
    %v3711 = vunpack.c.l.bf16 %v3023
    %v3712 = vunpack.c.h.bf16 %v3023
    %v3713 = vunpack.c.l.bf16 %v3024
    %v3714 = vunpack.c.l.bf16 %v3025
    %v3715 = vunpack.c.h.bf16 %v3025
    %v3716 = vunpack.c.l.bf16 %v3026
    %v3717 = vunpack.c.h.bf16 %v3026
    %v3718 = vunpack.c.l.bf16 %v3027
    %v3719 = vunpack.c.h.bf16 %v3027
    %v3720 = vunpack.c.l.bf16 %v3028
    %v3721 = vunpack.c.l.bf16 %v3029
    %v3722 = vunpack.c.h.bf16 %v3029
    %v3723 = vunpack.c.l.bf16 %v3030
    %v3724 = vunpack.c.h.bf16 %v3030
    %v3725 = vunpack.c.l.bf16 %v3031
    %v3726 = vunpack.c.h.bf16 %v3031
    %v3727 = vunpack.c.l.bf16 %v3032
    %v3728 = vunpack.c.l.bf16 %v3033
    %v3729 = vunpack.c.h.bf16 %v3033
    %v3730 = vunpack.c.l.bf16 %v3034
    %v3731 = vunpack.c.h.bf16 %v3034
    %v3732 = vunpack.c.l.bf16 %v3035
    %v3733 = vunpack.c.h.bf16 %v3035
    %v3734 = vunpack.c.l.bf16 %v3036
    %v3735 = vunpack.c.l.bf16 %v3037
    %v3736 = vunpack.c.h.bf16 %v3037
    %v3737 = vunpack.c.l.bf16 %v3038
    %v3738 = vunpack.c.h.bf16 %v3038
    %v3739 = vunpack.c.l.bf16 %v3039
    %v3740 = vunpack.c.h.bf16 %v3039
    %v3741 = vunpack.c.l.bf16 %v3040
    %v3742 = vunpack.c.l.bf16 %v3041
    %v3743 = vunpack.c.h.bf16 %v3041
    %v3744 = vunpack.c.l.bf16 %v3042
    %v3745 = vunpack.c.h.bf16 %v3042
    %v3746 = vunpack.c.l.bf16 %v3043
    %v3747 = vunpack.c.h.bf16 %v3043
    %v3748 = vunpack.c.l.bf16 %v3044
    %v3749 = vunpack.c.l.bf16 %v3045
    %v3750 = vunpack.c.h.bf16 %v3045
    %v3751 = vunpack.c.l.bf16 %v3046
    %v3752 = vunpack.c.h.bf16 %v3046
    %v3753 = vunpack.c.l.bf16 %v3047
    %v3754 = vunpack.c.h.bf16 %v3047
    %v3755 = vunpack.c.l.bf16 %v3048
    %v3756 = vunpack.c.l.bf16 %v3049
    %v3757 = vunpack.c.h.bf16 %v3049
    %v3758 = vunpack.c.l.bf16 %v3050
    %v3759 = vunpack.c.h.bf16 %v3050
    %v3760 = vunpack.c.l.bf16 %v3051
    %v3761 = vunpack.c.h.bf16 %v3051
    %v3762 = vunpack.c.l.bf16 %v3052
    %v3763 = vunpack.c.l.bf16 %v3053
    %v3764 = vunpack.c.h.bf16 %v3053
    %v3765 = vunpack.c.l.bf16 %v3054
    %v3766 = vunpack.c.h.bf16 %v3054
    %v3767 = vunpack.c.l.bf16 %v3055
    %v3768 = vunpack.c.h.bf16 %v3055
    %v3769 = vunpack.c.l.bf16 %v3056
    %v3770 = vunpack.c.l.bf16 %v3057
    %v3771 = vunpack.c.h.bf16 %v3057
    %v3772 = vunpack.c.l.bf16 %v3058
    %v3773 = vunpack.c.h.bf16 %v3058
    %v3774 = vunpack.c.l.bf16 %v3059
    %v3775 = vunpack.c.h.bf16 %v3059
    %v3776 = vunpack.c.l.bf16 %v3060
    %v3777 = vunpack.c.l.bf16 %v3061
    %v3778 = vunpack.c.h.bf16 %v3061
    %v3779 = vunpack.c.l.bf16 %v3062
    %v3780 = vunpack.c.h.bf16 %v3062
    %v3781 = vunpack.c.l.bf16 %v3063
    %v3782 = vunpack.c.h.bf16 %v3063
    %v3783 = vunpack.c.l.bf16 %v3064
    %v3784 = vunpack.c.l.bf16 %v3065
    %v3785 = vunpack.c.h.bf16 %v3065
    %v3786 = vunpack.c.l.bf16 %v3066
    %v3787 = vunpack.c.h.bf16 %v3066
    %v3788 = vunpack.c.l.bf16 %v3067
    %v3789 = vunpack.c.h.bf16 %v3067
    %v3790 = vunpack.c.l.bf16 %v3068
    %v3791 = vunpack.c.l.bf16 %v3069
    %v3792 = vunpack.c.h.bf16 %v3069
    %v3793 = vunpack.c.l.bf16 %v3070
    %v3794 = vunpack.c.h.bf16 %v3070
    %v3795 = vunpack.c.l.bf16 %v3071
    %v3796 = vunpack.c.h.bf16 %v3071
    %v3797 = vunpack.c.l.bf16 %v3072
    %v3798 = vunpack.c.l.bf16 %v3073
    %v3799 = vunpack.c.h.bf16 %v3073
    %v3800 = vunpack.c.l.bf16 %v3074
    %v3801 = vunpack.c.h.bf16 %v3074
    %v3802 = vunpack.c.l.bf16 %v3075
    %v3803 = vunpack.c.h.bf16 %v3075
    %v3804 = vunpack.c.l.bf16 %v3076
    %v3805 = vunpack.c.l.bf16 %v3077
    %v3806 = vunpack.c.h.bf16 %v3077
    %v3807 = vunpack.c.l.bf16 %v3078
    %v3808 = vunpack.c.h.bf16 %v3078
    %v3809 = vunpack.c.l.bf16 %v3079
    %v3810 = vunpack.c.h.bf16 %v3079
    %v3811 = vunpack.c.l.bf16 %v3080
    %v3812 = vunpack.c.l.bf16 %v3081
    %v3813 = vunpack.c.h.bf16 %v3081
    %v3814 = vunpack.c.l.bf16 %v3082
    %v3815 = vunpack.c.h.bf16 %v3082
    %v3816 = vunpack.c.l.bf16 %v3083
    %v3817 = vunpack.c.h.bf16 %v3083
    %v3818 = vunpack.c.l.bf16 %v3084
    %v3819 = vunpack.c.l.bf16 %v3085
    %v3820 = vunpack.c.h.bf16 %v3085
    %v3821 = vunpack.c.l.bf16 %v3086
    %v3822 = vunpack.c.h.bf16 %v3086
    %v3823 = vunpack.c.l.bf16 %v3087
    %v3824 = vunpack.c.h.bf16 %v3087
    %v3825 = vunpack.c.l.bf16 %v3088
    %v3826 = vunpack.c.l.bf16 %v3089
    %v3827 = vunpack.c.h.bf16 %v3089
    %v3828 = vunpack.c.l.bf16 %v3090
    %v3829 = vunpack.c.h.bf16 %v3090
    %v3830 = vunpack.c.l.bf16 %v3091
    %v3831 = vunpack.c.h.bf16 %v3091
    %v3832 = vunpack.c.l.bf16 %v3092
    %v3833 = vunpack.c.l.bf16 %v3093
    %v3834 = vunpack.c.h.bf16 %v3093
    %v3835 = vunpack.c.l.bf16 %v3094
    %v3836 = vunpack.c.h.bf16 %v3094
    %v3837 = vunpack.c.l.bf16 %v3095
    %v3838 = vunpack.c.h.bf16 %v3095
    %v3839 = vunpack.c.l.bf16 %v3096
    %v3840 = vunpack.c.l.bf16 %v3097
    %v3841 = vunpack.c.h.bf16 %v3097
    %v3842 = vunpack.c.l.bf16 %v3098
    %v3843 = vunpack.c.h.bf16 %v3098
    %v3844 = vunpack.c.l.bf16 %v3099
    %v3845 = vunpack.c.h.bf16 %v3099
    %v3846 = vunpack.c.l.bf16 %v3100
    %v3847 = vunpack.c.l.bf16 %v3101
    %v3848 = vunpack.c.h.bf16 %v3101
    %v3849 = vunpack.c.l.bf16 %v3102
    %v3850 = vunpack.c.h.bf16 %v3102
    %v3851 = vunpack.c.l.bf16 %v3103
    %v3852 = vunpack.c.h.bf16 %v3103
    %v3853 = vunpack.c.l.bf16 %v3104
    %v3854 = vunpack.c.l.bf16 %v3105
    %v3855 = vunpack.c.h.bf16 %v3105
    %v3856 = vunpack.c.l.bf16 %v3106
    %v3857 = vunpack.c.h.bf16 %v3106
    %v3858 = vunpack.c.l.bf16 %v3107
    %v3859 = vunpack.c.h.bf16 %v3107
    %v3860 = vunpack.c.l.bf16 %v3108
    %v3861 = vunpack.c.l.bf16 %v3109
    %v3862 = vunpack.c.h.bf16 %v3109
    %v3863 = vunpack.c.l.bf16 %v3110
    %v3864 = vunpack.c.h.bf16 %v3110
    %v3865 = vunpack.c.l.bf16 %v3111
    %v3866 = vunpack.c.h.bf16 %v3111
    %v3867 = vunpack.c.l.bf16 %v3112
    %v3868 = vunpack.c.l.bf16 %v3113
    %v3869 = vunpack.c.h.bf16 %v3113
    %v3870 = vunpack.c.l.bf16 %v3114
    %v3871 = vunpack.c.h.bf16 %v3114
    %v3872 = vunpack.c.l.bf16 %v3115
    %v3873 = vunpack.c.h.bf16 %v3115
    %v3874 = vunpack.c.l.bf16 %v3116
    %v3875 = vunpack.c.l.bf16 %v3117
    %v3876 = vunpack.c.h.bf16 %v3117
    %v3877 = vunpack.c.l.bf16 %v3118
    %v3878 = vunpack.c.h.bf16 %v3118
    %v3879 = vunpack.c.l.bf16 %v3119
    %v3880 = vunpack.c.h.bf16 %v3119
    %v3881 = vunpack.c.l.bf16 %v3120
    %v3882 = vunpack.c.l.bf16 %v3121
    %v3883 = vunpack.c.h.bf16 %v3121
    %v3884 = vunpack.c.l.bf16 %v3122
    %v3885 = vunpack.c.h.bf16 %v3122
    %v3886 = vunpack.c.l.bf16 %v3123
    %v3887 = vunpack.c.h.bf16 %v3123
    %v3888 = vunpack.c.l.bf16 %v3124
    %v3889 = vunpack.c.l.bf16 %v3125
    %v3890 = vunpack.c.h.bf16 %v3125
    %v3891 = vunpack.c.l.bf16 %v3126
    %v3892 = vunpack.c.h.bf16 %v3126
    %v3893 = vunpack.c.l.bf16 %v3127
    %v3894 = vunpack.c.h.bf16 %v3127
    %v3895 = vunpack.c.l.bf16 %v3128
    %v3896 = vunpack.c.l.bf16 %v3129
    %v3897 = vunpack.c.h.bf16 %v3129
    %v3898 = vunpack.c.l.bf16 %v3130
    %v3899 = vunpack.c.h.bf16 %v3130
    %v3900 = vunpack.c.l.bf16 %v3131
    %v3901 = vunpack.c.h.bf16 %v3131
    %v3902 = vunpack.c.l.bf16 %v3132
    %v3903 = vunpack.c.l.bf16 %v3133
    %v3904 = vunpack.c.h.bf16 %v3133
    %v3905 = vunpack.c.l.bf16 %v3134
    %v3906 = vunpack.c.h.bf16 %v3134
    %v3907 = vunpack.c.l.bf16 %v3135
    %v3908 = vunpack.c.h.bf16 %v3135
    %v3909 = vunpack.c.l.bf16 %v3136
    %v3910 = vunpack.c.l.bf16 %v3137
    %v3911 = vunpack.c.h.bf16 %v3137
    %v3912 = vunpack.c.l.bf16 %v3138
    %v3913 = vunpack.c.h.bf16 %v3138
    %v3914 = vunpack.c.l.bf16 %v3139
    %v3915 = vunpack.c.h.bf16 %v3139
    %v3916 = vunpack.c.l.bf16 %v3140
    %v3917 = vunpack.c.l.bf16 %v3141
    %v3918 = vunpack.c.h.bf16 %v3141
    %v3919 = vunpack.c.l.bf16 %v3142
    %v3920 = vunpack.c.h.bf16 %v3142
    %v3921 = vunpack.c.l.bf16 %v3143
    %v3922 = vunpack.c.h.bf16 %v3143
    %v3923 = vunpack.c.l.bf16 %v3144
    %v3924 = vunpack.c.l.bf16 %v3145
    %v3925 = vunpack.c.h.bf16 %v3145
    %v3926 = vunpack.c.l.bf16 %v3146
    %v3927 = vunpack.c.h.bf16 %v3146
    %v3928 = vunpack.c.l.bf16 %v3147
    %v3929 = vunpack.c.h.bf16 %v3147
    %v3930 = vunpack.c.l.bf16 %v3148
    %v3931 = vunpack.c.l.bf16 %v3149
    %v3932 = vunpack.c.h.bf16 %v3149
    %v3933 = vunpack.c.l.bf16 %v3150
    %v3934 = vunpack.c.h.bf16 %v3150
    %v3935 = vunpack.c.l.bf16 %v3151
    %v3936 = vunpack.c.h.bf16 %v3151
    %v3937 = vunpack.c.l.bf16 %v3152
    %v3938 = vunpack.c.l.bf16 %v3153
    %v3939 = vunpack.c.h.bf16 %v3153
    %v3940 = vunpack.c.l.bf16 %v3154
    %v3941 = vunpack.c.h.bf16 %v3154
    %v3942 = vunpack.c.l.bf16 %v3155
    %v3943 = vunpack.c.h.bf16 %v3155
    %v3944 = vunpack.c.l.bf16 %v3156
    %v3945 = vunpack.c.l.bf16 %v3157
    %v3946 = vunpack.c.h.bf16 %v3157
    %v3947 = vunpack.c.l.bf16 %v3158
    %v3948 = vunpack.c.h.bf16 %v3158
    %v3949 = vunpack.c.l.bf16 %v3159
    %v3950 = vunpack.c.h.bf16 %v3159
    %v3951 = vunpack.c.l.bf16 %v3160
    %v3952 = vunpack.c.l.bf16 %v3161
    %v3953 = vunpack.c.h.bf16 %v3161
    %v3954 = vunpack.c.l.bf16 %v3162
    %v3955 = vunpack.c.h.bf16 %v3162
    %v3956 = vunpack.c.l.bf16 %v3163
    %v3957 = vunpack.c.h.bf16 %v3163
    %v3958 = vunpack.c.l.bf16 %v3164
    %v3959 = vunpack.c.l.bf16 %v3165
    %v3960 = vunpack.c.h.bf16 %v3165
    %v3961 = vunpack.c.l.bf16 %v3166
    %v3962 = vunpack.c.h.bf16 %v3166
    %v3963 = vunpack.c.l.bf16 %v3167
    %v3964 = vunpack.c.h.bf16 %v3167
    %v3965 = vunpack.c.l.bf16 %v3168
    %v3966 = vunpack.c.l.bf16 %v3169
    %v3967 = vunpack.c.h.bf16 %v3169
    %v3968 = vunpack.c.l.bf16 %v3170
    %v3969 = vunpack.c.h.bf16 %v3170
    %v3970 = vunpack.c.l.bf16 %v3171
    %v3971 = vunpack.c.h.bf16 %v3171
    %v3972 = vunpack.c.l.bf16 %v3172
    %v3973 = vunpack.c.l.bf16 %v3173
    %v3974 = vunpack.c.h.bf16 %v3173
    %v3975 = vunpack.c.l.bf16 %v3174
    %v3976 = vunpack.c.h.bf16 %v3174
    %v3977 = vunpack.c.l.bf16 %v3175
    %v3978 = vunpack.c.h.bf16 %v3175
    %v3979 = vunpack.c.l.bf16 %v3176
    %v3980 = vunpack.c.l.bf16 %v3177
    %v3981 = vunpack.c.h.bf16 %v3177
    %v3982 = vunpack.c.l.bf16 %v3178
    %v3983 = vunpack.c.h.bf16 %v3178
    %v3984 = vunpack.c.l.bf16 %v3179
    %v3985 = vunpack.c.h.bf16 %v3179
    %v3986 = vunpack.c.l.bf16 %v3180
    %v3987 = vunpack.c.l.bf16 %v3181
    %v3988 = vunpack.c.h.bf16 %v3181
    %v3989 = vunpack.c.l.bf16 %v3182
    %v3990 = vunpack.c.h.bf16 %v3182
    %v3991 = vunpack.c.l.bf16 %v3183
    %v3992 = vunpack.c.h.bf16 %v3183
    %v3993 = vunpack.c.l.bf16 %v3184
    %v3994 = vunpack.c.l.bf16 %v3185
    %v3995 = vunpack.c.h.bf16 %v3185
    %v3996 = vunpack.c.l.bf16 %v3186
    %v3997 = vunpack.c.h.bf16 %v3186
    %v3998 = vunpack.c.l.bf16 %v3187
    %v3999 = vunpack.c.h.bf16 %v3187
    %v4000 = vunpack.c.l.bf16 %v3188
    %v4001 = vunpack.c.l.bf16 %v3189
    %v4002 = vunpack.c.h.bf16 %v3189
    %v4003 = vunpack.c.l.bf16 %v3190
    %v4004 = vunpack.c.h.bf16 %v3190
    %v4005 = vunpack.c.l.bf16 %v3191
    %v4006 = vunpack.c.h.bf16 %v3191
    %v4007 = vunpack.c.l.bf16 %v3192
    %v4008 = vunpack.c.l.bf16 %v3193
    %v4009 = vunpack.c.h.bf16 %v3193
    %v4010 = vunpack.c.l.bf16 %v3194
    %v4011 = vunpack.c.h.bf16 %v3194
    %v4012 = vunpack.c.l.bf16 %v3195
    %v4013 = vunpack.c.h.bf16 %v3195
    %v4014 = vunpack.c.l.bf16 %v3196
    %v4015 = vunpack.c.l.bf16 %v3197
    %v4016 = vunpack.c.h.bf16 %v3197
    %v4017 = vunpack.c.l.bf16 %v3198
    %v4018 = vunpack.c.h.bf16 %v3198
    %v4019 = vunpack.c.l.bf16 %v3199
    %v4020 = vunpack.c.h.bf16 %v3199
    %v4021 = vunpack.c.l.bf16 %v3200
    %v4022 = vunpack.c.l.bf16 %v3201
    %v4023 = vunpack.c.h.bf16 %v3201
    %v4024 = vunpack.c.l.bf16 %v3202
    %v4025 = vunpack.c.h.bf16 %v3202
    %v4026 = vunpack.c.l.bf16 %v3203
    %v4027 = vunpack.c.h.bf16 %v3203
    %v4028 = vunpack.c.l.bf16 %v3204
    %v4029 = vunpack.c.l.bf16 %v3205
    %v4030 = vunpack.c.h.bf16 %v3205
    %v4031 = vunpack.c.l.bf16 %v3206
    %v4032 = vunpack.c.h.bf16 %v3206
    %v4033 = vunpack.c.l.bf16 %v3207
    %v4034 = vunpack.c.h.bf16 %v3207
    %v4035 = vunpack.c.l.bf16 %v3208
    %v4036 = vunpack.c.l.bf16 %v3209
    %v4037 = vunpack.c.h.bf16 %v3209
    %v4038 = vunpack.c.l.bf16 %v3210
    %v4039 = vunpack.c.h.bf16 %v3210
    %v4040 = vunpack.c.l.bf16 %v3211
    %v4041 = vunpack.c.h.bf16 %v3211
    %v4042 = vunpack.c.l.bf16 %v3212
    %v4043 = vunpack.c.l.bf16 %v3213
    %v4044 = vunpack.c.h.bf16 %v3213
    %v4045 = vunpack.c.l.bf16 %v3214
    %v4046 = vunpack.c.h.bf16 %v3214
    %v4047 = vunpack.c.l.bf16 %v3215
    %v4048 = vunpack.c.h.bf16 %v3215
    %v4049 = vunpack.c.l.bf16 %v3216
    %v4050 = vunpack.c.l.bf16 %v3217
    %v4051 = vunpack.c.h.bf16 %v3217
    %v4052 = vunpack.c.l.bf16 %v3218
    %v4053 = vunpack.c.h.bf16 %v3218
    %v4054 = vunpack.c.l.bf16 %v3219
    %v4055 = vunpack.c.h.bf16 %v3219
    %v4056 = vunpack.c.l.bf16 %v3220
    %v4057 = vunpack.c.l.bf16 %v3221
    %v4058 = vunpack.c.h.bf16 %v3221
    %v4059 = vunpack.c.l.bf16 %v3222
    %v4060 = vunpack.c.h.bf16 %v3222
    %v4061 = vunpack.c.l.bf16 %v3223
    %v4062 = vunpack.c.h.bf16 %v3223
    %v4063 = vunpack.c.l.bf16 %v3224
    %v4064 = vunpack.c.l.bf16 %v3225
    %v4065 = vunpack.c.h.bf16 %v3225
    %v4066 = vunpack.c.l.bf16 %v3226
    %v4067 = vunpack.c.h.bf16 %v3226
    %v4068 = vunpack.c.l.bf16 %v3227
    %v4069 = vunpack.c.h.bf16 %v3227
    %v4070 = vunpack.c.l.bf16 %v3228
    %v4071 = vunpack.c.l.bf16 %v3229
    %v4072 = vunpack.c.h.bf16 %v3229
    %v4073 = vunpack.c.l.bf16 %v3230
    %v4074 = vunpack.c.h.bf16 %v3230
    %v4075 = vunpack.c.l.bf16 %v3231
    %v4076 = vunpack.c.h.bf16 %v3231
    %v4077 = vunpack.c.l.bf16 %v3232
    %v4078 = vunpack.c.l.bf16 %v3233
    %v4079 = vunpack.c.h.bf16 %v3233
    %v4080 = vunpack.c.l.bf16 %v3234
    %v4081 = vunpack.c.h.bf16 %v3234
    %v4082 = vunpack.c.l.bf16 %v3235
    %v4083 = vunpack.c.h.bf16 %v3235
    %v4084 = vunpack.c.l.bf16 %v3236
    %v4085 = vunpack.c.l.bf16 %v3237
    %v4086 = vunpack.c.h.bf16 %v3237
    %v4087 = vunpack.c.l.bf16 %v3238
    %v4088 = vunpack.c.h.bf16 %v3238
    %v4089 = vunpack.c.l.bf16 %v3239
    %v4090 = vunpack.c.h.bf16 %v3239
    %v4091 = vunpack.c.l.bf16 %v3240
    %v4092 = vunpack.c.l.bf16 %v3241
    %v4093 = vunpack.c.h.bf16 %v3241
    %v4094 = vunpack.c.l.bf16 %v3242
    %v4095 = vunpack.c.h.bf16 %v3242
    %v4096 = vunpack.c.l.bf16 %v3243
    %v4097 = vunpack.c.h.bf16 %v3243
    %v4098 = vunpack.c.l.bf16 %v3244
    %v4099 = vunpack.c.l.bf16 %v3245
    %v4100 = vunpack.c.h.bf16 %v3245
    %v4101 = vunpack.c.l.bf16 %v3246
    %v4102 = vunpack.c.h.bf16 %v3246
    %v4103 = vunpack.c.l.bf16 %v3247
    %v4104 = vunpack.c.h.bf16 %v3247
    %v4105 = vunpack.c.l.bf16 %v3248
    %v4106 = vunpack.c.l.bf16 %v3249
    %v4107 = vunpack.c.h.bf16 %v3249
    %v4108 = vunpack.c.l.bf16 %v3250
    %v4109 = vunpack.c.h.bf16 %v3250
    %v4110 = vunpack.c.l.bf16 %v3251
    %v4111 = vunpack.c.h.bf16 %v3251
    %v4112 = vunpack.c.l.bf16 %v3252
    %v4113 = vunpack.c.l.bf16 %v3253
    %v4114 = vunpack.c.h.bf16 %v3253
    %v4115 = vunpack.c.l.bf16 %v3254
    %v4116 = vunpack.c.h.bf16 %v3254
    %v4117 = vunpack.c.l.bf16 %v3255
    %v4118 = vunpack.c.h.bf16 %v3255
    %v4119 = vunpack.c.l.bf16 %v3256
    %v4120 = vunpack.c.l.bf16 %v3257
    %v4121 = vunpack.c.h.bf16 %v3257
    %v4122 = vunpack.c.l.bf16 %v3258
    %v4123 = vunpack.c.h.bf16 %v3258
    %v4124 = vunpack.c.l.bf16 %v3259
    %v4125 = vunpack.c.h.bf16 %v3259
    %v4126 = vunpack.c.l.bf16 %v3260
    %v4127 = vunpack.c.l.bf16 %v3261
    %v4128 = vunpack.c.h.bf16 %v3261
    %v4129 = vunpack.c.l.bf16 %v3262
    %v4130 = vunpack.c.h.bf16 %v3262
    %v4131 = vunpack.c.l.bf16 %v3263
    %v4132 = vunpack.c.h.bf16 %v3263
    %v4133 = vunpack.c.l.bf16 %v3264
    %v4134 = vunpack.c.l.bf16 %v3265
    %v4135 = vunpack.c.h.bf16 %v3265
    %v4136 = vunpack.c.l.bf16 %v3266
    %v4137 = vunpack.c.h.bf16 %v3266
    %v4138 = vunpack.c.l.bf16 %v3267
    %v4139 = vunpack.c.h.bf16 %v3267
    %v4140 = vunpack.c.l.bf16 %v3268
    %v4141 = vunpack.c.l.bf16 %v3269
    %v4142 = vunpack.c.h.bf16 %v3269
    %v4143 = vunpack.c.l.bf16 %v3270
    %v4144 = vunpack.c.h.bf16 %v3270
    %v4145 = vunpack.c.l.bf16 %v3271
    %v4146 = vunpack.c.h.bf16 %v3271
    %v4147 = vunpack.c.l.bf16 %v3272
    %v4148 = vunpack.c.l.bf16 %v3273
    %v4149 = vunpack.c.h.bf16 %v3273
    %v4150 = vunpack.c.l.bf16 %v3274
    %v4151 = vunpack.c.h.bf16 %v3274
    %v4152 = vunpack.c.l.bf16 %v3275
    %v4153 = vunpack.c.h.bf16 %v3275
    %v4154 = vunpack.c.l.bf16 %v3276
    %v4155 = vunpack.c.l.bf16 %v3277
    %v4156 = vunpack.c.h.bf16 %v3277
    %v4157 = vunpack.c.l.bf16 %v3278
    %v4158 = vunpack.c.h.bf16 %v3278
    %v4159 = vunpack.c.l.bf16 %v3279
    %v4160 = vunpack.c.h.bf16 %v3279
    %v4161 = vunpack.c.l.bf16 %v3280
    %v4162 = vunpack.c.l.bf16 %v3281
    %v4163 = vunpack.c.h.bf16 %v3281
    %v4164 = vunpack.c.l.bf16 %v3282
    %v4165 = vunpack.c.h.bf16 %v3282
    %v4166 = vunpack.c.l.bf16 %v3283
    %v4167 = vunpack.c.h.bf16 %v3283
    %v4168 = vunpack.c.l.bf16 %v3284
    %v4169 = vunpack.c.l.bf16 %v3285
    %v4170 = vunpack.c.h.bf16 %v3285
    %v4171 = vunpack.c.l.bf16 %v3286
    %v4172 = vunpack.c.h.bf16 %v3286
    %v4173 = vunpack.c.l.bf16 %v3287
    %v4174 = vunpack.c.h.bf16 %v3287
    %v4175 = vunpack.c.l.bf16 %v3288
    %v4176 = vunpack.c.l.bf16 %v3289
    %v4177 = vunpack.c.h.bf16 %v3289
    %v4178 = vunpack.c.l.bf16 %v3290
    %v4179 = vunpack.c.h.bf16 %v3290
    %v4180 = vunpack.c.l.bf16 %v3291
    %v4181 = vunpack.c.h.bf16 %v3291
    %v4182 = vunpack.c.l.bf16 %v3292
    %v4183 = vunpack.c.l.bf16 %v3293
    %v4184 = vunpack.c.h.bf16 %v3293
    %v4185 = vunpack.c.l.bf16 %v3294
    %v4186 = vunpack.c.h.bf16 %v3294
    %v4187 = vunpack.c.l.bf16 %v3295
    %v4188 = vunpack.c.h.bf16 %v3295
    %v4189 = vunpack.c.l.bf16 %v3296
    %v4190 = vunpack.c.l.bf16 %v3297
    %v4191 = vunpack.c.h.bf16 %v3297
    %v4192 = vunpack.c.l.bf16 %v3298
    %v4193 = vunpack.c.h.bf16 %v3298
    %v4194 = vunpack.c.l.bf16 %v3299
    %v4195 = vunpack.c.h.bf16 %v3299
    %v4196 = vunpack.c.l.bf16 %v3300
    %v4197 = vld [vmem:[#allocation31] sm:$0xff]
    %v4199 = vlaneseq
    %v4200 = vshrl.u32 %v4199, 7
    %v4201 = vsub.s32 0, %v4200
    %v4202 = vrot.slane %v4197, %v4201
    %v4203 = vlaneseq
    %v4204 = vshrl.u32 %v4203, 7
    %v4205 = vsub.s32 1, %v4204
    %v4206 = vrot.slane %v4197, %v4205
    %v4207 = vlaneseq
    %v4208 = vshrl.u32 %v4207, 7
    %v4209 = vsub.s32 2, %v4208
    %v4210 = vrot.slane %v4197, %v4209
    %v4211 = vlaneseq
    %v4212 = vshrl.u32 %v4211, 7
    %v4213 = vsub.s32 3, %v4212
    %v4214 = vrot.slane %v4197, %v4213
    %v4215 = vlaneseq
    %v4216 = vshrl.u32 %v4215, 7
    %v4217 = vsub.s32 4, %v4216
    %v4218 = vrot.slane %v4197, %v4217
    %v4219 = vlaneseq
    %v4220 = vshrl.u32 %v4219, 7
    %v4221 = vsub.s32 5, %v4220
    %v4222 = vrot.slane %v4197, %v4221
    %v4223 = vlaneseq
    %v4224 = vshrl.u32 %v4223, 7
    %v4225 = vsub.s32 6, %v4224
    %v4226 = vrot.slane %v4197, %v4225
    %4234 = vmatprep.subr.mxu0 %v3302
    %4235 = vmatpush1.msra.mxu0 %v3301
    %4236 = vmatprep.subr.mxu0 %v3309
    %4237 = vmatpush1.msra.mxu0 %v3308
    %4238 = vmatprep.subr.mxu0 %v3316
    %4239 = vmatpush1.msra.mxu0 %v3315
    %4240 = vmatprep.subr.mxu0 %v3323
    %4241 = vmatpush1.msra.mxu0 %v3322
    %4242 = vmatprep.subr.mxu0 %v3330
    %4243 = vmatpush1.msra.mxu0 %v3329
    %4244 = vmatprep.subr.mxu0 %v3337
    %4245 = vmatpush1.msra.mxu0 %v3336
    %4246 = vmatprep.subr.mxu0 %v3344
    %4247 = vmatpush1.msra.mxu0 %v3343
    %4248 = vmatprep.subr.mxu0 %v3351
    %4249 = vmatpush1.msra.mxu0 %v3350
    %4250 = vmatprep.subr.mxu0 %v3358
    %4251 = vmatpush1.msra.mxu0 %v3357
    %4252 = vmatprep.subr.mxu0 %v3365
    %4253 = vmatpush1.msra.mxu0 %v3364
    %4254 = vmatprep.subr.mxu0 %v3372
    %4255 = vmatpush1.msra.mxu0 %v3371
    %4256 = vmatprep.subr.mxu0 %v3379
    %4257 = vmatpush1.msra.mxu0 %v3378
    %4258 = vmatprep.subr.mxu0 %v3386
    %4259 = vmatpush1.msra.mxu0 %v3385
    %4260 = vmatprep.subr.mxu0 %v3393
    %4261 = vmatpush1.msra.mxu0 %v3392
    %4262 = vmatprep.subr.mxu0 %v3400
    %4263 = vmatpush1.msra.mxu0 %v3399
    %4264 = vmatprep.subr.mxu0 %v3407
    %4265 = vmatpush1.msra.mxu0 %v3406
    %4266 = vmatprep.subr.mxu0 %v3414
    %4267 = vmatpush1.msra.mxu0 %v3413
    %4268 = vmatprep.subr.mxu0 %v3421
    %4269 = vmatpush1.msra.mxu0 %v3420
    %4270 = vmatprep.subr.mxu0 %v3428
    %4271 = vmatpush1.msra.mxu0 %v3427
    %4272 = vmatprep.subr.mxu0 %v3435
    %4273 = vmatpush1.msra.mxu0 %v3434
    %4274 = vmatprep.subr.mxu0 %v3442
    %4275 = vmatpush1.msra.mxu0 %v3441
    %4276 = vmatprep.subr.mxu0 %v3449
    %4277 = vmatpush1.msra.mxu0 %v3448
    %4278 = vmatprep.subr.mxu0 %v3456
    %4279 = vmatpush1.msra.mxu0 %v3455
    %4280 = vmatprep.subr.mxu0 %v3463
    %4281 = vmatpush1.msra.mxu0 %v3462
    %4282 = vmatprep.subr.mxu0 %v3470
    %4283 = vmatpush1.msra.mxu0 %v3469
    %4284 = vmatprep.subr.mxu0 %v3477
    %4285 = vmatpush1.msra.mxu0 %v3476
    %4286 = vmatprep.subr.mxu0 %v3484
    %4287 = vmatpush1.msra.mxu0 %v3483
    %4288 = vmatprep.subr.mxu0 %v3491
    %4289 = vmatpush1.msra.mxu0 %v3490
    %4290 = vmatprep.subr.mxu0 %v3498
    %4291 = vmatpush1.msra.mxu0 %v3497
    %4292 = vmatprep.subr.mxu0 %v3505
    %4293 = vmatpush1.msra.mxu0 %v3504
    %4294 = vmatprep.subr.mxu0 %v3512
    %4295 = vmatpush1.msra.mxu0 %v3511
    %4296 = vmatprep.subr.mxu0 %v3519
    %4297 = vmatpush1.msra.mxu0 %v3518
    %4298 = vmatprep.mubr.f32.mxu0 %v2782
    %4299 = vmatmul.mubr.f32.gmra.mrb[0].mxu0 %v2781
    %v4300 = vpop.f32.mrb[0].mxu0
    %v4301 = vadd.f32 %v4202, %v4300
    %v4302 = vpop.f32.mrb[0].mxu0
    %v4303 = vadd.f32 %v4206, %v4302
    %4304 = vdwg.mxu0
    %4305 = vmatprep.subr.mxu0 %v3526
    %4306 = vmatpush1.msra.mxu0 %v3525
    %4307 = vmatprep.subr.mxu0 %v3533
    %4308 = vmatpush1.msra.mxu0 %v3532
    %4309 = vmatprep.subr.mxu0 %v3540
    %4310 = vmatpush1.msra.mxu0 %v3539
    %4311 = vmatprep.subr.mxu0 %v3547
    %4312 = vmatpush1.msra.mxu0 %v3546
    %4313 = vmatprep.subr.mxu0 %v3554
    %4314 = vmatpush1.msra.mxu0 %v3553
    %4315 = vmatprep.subr.mxu0 %v3561
    %4316 = vmatpush1.msra.mxu0 %v3560
    %4317 = vmatprep.subr.mxu0 %v3568
    %4318 = vmatpush1.msra.mxu0 %v3567
    %4319 = vmatprep.subr.mxu0 %v3575
    %4320 = vmatpush1.msra.mxu0 %v3574
    %4321 = vmatprep.subr.mxu0 %v3582
    %4322 = vmatpush1.msra.mxu0 %v3581
    %4323 = vmatprep.subr.mxu0 %v3589
    %4324 = vmatpush1.msra.mxu0 %v3588
    %4325 = vmatprep.subr.mxu0 %v3596
    %4326 = vmatpush1.msra.mxu0 %v3595
    %4327 = vmatprep.subr.mxu0 %v3603
    %4328 = vmatpush1.msra.mxu0 %v3602
    %4329 = vmatprep.subr.mxu0 %v3610
    %4330 = vmatpush1.msra.mxu0 %v3609
    %4331 = vmatprep.subr.mxu0 %v3617
    %4332 = vmatpush1.msra.mxu0 %v3616
    %4333 = vmatprep.subr.mxu0 %v3624
    %4334 = vmatpush1.msra.mxu0 %v3623
    %4335 = vmatprep.subr.mxu0 %v3631
    %4336 = vmatpush1.msra.mxu0 %v3630
    %4337 = vmatprep.subr.mxu0 %v3638
    %4338 = vmatpush1.msra.mxu0 %v3637
    %4339 = vmatprep.subr.mxu0 %v3645
    %4340 = vmatpush1.msra.mxu0 %v3644
    %4341 = vmatprep.subr.mxu0 %v3652
    %4342 = vmatpush1.msra.mxu0 %v3651
    %4343 = vmatprep.subr.mxu0 %v3659
    %4344 = vmatpush1.msra.mxu0 %v3658
    %4345 = vmatprep.subr.mxu0 %v3666
    %4346 = vmatpush1.msra.mxu0 %v3665
    %4347 = vmatprep.subr.mxu0 %v3673
    %4348 = vmatpush1.msra.mxu0 %v3672
    %4349 = vmatprep.subr.mxu0 %v3680
    %4350 = vmatpush1.msra.mxu0 %v3679
    %4351 = vmatprep.subr.mxu0 %v3687
    %4352 = vmatpush1.msra.mxu0 %v3686
    %4353 = vmatprep.subr.mxu0 %v3694
    %4354 = vmatpush1.msra.mxu0 %v3693
    %4355 = vmatprep.subr.mxu0 %v3701
    %4356 = vmatpush1.msra.mxu0 %v3700
    %4357 = vmatprep.subr.mxu0 %v3708
    %4358 = vmatpush1.msra.mxu0 %v3707
    %4359 = vmatprep.subr.mxu0 %v3715
    %4360 = vmatpush1.msra.mxu0 %v3714
    %4361 = vmatprep.subr.mxu0 %v3722
    %4362 = vmatpush1.msra.mxu0 %v3721
    %4363 = vmatprep.subr.mxu0 %v3729
    %4364 = vmatpush1.msra.mxu0 %v3728
    %4365 = vmatprep.subr.mxu0 %v3736
    %4366 = vmatpush1.msra.mxu0 %v3735
    %4367 = vmatprep.subr.mxu0 %v3743
    %4368 = vmatpush1.msra.mxu0 %v3742
    %4369 = vmatprep.mubr.f32.mxu0 %v2784
    %4370 = vmatmul.mubr.f32.gmra.mrb[0].mxu0 %v2783
    %v4371 = vpop.f32.mrb[0].mxu0
    %v4372 = vadd.f32 %v4301, %v4371
    %v4373 = vpop.f32.mrb[0].mxu0
    %v4374 = vadd.f32 %v4303, %v4373
    %4375 = vdwg.mxu0
    %4376 = vmatprep.subr.mxu0 %v3750
    %4377 = vmatpush1.msra.mxu0 %v3749
    %4378 = vmatprep.subr.mxu0 %v3757
    %4379 = vmatpush1.msra.mxu0 %v3756
    %4380 = vmatprep.subr.mxu0 %v3764
    %4381 = vmatpush1.msra.mxu0 %v3763
    %4382 = vmatprep.subr.mxu0 %v3771
    %4383 = vmatpush1.msra.mxu0 %v3770
    %4384 = vmatprep.subr.mxu0 %v3778
    %4385 = vmatpush1.msra.mxu0 %v3777
    %4386 = vmatprep.subr.mxu0 %v3785
    %4387 = vmatpush1.msra.mxu0 %v3784
    %4388 = vmatprep.subr.mxu0 %v3792
    %4389 = vmatpush1.msra.mxu0 %v3791
    %4390 = vmatprep.subr.mxu0 %v3799
    %4391 = vmatpush1.msra.mxu0 %v3798
    %4392 = vmatprep.subr.mxu0 %v3806
    %4393 = vmatpush1.msra.mxu0 %v3805
    %4394 = vmatprep.subr.mxu0 %v3813
    %4395 = vmatpush1.msra.mxu0 %v3812
    %4396 = vmatprep.subr.mxu0 %v3820
    %4397 = vmatpush1.msra.mxu0 %v3819
    %4398 = vmatprep.subr.mxu0 %v3827
    %4399 = vmatpush1.msra.mxu0 %v3826
    %4400 = vmatprep.subr.mxu0 %v3834
    %4401 = vmatpush1.msra.mxu0 %v3833
    %4402 = vmatprep.subr.mxu0 %v3841
    %4403 = vmatpush1.msra.mxu0 %v3840
    %4404 = vmatprep.subr.mxu0 %v3848
    %4405 = vmatpush1.msra.mxu0 %v3847
    %4406 = vmatprep.subr.mxu0 %v3855
    %4407 = vmatpush1.msra.mxu0 %v3854
    %4408 = vmatprep.subr.mxu0 %v3862
    %4409 = vmatpush1.msra.mxu0 %v3861
    %4410 = vmatprep.subr.mxu0 %v3869
    %4411 = vmatpush1.msra.mxu0 %v3868
    %4412 = vmatprep.subr.mxu0 %v3876
    %4413 = vmatpush1.msra.mxu0 %v3875
    %4414 = vmatprep.subr.mxu0 %v3883
    %4415 = vmatpush1.msra.mxu0 %v3882
    %4416 = vmatprep.subr.mxu0 %v3890
    %4417 = vmatpush1.msra.mxu0 %v3889
    %4418 = vmatprep.subr.mxu0 %v3897
    %4419 = vmatpush1.msra.mxu0 %v3896
    %4420 = vmatprep.subr.mxu0 %v3904
    %4421 = vmatpush1.msra.mxu0 %v3903
    %4422 = vmatprep.subr.mxu0 %v3911
    %4423 = vmatpush1.msra.mxu0 %v3910
    %4424 = vmatprep.subr.mxu0 %v3918
    %4425 = vmatpush1.msra.mxu0 %v3917
    %4426 = vmatprep.subr.mxu0 %v3925
    %4427 = vmatpush1.msra.mxu0 %v3924
    %4428 = vmatprep.subr.mxu0 %v3932
    %4429 = vmatpush1.msra.mxu0 %v3931
    %4430 = vmatprep.subr.mxu0 %v3939
    %4431 = vmatpush1.msra.mxu0 %v3938
    %4432 = vmatprep.subr.mxu0 %v3946
    %4433 = vmatpush1.msra.mxu0 %v3945
    %4434 = vmatprep.subr.mxu0 %v3953
    %4435 = vmatpush1.msra.mxu0 %v3952
    %4436 = vmatprep.subr.mxu0 %v3960
    %4437 = vmatpush1.msra.mxu0 %v3959
    %4438 = vmatprep.subr.mxu0 %v3967
    %4439 = vmatpush1.msra.mxu0 %v3966
    %4440 = vmatprep.mubr.f32.mxu0 %v2786
    %4441 = vmatmul.mubr.f32.gmra.mrb[0].mxu0 %v2785
    %v4442 = vpop.f32.mrb[0].mxu0
    %v4443 = vadd.f32 %v4372, %v4442
    %v4444 = vpop.f32.mrb[0].mxu0
    %v4445 = vadd.f32 %v4374, %v4444
    %4446 = vdwg.mxu0
    %4447 = vmatprep.subr.mxu0 %v3974
    %4448 = vmatpush1.msra.mxu0 %v3973
    %4449 = vmatprep.subr.mxu0 %v3981
    %4450 = vmatpush1.msra.mxu0 %v3980
    %4451 = vmatprep.subr.mxu0 %v3988
    %4452 = vmatpush1.msra.mxu0 %v3987
    %4453 = vmatprep.subr.mxu0 %v3995
    %4454 = vmatpush1.msra.mxu0 %v3994
    %4455 = vmatprep.subr.mxu0 %v4002
    %4456 = vmatpush1.msra.mxu0 %v4001
    %4457 = vmatprep.subr.mxu0 %v4009
    %4458 = vmatpush1.msra.mxu0 %v4008
    %4459 = vmatprep.subr.mxu0 %v4016
    %4460 = vmatpush1.msra.mxu0 %v4015
    %4461 = vmatprep.subr.mxu0 %v4023
    %4462 = vmatpush1.msra.mxu0 %v4022
    %4463 = vmatprep.subr.mxu0 %v4030
    %4464 = vmatpush1.msra.mxu0 %v4029
    %4465 = vmatprep.subr.mxu0 %v4037
    %4466 = vmatpush1.msra.mxu0 %v4036
    %4467 = vmatprep.subr.mxu0 %v4044
    %4468 = vmatpush1.msra.mxu0 %v4043
    %4469 = vmatprep.subr.mxu0 %v4051
    %4470 = vmatpush1.msra.mxu0 %v4050
    %4471 = vmatprep.subr.mxu0 %v4058
    %4472 = vmatpush1.msra.mxu0 %v4057
    %4473 = vmatprep.subr.mxu0 %v4065
    %4474 = vmatpush1.msra.mxu0 %v4064
    %4475 = vmatprep.subr.mxu0 %v4072
    %4476 = vmatpush1.msra.mxu0 %v4071
    %4477 = vmatprep.subr.mxu0 %v4079
    %4478 = vmatpush1.msra.mxu0 %v4078
    %4479 = vmatprep.subr.mxu0 %v4086
    %4480 = vmatpush1.msra.mxu0 %v4085
    %4481 = vmatprep.subr.mxu0 %v4093
    %4482 = vmatpush1.msra.mxu0 %v4092
    %4483 = vmatprep.subr.mxu0 %v4100
    %4484 = vmatpush1.msra.mxu0 %v4099
    %4485 = vmatprep.subr.mxu0 %v4107
    %4486 = vmatpush1.msra.mxu0 %v4106
    %4487 = vmatprep.subr.mxu0 %v4114
    %4488 = vmatpush1.msra.mxu0 %v4113
    %4489 = vmatprep.subr.mxu0 %v4121
    %4490 = vmatpush1.msra.mxu0 %v4120
    %4491 = vmatprep.subr.mxu0 %v4128
    %4492 = vmatpush1.msra.mxu0 %v4127
    %4493 = vmatprep.subr.mxu0 %v4135
    %4494 = vmatpush1.msra.mxu0 %v4134
    %4495 = vmatprep.subr.mxu0 %v4142
    %4496 = vmatpush1.msra.mxu0 %v4141
    %4497 = vmatprep.subr.mxu0 %v4149
    %4498 = vmatpush1.msra.mxu0 %v4148
    %4499 = vmatprep.subr.mxu0 %v4156
    %4500 = vmatpush1.msra.mxu0 %v4155
    %4501 = vmatprep.subr.mxu0 %v4163
    %4502 = vmatpush1.msra.mxu0 %v4162
    %4503 = vmatprep.subr.mxu0 %v4170
    %4504 = vmatpush1.msra.mxu0 %v4169
    %4505 = vmatprep.subr.mxu0 %v4177
    %4506 = vmatpush1.msra.mxu0 %v4176
    %4507 = vmatprep.subr.mxu0 %v4184
    %4508 = vmatpush1.msra.mxu0 %v4183
    %4509 = vmatprep.subr.mxu0 %v4191
    %4510 = vmatpush1.msra.mxu0 %v4190
    %4511 = vmatprep.mubr.f32.mxu0 %v2788
    %4512 = vmatmul.mubr.f32.gmra.mrb[0].mxu0 %v2787
    %v4513 = vpop.f32.mrb[0].mxu0
    %v4514 = vadd.f32 %v4443, %v4513
    %v4515 = vpop.f32.mrb[0].mxu0
    %v4516 = vadd.f32 %v4445, %v4515
    %4517 = vdwg.mxu0
    %4518 = vmatprep.subr.mxu0 %v3304
    %4519 = vmatpush1.msra.mxu0 %v3303
    %4520 = vmatprep.subr.mxu0 %v3311
    %4521 = vmatpush1.msra.mxu0 %v3310
    %4522 = vmatprep.subr.mxu0 %v3318
    %4523 = vmatpush1.msra.mxu0 %v3317
    %4524 = vmatprep.subr.mxu0 %v3325
    %4525 = vmatpush1.msra.mxu0 %v3324
    %4526 = vmatprep.subr.mxu0 %v3332
    %4527 = vmatpush1.msra.mxu0 %v3331
    %4528 = vmatprep.subr.mxu0 %v3339
    %4529 = vmatpush1.msra.mxu0 %v3338
    %4530 = vmatprep.subr.mxu0 %v3346
    %4531 = vmatpush1.msra.mxu0 %v3345
    %4532 = vmatprep.subr.mxu0 %v3353
    %4533 = vmatpush1.msra.mxu0 %v3352
    %4534 = vmatprep.subr.mxu0 %v3360
    %4535 = vmatpush1.msra.mxu0 %v3359
    %4536 = vmatprep.subr.mxu0 %v3367
    %4537 = vmatpush1.msra.mxu0 %v3366
    %4538 = vmatprep.subr.mxu0 %v3374
    %4539 = vmatpush1.msra.mxu0 %v3373
    %4540 = vmatprep.subr.mxu0 %v3381
    %4541 = vmatpush1.msra.mxu0 %v3380
    %4542 = vmatprep.subr.mxu0 %v3388
    %4543 = vmatpush1.msra.mxu0 %v3387
    %4544 = vmatprep.subr.mxu0 %v3395
    %4545 = vmatpush1.msra.mxu0 %v3394
    %4546 = vmatprep.subr.mxu0 %v3402
    %4547 = vmatpush1.msra.mxu0 %v3401
    %4548 = vmatprep.subr.mxu0 %v3409
    %4549 = vmatpush1.msra.mxu0 %v3408
    %4550 = vmatprep.subr.mxu0 %v3416
    %4551 = vmatpush1.msra.mxu0 %v3415
    %4552 = vmatprep.subr.mxu0 %v3423
    %4553 = vmatpush1.msra.mxu0 %v3422
    %4554 = vmatprep.subr.mxu0 %v3430
    %4555 = vmatpush1.msra.mxu0 %v3429
    %4556 = vmatprep.subr.mxu0 %v3437
    %4557 = vmatpush1.msra.mxu0 %v3436
    %4558 = vmatprep.subr.mxu0 %v3444
    %4559 = vmatpush1.msra.mxu0 %v3443
    %4560 = vmatprep.subr.mxu0 %v3451
    %4561 = vmatpush1.msra.mxu0 %v3450
    %4562 = vmatprep.subr.mxu0 %v3458
    %4563 = vmatpush1.msra.mxu0 %v3457
    %4564 = vmatprep.subr.mxu0 %v3465
    %4565 = vmatpush1.msra.mxu0 %v3464
    %4566 = vmatprep.subr.mxu0 %v3472
    %4567 = vmatpush1.msra.mxu0 %v3471
    %4568 = vmatprep.subr.mxu0 %v3479
    %4569 = vmatpush1.msra.mxu0 %v3478
    %4570 = vmatprep.subr.mxu0 %v3486
    %4571 = vmatpush1.msra.mxu0 %v3485
    %4572 = vmatprep.subr.mxu0 %v3493
    %4573 = vmatpush1.msra.mxu0 %v3492
    %4574 = vmatprep.subr.mxu0 %v3500
    %4575 = vmatpush1.msra.mxu0 %v3499
    %4576 = vmatprep.subr.mxu0 %v3507
    %4577 = vmatpush1.msra.mxu0 %v3506
    %4578 = vmatprep.subr.mxu0 %v3514
    %4579 = vmatpush1.msra.mxu0 %v3513
    %4580 = vmatprep.subr.mxu0 %v3521
    %4581 = vmatpush1.msra.mxu0 %v3520
    %4582 = vmatprep.mubr.f32.mxu0 %v2782
    %4583 = vmatmul.mubr.f32.gmra.mrb[0].mxu0 %v2781
    %v4584 = vpop.f32.mrb[0].mxu0
    %v4585 = vadd.f32 %v4210, %v4584
    %v4586 = vpop.f32.mrb[0].mxu0
    %v4587 = vadd.f32 %v4214, %v4586
    %4588 = vdwg.mxu0
    %4589 = vmatprep.subr.mxu0 %v3528
    %4590 = vmatpush1.msra.mxu0 %v3527
    %4591 = vmatprep.subr.mxu0 %v3535
    %4592 = vmatpush1.msra.mxu0 %v3534
    %4593 = vmatprep.subr.mxu0 %v3542
    %4594 = vmatpush1.msra.mxu0 %v3541
    %4595 = vmatprep.subr.mxu0 %v3549
    %4596 = vmatpush1.msra.mxu0 %v3548
    %4597 = vmatprep.subr.mxu0 %v3556
    %4598 = vmatpush1.msra.mxu0 %v3555
    %4599 = vmatprep.subr.mxu0 %v3563
    %4600 = vmatpush1.msra.mxu0 %v3562
    %4601 = vmatprep.subr.mxu0 %v3570
    %4602 = vmatpush1.msra.mxu0 %v3569
    %4603 = vmatprep.subr.mxu0 %v3577
    %4604 = vmatpush1.msra.mxu0 %v3576
    %4605 = vmatprep.subr.mxu0 %v3584
    %4606 = vmatpush1.msra.mxu0 %v3583
    %4607 = vmatprep.subr.mxu0 %v3591
    %4608 = vmatpush1.msra.mxu0 %v3590
    %4609 = vmatprep.subr.mxu0 %v3598
    %4610 = vmatpush1.msra.mxu0 %v3597
    %4611 = vmatprep.subr.mxu0 %v3605
    %4612 = vmatpush1.msra.mxu0 %v3604
    %4613 = vmatprep.subr.mxu0 %v3612
    %4614 = vmatpush1.msra.mxu0 %v3611
    %4615 = vmatprep.subr.mxu0 %v3619
    %4616 = vmatpush1.msra.mxu0 %v3618
    %4617 = vmatprep.subr.mxu0 %v3626
    %4618 = vmatpush1.msra.mxu0 %v3625
    %4619 = vmatprep.subr.mxu0 %v3633
    %4620 = vmatpush1.msra.mxu0 %v3632
    %4621 = vmatprep.subr.mxu0 %v3640
    %4622 = vmatpush1.msra.mxu0 %v3639
    %4623 = vmatprep.subr.mxu0 %v3647
    %4624 = vmatpush1.msra.mxu0 %v3646
    %4625 = vmatprep.subr.mxu0 %v3654
    %4626 = vmatpush1.msra.mxu0 %v3653
    %4627 = vmatprep.subr.mxu0 %v3661
    %4628 = vmatpush1.msra.mxu0 %v3660
    %4629 = vmatprep.subr.mxu0 %v3668
    %4630 = vmatpush1.msra.mxu0 %v3667
    %4631 = vmatprep.subr.mxu0 %v3675
    %4632 = vmatpush1.msra.mxu0 %v3674
    %4633 = vmatprep.subr.mxu0 %v3682
    %4634 = vmatpush1.msra.mxu0 %v3681
    %4635 = vmatprep.subr.mxu0 %v3689
    %4636 = vmatpush1.msra.mxu0 %v3688
    %4637 = vmatprep.subr.mxu0 %v3696
    %4638 = vmatpush1.msra.mxu0 %v3695
    %4639 = vmatprep.subr.mxu0 %v3703
    %4640 = vmatpush1.msra.mxu0 %v3702
    %4641 = vmatprep.subr.mxu0 %v3710
    %4642 = vmatpush1.msra.mxu0 %v3709
    %4643 = vmatprep.subr.mxu0 %v3717
    %4644 = vmatpush1.msra.mxu0 %v3716
    %4645 = vmatprep.subr.mxu0 %v3724
    %4646 = vmatpush1.msra.mxu0 %v3723
    %4647 = vmatprep.subr.mxu0 %v3731
    %4648 = vmatpush1.msra.mxu0 %v3730
    %4649 = vmatprep.subr.mxu0 %v3738
    %4650 = vmatpush1.msra.mxu0 %v3737
    %4651 = vmatprep.subr.mxu0 %v3745
    %4652 = vmatpush1.msra.mxu0 %v3744
    %4653 = vmatprep.mubr.f32.mxu0 %v2784
    %4654 = vmatmul.mubr.f32.gmra.mrb[0].mxu0 %v2783
    %v4655 = vpop.f32.mrb[0].mxu0
    %v4656 = vadd.f32 %v4585, %v4655
    %v4657 = vpop.f32.mrb[0].mxu0
    %v4658 = vadd.f32 %v4587, %v4657
    %4659 = vdwg.mxu0
    %4660 = vmatprep.subr.mxu0 %v3752
    %4661 = vmatpush1.msra.mxu0 %v3751
    %4662 = vmatprep.subr.mxu0 %v3759
    %4663 = vmatpush1.msra.mxu0 %v3758
    %4664 = vmatprep.subr.mxu0 %v3766
    %4665 = vmatpush1.msra.mxu0 %v3765
    %4666 = vmatprep.subr.mxu0 %v3773
    %4667 = vmatpush1.msra.mxu0 %v3772
    %4668 = vmatprep.subr.mxu0 %v3780
    %4669 = vmatpush1.msra.mxu0 %v3779
    %4670 = vmatprep.subr.mxu0 %v3787
    %4671 = vmatpush1.msra.mxu0 %v3786
    %4672 = vmatprep.subr.mxu0 %v3794
    %4673 = vmatpush1.msra.mxu0 %v3793
    %4674 = vmatprep.subr.mxu0 %v3801
    %4675 = vmatpush1.msra.mxu0 %v3800
    %4676 = vmatprep.subr.mxu0 %v3808
    %4677 = vmatpush1.msra.mxu0 %v3807
    %4678 = vmatprep.subr.mxu0 %v3815
    %4679 = vmatpush1.msra.mxu0 %v3814
    %4680 = vmatprep.subr.mxu0 %v3822
    %4681 = vmatpush1.msra.mxu0 %v3821
    %4682 = vmatprep.subr.mxu0 %v3829
    %4683 = vmatpush1.msra.mxu0 %v3828
    %4684 = vmatprep.subr.mxu0 %v3836
    %4685 = vmatpush1.msra.mxu0 %v3835
    %4686 = vmatprep.subr.mxu0 %v3843
    %4687 = vmatpush1.msra.mxu0 %v3842
    %4688 = vmatprep.subr.mxu0 %v3850
    %4689 = vmatpush1.msra.mxu0 %v3849
    %4690 = vmatprep.subr.mxu0 %v3857
    %4691 = vmatpush1.msra.mxu0 %v3856
    %4692 = vmatprep.subr.mxu0 %v3864
    %4693 = vmatpush1.msra.mxu0 %v3863
    %4694 = vmatprep.subr.mxu0 %v3871
    %4695 = vmatpush1.msra.mxu0 %v3870
    %4696 = vmatprep.subr.mxu0 %v3878
    %4697 = vmatpush1.msra.mxu0 %v3877
    %4698 = vmatprep.subr.mxu0 %v3885
    %4699 = vmatpush1.msra.mxu0 %v3884
    %4700 = vmatprep.subr.mxu0 %v3892
    %4701 = vmatpush1.msra.mxu0 %v3891
    %4702 = vmatprep.subr.mxu0 %v3899
    %4703 = vmatpush1.msra.mxu0 %v3898
    %4704 = vmatprep.subr.mxu0 %v3906
    %4705 = vmatpush1.msra.mxu0 %v3905
    %4706 = vmatprep.subr.mxu0 %v3913
    %4707 = vmatpush1.msra.mxu0 %v3912
    %4708 = vmatprep.subr.mxu0 %v3920
    %4709 = vmatpush1.msra.mxu0 %v3919
    %4710 = vmatprep.subr.mxu0 %v3927
    %4711 = vmatpush1.msra.mxu0 %v3926
    %4712 = vmatprep.subr.mxu0 %v3934
    %4713 = vmatpush1.msra.mxu0 %v3933
    %4714 = vmatprep.subr.mxu0 %v3941
    %4715 = vmatpush1.msra.mxu0 %v3940
    %4716 = vmatprep.subr.mxu0 %v3948
    %4717 = vmatpush1.msra.mxu0 %v3947
    %4718 = vmatprep.subr.mxu0 %v3955
    %4719 = vmatpush1.msra.mxu0 %v3954
    %4720 = vmatprep.subr.mxu0 %v3962
    %4721 = vmatpush1.msra.mxu0 %v3961
    %4722 = vmatprep.subr.mxu0 %v3969
    %4723 = vmatpush1.msra.mxu0 %v3968
    %4724 = vmatprep.mubr.f32.mxu0 %v2786
    %4725 = vmatmul.mubr.f32.gmra.mrb[0].mxu0 %v2785
    %v4726 = vpop.f32.mrb[0].mxu0
    %v4727 = vadd.f32 %v4656, %v4726
    %v4728 = vpop.f32.mrb[0].mxu0
    %v4729 = vadd.f32 %v4658, %v4728
    %4730 = vdwg.mxu0
    %4731 = vmatprep.subr.mxu0 %v3976
    %4732 = vmatpush1.msra.mxu0 %v3975
    %4733 = vmatprep.subr.mxu0 %v3983
    %4734 = vmatpush1.msra.mxu0 %v3982
    %4735 = vmatprep.subr.mxu0 %v3990
    %4736 = vmatpush1.msra.mxu0 %v3989
    %4737 = vmatprep.subr.mxu0 %v3997
    %4738 = vmatpush1.msra.mxu0 %v3996
    %4739 = vmatprep.subr.mxu0 %v4004
    %4740 = vmatpush1.msra.mxu0 %v4003
    %4741 = vmatprep.subr.mxu0 %v4011
    %4742 = vmatpush1.msra.mxu0 %v4010
    %4743 = vmatprep.subr.mxu0 %v4018
    %4744 = vmatpush1.msra.mxu0 %v4017
    %4745 = vmatprep.subr.mxu0 %v4025
    %4746 = vmatpush1.msra.mxu0 %v4024
    %4747 = vmatprep.subr.mxu0 %v4032
    %4748 = vmatpush1.msra.mxu0 %v4031
    %4749 = vmatprep.subr.mxu0 %v4039
    %4750 = vmatpush1.msra.mxu0 %v4038
    %4751 = vmatprep.subr.mxu0 %v4046
    %4752 = vmatpush1.msra.mxu0 %v4045
    %4753 = vmatprep.subr.mxu0 %v4053
    %4754 = vmatpush1.msra.mxu0 %v4052
    %4755 = vmatprep.subr.mxu0 %v4060
    %4756 = vmatpush1.msra.mxu0 %v4059
    %4757 = vmatprep.subr.mxu0 %v4067
    %4758 = vmatpush1.msra.mxu0 %v4066
    %4759 = vmatprep.subr.mxu0 %v4074
    %4760 = vmatpush1.msra.mxu0 %v4073
    %4761 = vmatprep.subr.mxu0 %v4081
    %4762 = vmatpush1.msra.mxu0 %v4080
    %4763 = vmatprep.subr.mxu0 %v4088
    %4764 = vmatpush1.msra.mxu0 %v4087
    %4765 = vmatprep.subr.mxu0 %v4095
    %4766 = vmatpush1.msra.mxu0 %v4094
    %4767 = vmatprep.subr.mxu0 %v4102
    %4768 = vmatpush1.msra.mxu0 %v4101
    %4769 = vmatprep.subr.mxu0 %v4109
    %4770 = vmatpush1.msra.mxu0 %v4108
    %4771 = vmatprep.subr.mxu0 %v4116
    %4772 = vmatpush1.msra.mxu0 %v4115
    %4773 = vmatprep.subr.mxu0 %v4123
    %4774 = vmatpush1.msra.mxu0 %v4122
    %4775 = vmatprep.subr.mxu0 %v4130
    %4776 = vmatpush1.msra.mxu0 %v4129
    %4777 = vmatprep.subr.mxu0 %v4137
    %4778 = vmatpush1.msra.mxu0 %v4136
    %4779 = vmatprep.subr.mxu0 %v4144
    %4780 = vmatpush1.msra.mxu0 %v4143
    %4781 = vmatprep.subr.mxu0 %v4151
    %4782 = vmatpush1.msra.mxu0 %v4150
    %4783 = vmatprep.subr.mxu0 %v4158
    %4784 = vmatpush1.msra.mxu0 %v4157
    %4785 = vmatprep.subr.mxu0 %v4165
    %4786 = vmatpush1.msra.mxu0 %v4164
    %4787 = vmatprep.subr.mxu0 %v4172
    %4788 = vmatpush1.msra.mxu0 %v4171
    %4789 = vmatprep.subr.mxu0 %v4179
    %4790 = vmatpush1.msra.mxu0 %v4178
    %4791 = vmatprep.subr.mxu0 %v4186
    %4792 = vmatpush1.msra.mxu0 %v4185
    %4793 = vmatprep.subr.mxu0 %v4193
    %4794 = vmatpush1.msra.mxu0 %v4192
    %4795 = vmatprep.mubr.f32.mxu0 %v2788
    %4796 = vmatmul.mubr.f32.gmra.mrb[0].mxu0 %v2787
    %v4797 = vpop.f32.mrb[0].mxu0
    %v4798 = vadd.f32 %v4727, %v4797
    %v4799 = vpop.f32.mrb[0].mxu0
    %v4800 = vadd.f32 %v4729, %v4799
    %4801 = vdwg.mxu0
    %4802 = vmatprep.subr.mxu0 %v3306
    %4803 = vmatpush1.msra.mxu0 %v3305
    %4804 = vmatprep.subr.mxu0 %v3313
    %4805 = vmatpush1.msra.mxu0 %v3312
    %4806 = vmatprep.subr.mxu0 %v3320
    %4807 = vmatpush1.msra.mxu0 %v3319
    %4808 = vmatprep.subr.mxu0 %v3327
    %4809 = vmatpush1.msra.mxu0 %v3326
    %4810 = vmatprep.subr.mxu0 %v3334
    %4811 = vmatpush1.msra.mxu0 %v3333
    %4812 = vmatprep.subr.mxu0 %v3341
    %4813 = vmatpush1.msra.mxu0 %v3340
    %4814 = vmatprep.subr.mxu0 %v3348
    %4815 = vmatpush1.msra.mxu0 %v3347
    %4816 = vmatprep.subr.mxu0 %v3355
    %4817 = vmatpush1.msra.mxu0 %v3354
    %4818 = vmatprep.subr.mxu0 %v3362
    %4819 = vmatpush1.msra.mxu0 %v3361
    %4820 = vmatprep.subr.mxu0 %v3369
    %4821 = vmatpush1.msra.mxu0 %v3368
    %4822 = vmatprep.subr.mxu0 %v3376
    %4823 = vmatpush1.msra.mxu0 %v3375
    %4824 = vmatprep.subr.mxu0 %v3383
    %4825 = vmatpush1.msra.mxu0 %v3382
    %4826 = vmatprep.subr.mxu0 %v3390
    %4827 = vmatpush1.msra.mxu0 %v3389
    %4828 = vmatprep.subr.mxu0 %v3397
    %4829 = vmatpush1.msra.mxu0 %v3396
    %4830 = vmatprep.subr.mxu0 %v3404
    %4831 = vmatpush1.msra.mxu0 %v3403
    %4832 = vmatprep.subr.mxu0 %v3411
    %4833 = vmatpush1.msra.mxu0 %v3410
    %4834 = vmatprep.subr.mxu0 %v3418
    %4835 = vmatpush1.msra.mxu0 %v3417
    %4836 = vmatprep.subr.mxu0 %v3425
    %4837 = vmatpush1.msra.mxu0 %v3424
    %4838 = vmatprep.subr.mxu0 %v3432
    %4839 = vmatpush1.msra.mxu0 %v3431
    %4840 = vmatprep.subr.mxu0 %v3439
    %4841 = vmatpush1.msra.mxu0 %v3438
    %4842 = vmatprep.subr.mxu0 %v3446
    %4843 = vmatpush1.msra.mxu0 %v3445
    %4844 = vmatprep.subr.mxu0 %v3453
    %4845 = vmatpush1.msra.mxu0 %v3452
    %4846 = vmatprep.subr.mxu0 %v3460
    %4847 = vmatpush1.msra.mxu0 %v3459
    %4848 = vmatprep.subr.mxu0 %v3467
    %4849 = vmatpush1.msra.mxu0 %v3466
    %4850 = vmatprep.subr.mxu0 %v3474
    %4851 = vmatpush1.msra.mxu0 %v3473
    %4852 = vmatprep.subr.mxu0 %v3481
    %4853 = vmatpush1.msra.mxu0 %v3480
    %4854 = vmatprep.subr.mxu0 %v3488
    %4855 = vmatpush1.msra.mxu0 %v3487
    %4856 = vmatprep.subr.mxu0 %v3495
    %4857 = vmatpush1.msra.mxu0 %v3494
    %4858 = vmatprep.subr.mxu0 %v3502
    %4859 = vmatpush1.msra.mxu0 %v3501
    %4860 = vmatprep.subr.mxu0 %v3509
    %4861 = vmatpush1.msra.mxu0 %v3508
    %4862 = vmatprep.subr.mxu0 %v3516
    %4863 = vmatpush1.msra.mxu0 %v3515
    %4864 = vmatprep.subr.mxu0 %v3523
    %4865 = vmatpush1.msra.mxu0 %v3522
    %4866 = vmatprep.mubr.f32.mxu0 %v2782
    %4867 = vmatmul.mubr.f32.gmra.mrb[0].mxu0 %v2781
    %v4868 = vpop.f32.mrb[0].mxu0
    %v4869 = vadd.f32 %v4218, %v4868
    %v4870 = vpop.f32.mrb[0].mxu0
    %v4871 = vadd.f32 %v4222, %v4870
    %4872 = vdwg.mxu0
    %4873 = vmatprep.subr.mxu0 %v3530
    %4874 = vmatpush1.msra.mxu0 %v3529
    %4875 = vmatprep.subr.mxu0 %v3537
    %4876 = vmatpush1.msra.mxu0 %v3536
    %4877 = vmatprep.subr.mxu0 %v3544
    %4878 = vmatpush1.msra.mxu0 %v3543
    %4879 = vmatprep.subr.mxu0 %v3551
    %4880 = vmatpush1.msra.mxu0 %v3550
    %4881 = vmatprep.subr.mxu0 %v3558
    %4882 = vmatpush1.msra.mxu0 %v3557
    %4883 = vmatprep.subr.mxu0 %v3565
    %4884 = vmatpush1.msra.mxu0 %v3564
    %4885 = vmatprep.subr.mxu0 %v3572
    %4886 = vmatpush1.msra.mxu0 %v3571
    %4887 = vmatprep.subr.mxu0 %v3579
    %4888 = vmatpush1.msra.mxu0 %v3578
    %4889 = vmatprep.subr.mxu0 %v3586
    %4890 = vmatpush1.msra.mxu0 %v3585
    %4891 = vmatprep.subr.mxu0 %v3593
    %4892 = vmatpush1.msra.mxu0 %v3592
    %4893 = vmatprep.subr.mxu0 %v3600
    %4894 = vmatpush1.msra.mxu0 %v3599
    %4895 = vmatprep.subr.mxu0 %v3607
    %4896 = vmatpush1.msra.mxu0 %v3606
    %4897 = vmatprep.subr.mxu0 %v3614
    %4898 = vmatpush1.msra.mxu0 %v3613
    %4899 = vmatprep.subr.mxu0 %v3621
    %4900 = vmatpush1.msra.mxu0 %v3620
    %4901 = vmatprep.subr.mxu0 %v3628
    %4902 = vmatpush1.msra.mxu0 %v3627
    %4903 = vmatprep.subr.mxu0 %v3635
    %4904 = vmatpush1.msra.mxu0 %v3634
    %4905 = vmatprep.subr.mxu0 %v3642
    %4906 = vmatpush1.msra.mxu0 %v3641
    %4907 = vmatprep.subr.mxu0 %v3649
    %4908 = vmatpush1.msra.mxu0 %v3648
    %4909 = vmatprep.subr.mxu0 %v3656
    %4910 = vmatpush1.msra.mxu0 %v3655
    %4911 = vmatprep.subr.mxu0 %v3663
    %4912 = vmatpush1.msra.mxu0 %v3662
    %4913 = vmatprep.subr.mxu0 %v3670
    %4914 = vmatpush1.msra.mxu0 %v3669
    %4915 = vmatprep.subr.mxu0 %v3677
    %4916 = vmatpush1.msra.mxu0 %v3676
    %4917 = vmatprep.subr.mxu0 %v3684
    %4918 = vmatpush1.msra.mxu0 %v3683
    %4919 = vmatprep.subr.mxu0 %v3691
    %4920 = vmatpush1.msra.mxu0 %v3690
    %4921 = vmatprep.subr.mxu0 %v3698
    %4922 = vmatpush1.msra.mxu0 %v3697
    %4923 = vmatprep.subr.mxu0 %v3705
    %4924 = vmatpush1.msra.mxu0 %v3704
    %4925 = vmatprep.subr.mxu0 %v3712
    %4926 = vmatpush1.msra.mxu0 %v3711
    %4927 = vmatprep.subr.mxu0 %v3719
    %4928 = vmatpush1.msra.mxu0 %v3718
    %4929 = vmatprep.subr.mxu0 %v3726
    %4930 = vmatpush1.msra.mxu0 %v3725
    %4931 = vmatprep.subr.mxu0 %v3733
    %4932 = vmatpush1.msra.mxu0 %v3732
    %4933 = vmatprep.subr.mxu0 %v3740
    %4934 = vmatpush1.msra.mxu0 %v3739
    %4935 = vmatprep.subr.mxu0 %v3747
    %4936 = vmatpush1.msra.mxu0 %v3746
    %4937 = vmatprep.mubr.f32.mxu0 %v2784
    %4938 = vmatmul.mubr.f32.gmra.mrb[0].mxu0 %v2783
    %v4939 = vpop.f32.mrb[0].mxu0
    %v4940 = vadd.f32 %v4869, %v4939
    %v4941 = vpop.f32.mrb[0].mxu0
    %v4942 = vadd.f32 %v4871, %v4941
    %4943 = vdwg.mxu0
    %4944 = vmatprep.subr.mxu0 %v3754
    %4945 = vmatpush1.msra.mxu0 %v3753
    %4946 = vmatprep.subr.mxu0 %v3761
    %4947 = vmatpush1.msra.mxu0 %v3760
    %4948 = vmatprep.subr.mxu0 %v3768
    %4949 = vmatpush1.msra.mxu0 %v3767
    %4950 = vmatprep.subr.mxu0 %v3775
    %4951 = vmatpush1.msra.mxu0 %v3774
    %4952 = vmatprep.subr.mxu0 %v3782
    %4953 = vmatpush1.msra.mxu0 %v3781
    %4954 = vmatprep.subr.mxu0 %v3789
    %4955 = vmatpush1.msra.mxu0 %v3788
    %4956 = vmatprep.subr.mxu0 %v3796
    %4957 = vmatpush1.msra.mxu0 %v3795
    %4958 = vmatprep.subr.mxu0 %v3803
    %4959 = vmatpush1.msra.mxu0 %v3802
    %4960 = vmatprep.subr.mxu0 %v3810
    %4961 = vmatpush1.msra.mxu0 %v3809
    %4962 = vmatprep.subr.mxu0 %v3817
    %4963 = vmatpush1.msra.mxu0 %v3816
    %4964 = vmatprep.subr.mxu0 %v3824
    %4965 = vmatpush1.msra.mxu0 %v3823
    %4966 = vmatprep.subr.mxu0 %v3831
    %4967 = vmatpush1.msra.mxu0 %v3830
    %4968 = vmatprep.subr.mxu0 %v3838
    %4969 = vmatpush1.msra.mxu0 %v3837
    %4970 = vmatprep.subr.mxu0 %v3845
    %4971 = vmatpush1.msra.mxu0 %v3844
    %4972 = vmatprep.subr.mxu0 %v3852
    %4973 = vmatpush1.msra.mxu0 %v3851
    %4974 = vmatprep.subr.mxu0 %v3859
    %4975 = vmatpush1.msra.mxu0 %v3858
    %4976 = vmatprep.subr.mxu0 %v3866
    %4977 = vmatpush1.msra.mxu0 %v3865
    %4978 = vmatprep.subr.mxu0 %v3873
    %4979 = vmatpush1.msra.mxu0 %v3872
    %4980 = vmatprep.subr.mxu0 %v3880
    %4981 = vmatpush1.msra.mxu0 %v3879
    %4982 = vmatprep.subr.mxu0 %v3887
    %4983 = vmatpush1.msra.mxu0 %v3886
    %4984 = vmatprep.subr.mxu0 %v3894
    %4985 = vmatpush1.msra.mxu0 %v3893
    %4986 = vmatprep.subr.mxu0 %v3901
    %4987 = vmatpush1.msra.mxu0 %v3900
    %4988 = vmatprep.subr.mxu0 %v3908
    %4989 = vmatpush1.msra.mxu0 %v3907
    %4990 = vmatprep.subr.mxu0 %v3915
    %4991 = vmatpush1.msra.mxu0 %v3914
    %4992 = vmatprep.subr.mxu0 %v3922
    %4993 = vmatpush1.msra.mxu0 %v3921
    %4994 = vmatprep.subr.mxu0 %v3929
    %4995 = vmatpush1.msra.mxu0 %v3928
    %4996 = vmatprep.subr.mxu0 %v3936
    %4997 = vmatpush1.msra.mxu0 %v3935
    %4998 = vmatprep.subr.mxu0 %v3943
    %4999 = vmatpush1.msra.mxu0 %v3942
    %5000 = vmatprep.subr.mxu0 %v3950
    %5001 = vmatpush1.msra.mxu0 %v3949
    %5002 = vmatprep.subr.mxu0 %v3957
    %5003 = vmatpush1.msra.mxu0 %v3956
    %5004 = vmatprep.subr.mxu0 %v3964
    %5005 = vmatpush1.msra.mxu0 %v3963
    %5006 = vmatprep.subr.mxu0 %v3971
    %5007 = vmatpush1.msra.mxu0 %v3970
    %5008 = vmatprep.mubr.f32.mxu0 %v2786
    %5009 = vmatmul.mubr.f32.gmra.mrb[0].mxu0 %v2785
    %v5010 = vpop.f32.mrb[0].mxu0
    %v5011 = vadd.f32 %v4940, %v5010
    %v5012 = vpop.f32.mrb[0].mxu0
    %v5013 = vadd.f32 %v4942, %v5012
    %5014 = vdwg.mxu0
    %5015 = vmatprep.subr.mxu0 %v3978
    %5016 = vmatpush1.msra.mxu0 %v3977
    %5017 = vmatprep.subr.mxu0 %v3985
    %5018 = vmatpush1.msra.mxu0 %v3984
    %5019 = vmatprep.subr.mxu0 %v3992
    %5020 = vmatpush1.msra.mxu0 %v3991
    %5021 = vmatprep.subr.mxu0 %v3999
    %5022 = vmatpush1.msra.mxu0 %v3998
    %5023 = vmatprep.subr.mxu0 %v4006
    %5024 = vmatpush1.msra.mxu0 %v4005
    %5025 = vmatprep.subr.mxu0 %v4013
    %5026 = vmatpush1.msra.mxu0 %v4012
    %5027 = vmatprep.subr.mxu0 %v4020
    %5028 = vmatpush1.msra.mxu0 %v4019
    %5029 = vmatprep.subr.mxu0 %v4027
    %5030 = vmatpush1.msra.mxu0 %v4026
    %5031 = vmatprep.subr.mxu0 %v4034
    %5032 = vmatpush1.msra.mxu0 %v4033
    %5033 = vmatprep.subr.mxu0 %v4041
    %5034 = vmatpush1.msra.mxu0 %v4040
    %5035 = vmatprep.subr.mxu0 %v4048
    %5036 = vmatpush1.msra.mxu0 %v4047
    %5037 = vmatprep.subr.mxu0 %v4055
    %5038 = vmatpush1.msra.mxu0 %v4054
    %5039 = vmatprep.subr.mxu0 %v4062
    %5040 = vmatpush1.msra.mxu0 %v4061
    %5041 = vmatprep.subr.mxu0 %v4069
    %5042 = vmatpush1.msra.mxu0 %v4068
    %5043 = vmatprep.subr.mxu0 %v4076
    %5044 = vmatpush1.msra.mxu0 %v4075
    %5045 = vmatprep.subr.mxu0 %v4083
    %5046 = vmatpush1.msra.mxu0 %v4082
    %5047 = vmatprep.subr.mxu0 %v4090
    %5048 = vmatpush1.msra.mxu0 %v4089
    %5049 = vmatprep.subr.mxu0 %v4097
    %5050 = vmatpush1.msra.mxu0 %v4096
    %5051 = vmatprep.subr.mxu0 %v4104
    %5052 = vmatpush1.msra.mxu0 %v4103
    %5053 = vmatprep.subr.mxu0 %v4111
    %5054 = vmatpush1.msra.mxu0 %v4110
    %5055 = vmatprep.subr.mxu0 %v4118
    %5056 = vmatpush1.msra.mxu0 %v4117
    %5057 = vmatprep.subr.mxu0 %v4125
    %5058 = vmatpush1.msra.mxu0 %v4124
    %5059 = vmatprep.subr.mxu0 %v4132
    %5060 = vmatpush1.msra.mxu0 %v4131
    %5061 = vmatprep.subr.mxu0 %v4139
    %5062 = vmatpush1.msra.mxu0 %v4138
    %5063 = vmatprep.subr.mxu0 %v4146
    %5064 = vmatpush1.msra.mxu0 %v4145
    %5065 = vmatprep.subr.mxu0 %v4153
    %5066 = vmatpush1.msra.mxu0 %v4152
    %5067 = vmatprep.subr.mxu0 %v4160
    %5068 = vmatpush1.msra.mxu0 %v4159
    %5069 = vmatprep.subr.mxu0 %v4167
    %5070 = vmatpush1.msra.mxu0 %v4166
    %5071 = vmatprep.subr.mxu0 %v4174
    %5072 = vmatpush1.msra.mxu0 %v4173
    %5073 = vmatprep.subr.mxu0 %v4181
    %5074 = vmatpush1.msra.mxu0 %v4180
    %5075 = vmatprep.subr.mxu0 %v4188
    %5076 = vmatpush1.msra.mxu0 %v4187
    %5077 = vmatprep.subr.mxu0 %v4195
    %5078 = vmatpush1.msra.mxu0 %v4194
    %5079 = vmatprep.mubr.f32.mxu0 %v2788
    %5080 = vmatmul.mubr.f32.gmra.mrb[0].mxu0 %v2787
    %v5081 = vpop.f32.mrb[0].mxu0
    %v5082 = vadd.f32 %v5011, %v5081
    %v5083 = vpop.f32.mrb[0].mxu0
    %v5084 = vadd.f32 %v5013, %v5083
    %5085 = vdwg.mxu0
    %5086 = vmatprep.subr.mxu0 0.0
    %5087 = vmatpush1.msra.mxu0 %v3307
    %5088 = vmatprep.subr.mxu0 0.0
    %5089 = vmatpush1.msra.mxu0 %v3314
    %5090 = vmatprep.subr.mxu0 0.0
    %5091 = vmatpush1.msra.mxu0 %v3321
    %5092 = vmatprep.subr.mxu0 0.0
    %5093 = vmatpush1.msra.mxu0 %v3328
    %5094 = vmatprep.subr.mxu0 0.0
    %5095 = vmatpush1.msra.mxu0 %v3335
    %5096 = vmatprep.subr.mxu0 0.0
    %5097 = vmatpush1.msra.mxu0 %v3342
    %5098 = vmatprep.subr.mxu0 0.0
    %5099 = vmatpush1.msra.mxu0 %v3349
    %5100 = vmatprep.subr.mxu0 0.0
    %5101 = vmatpush1.msra.mxu0 %v3356
    %5102 = vmatprep.subr.mxu0 0.0
    %5103 = vmatpush1.msra.mxu0 %v3363
    %5104 = vmatprep.subr.mxu0 0.0
    %5105 = vmatpush1.msra.mxu0 %v3370
    %5106 = vmatprep.subr.mxu0 0.0
    %5107 = vmatpush1.msra.mxu0 %v3377
    %5108 = vmatprep.subr.mxu0 0.0
    %5109 = vmatpush1.msra.mxu0 %v3384
    %5110 = vmatprep.subr.mxu0 0.0
    %5111 = vmatpush1.msra.mxu0 %v3391
    %5112 = vmatprep.subr.mxu0 0.0
    %5113 = vmatpush1.msra.mxu0 %v3398
    %5114 = vmatprep.subr.mxu0 0.0
    %5115 = vmatpush1.msra.mxu0 %v3405
    %5116 = vmatprep.subr.mxu0 0.0
    %5117 = vmatpush1.msra.mxu0 %v3412
    %5118 = vmatprep.subr.mxu0 0.0
    %5119 = vmatpush1.msra.mxu0 %v3419
    %5120 = vmatprep.subr.mxu0 0.0
    %5121 = vmatpush1.msra.mxu0 %v3426
    %5122 = vmatprep.subr.mxu0 0.0
    %5123 = vmatpush1.msra.mxu0 %v3433
    %5124 = vmatprep.subr.mxu0 0.0
    %5125 = vmatpush1.msra.mxu0 %v3440
    %5126 = vmatprep.subr.mxu0 0.0
    %5127 = vmatpush1.msra.mxu0 %v3447
    %5128 = vmatprep.subr.mxu0 0.0
    %5129 = vmatpush1.msra.mxu0 %v3454
    %5130 = vmatprep.subr.mxu0 0.0
    %5131 = vmatpush1.msra.mxu0 %v3461
    %5132 = vmatprep.subr.mxu0 0.0
    %5133 = vmatpush1.msra.mxu0 %v3468
    %5134 = vmatprep.subr.mxu0 0.0
    %5135 = vmatpush1.msra.mxu0 %v3475
    %5136 = vmatprep.subr.mxu0 0.0
    %5137 = vmatpush1.msra.mxu0 %v3482
    %5138 = vmatprep.subr.mxu0 0.0
    %5139 = vmatpush1.msra.mxu0 %v3489
    %5140 = vmatprep.subr.mxu0 0.0
    %5141 = vmatpush1.msra.mxu0 %v3496
    %5142 = vmatprep.subr.mxu0 0.0
    %5143 = vmatpush1.msra.mxu0 %v3503
    %5144 = vmatprep.subr.mxu0 0.0
    %5145 = vmatpush1.msra.mxu0 %v3510
    %5146 = vmatprep.subr.mxu0 0.0
    %5147 = vmatpush1.msra.mxu0 %v3517
    %5148 = vmatprep.subr.mxu0 0.0
    %5149 = vmatpush1.msra.mxu0 %v3524
    %5150 = vmatprep.mubr.f32.mxu0 %v2782
    %5151 = vmatmul.mubr.f32.gmra.mrb[0].mxu0 %v2781
    %v5152 = vpop.f32.mrb[0].mxu0
    %v5153 = vadd.f32 %v4226, %v5152
    %v5154 = vpop.f32.mrb[0].mxu0
    %5155 = vdwg.mxu0
    %5156 = vmatprep.subr.mxu0 0.0
    %5157 = vmatpush1.msra.mxu0 %v3531
    %5158 = vmatprep.subr.mxu0 0.0
    %5159 = vmatpush1.msra.mxu0 %v3538
    %5160 = vmatprep.subr.mxu0 0.0
    %5161 = vmatpush1.msra.mxu0 %v3545
    %5162 = vmatprep.subr.mxu0 0.0
    %5163 = vmatpush1.msra.mxu0 %v3552
    %5164 = vmatprep.subr.mxu0 0.0
    %5165 = vmatpush1.msra.mxu0 %v3559
    %5166 = vmatprep.subr.mxu0 0.0
    %5167 = vmatpush1.msra.mxu0 %v3566
    %5168 = vmatprep.subr.mxu0 0.0
    %5169 = vmatpush1.msra.mxu0 %v3573
    %5170 = vmatprep.subr.mxu0 0.0
    %5171 = vmatpush1.msra.mxu0 %v3580
    %5172 = vmatprep.subr.mxu0 0.0
    %5173 = vmatpush1.msra.mxu0 %v3587
    %5174 = vmatprep.subr.mxu0 0.0
    %5175 = vmatpush1.msra.mxu0 %v3594
    %5176 = vmatprep.subr.mxu0 0.0
    %5177 = vmatpush1.msra.mxu0 %v3601
    %5178 = vmatprep.subr.mxu0 0.0
    %5179 = vmatpush1.msra.mxu0 %v3608
    %5180 = vmatprep.subr.mxu0 0.0
    %5181 = vmatpush1.msra.mxu0 %v3615
    %5182 = vmatprep.subr.mxu0 0.0
    %5183 = vmatpush1.msra.mxu0 %v3622
    %5184 = vmatprep.subr.mxu0 0.0
    %5185 = vmatpush1.msra.mxu0 %v3629
    %5186 = vmatprep.subr.mxu0 0.0
    %5187 = vmatpush1.msra.mxu0 %v3636
    %5188 = vmatprep.subr.mxu0 0.0
    %5189 = vmatpush1.msra.mxu0 %v3643
    %5190 = vmatprep.subr.mxu0 0.0
    %5191 = vmatpush1.msra.mxu0 %v3650
    %5192 = vmatprep.subr.mxu0 0.0
    %5193 = vmatpush1.msra.mxu0 %v3657
    %5194 = vmatprep.subr.mxu0 0.0
    %5195 = vmatpush1.msra.mxu0 %v3664
    %5196 = vmatprep.subr.mxu0 0.0
    %5197 = vmatpush1.msra.mxu0 %v3671
    %5198 = vmatprep.subr.mxu0 0.0
    %5199 = vmatpush1.msra.mxu0 %v3678
    %5200 = vmatprep.subr.mxu0 0.0
    %5201 = vmatpush1.msra.mxu0 %v3685
    %5202 = vmatprep.subr.mxu0 0.0
    %5203 = vmatpush1.msra.mxu0 %v3692
    %5204 = vmatprep.subr.mxu0 0.0
    %5205 = vmatpush1.msra.mxu0 %v3699
    %5206 = vmatprep.subr.mxu0 0.0
    %5207 = vmatpush1.msra.mxu0 %v3706
    %5208 = vmatprep.subr.mxu0 0.0
    %5209 = vmatpush1.msra.mxu0 %v3713
    %5210 = vmatprep.subr.mxu0 0.0
    %5211 = vmatpush1.msra.mxu0 %v3720
    %5212 = vmatprep.subr.mxu0 0.0
    %5213 = vmatpush1.msra.mxu0 %v3727
    %5214 = vmatprep.subr.mxu0 0.0
    %5215 = vmatpush1.msra.mxu0 %v3734
    %5216 = vmatprep.subr.mxu0 0.0
    %5217 = vmatpush1.msra.mxu0 %v3741
    %5218 = vmatprep.subr.mxu0 0.0
    %5219 = vmatpush1.msra.mxu0 %v3748
    %5220 = vmatprep.mubr.f32.mxu0 %v2784
    %5221 = vmatmul.mubr.f32.gmra.mrb[0].mxu0 %v2783
    %v5222 = vpop.f32.mrb[0].mxu0
    %v5223 = vadd.f32 %v5153, %v5222
    %v5224 = vpop.f32.mrb[0].mxu0
    %5225 = vdwg.mxu0
    %5226 = vmatprep.subr.mxu0 0.0
    %5227 = vmatpush1.msra.mxu0 %v3755
    %5228 = vmatprep.subr.mxu0 0.0
    %5229 = vmatpush1.msra.mxu0 %v3762
    %5230 = vmatprep.subr.mxu0 0.0
    %5231 = vmatpush1.msra.mxu0 %v3769
    %5232 = vmatprep.subr.mxu0 0.0
    %5233 = vmatpush1.msra.mxu0 %v3776
    %5234 = vmatprep.subr.mxu0 0.0
    %5235 = vmatpush1.msra.mxu0 %v3783
    %5236 = vmatprep.subr.mxu0 0.0
    %5237 = vmatpush1.msra.mxu0 %v3790
    %5238 = vmatprep.subr.mxu0 0.0
    %5239 = vmatpush1.msra.mxu0 %v3797
    %5240 = vmatprep.subr.mxu0 0.0
    %5241 = vmatpush1.msra.mxu0 %v3804
    %5242 = vmatprep.subr.mxu0 0.0
    %5243 = vmatpush1.msra.mxu0 %v3811
    %5244 = vmatprep.subr.mxu0 0.0
    %5245 = vmatpush1.msra.mxu0 %v3818
    %5246 = vmatprep.subr.mxu0 0.0
    %5247 = vmatpush1.msra.mxu0 %v3825
    %5248 = vmatprep.subr.mxu0 0.0
    %5249 = vmatpush1.msra.mxu0 %v3832
    %5250 = vmatprep.subr.mxu0 0.0
    %5251 = vmatpush1.msra.mxu0 %v3839
    %5252 = vmatprep.subr.mxu0 0.0
    %5253 = vmatpush1.msra.mxu0 %v3846
    %5254 = vmatprep.subr.mxu0 0.0
    %5255 = vmatpush1.msra.mxu0 %v3853
    %5256 = vmatprep.subr.mxu0 0.0
    %5257 = vmatpush1.msra.mxu0 %v3860
    %5258 = vmatprep.subr.mxu0 0.0
    %5259 = vmatpush1.msra.mxu0 %v3867
    %5260 = vmatprep.subr.mxu0 0.0
    %5261 = vmatpush1.msra.mxu0 %v3874
    %5262 = vmatprep.subr.mxu0 0.0
    %5263 = vmatpush1.msra.mxu0 %v3881
    %5264 = vmatprep.subr.mxu0 0.0
    %5265 = vmatpush1.msra.mxu0 %v3888
    %5266 = vmatprep.subr.mxu0 0.0
    %5267 = vmatpush1.msra.mxu0 %v3895
    %5268 = vmatprep.subr.mxu0 0.0
    %5269 = vmatpush1.msra.mxu0 %v3902
    %5270 = vmatprep.subr.mxu0 0.0
    %5271 = vmatpush1.msra.mxu0 %v3909
    %5272 = vmatprep.subr.mxu0 0.0
    %5273 = vmatpush1.msra.mxu0 %v3916
    %5274 = vmatprep.subr.mxu0 0.0
    %5275 = vmatpush1.msra.mxu0 %v3923
    %5276 = vmatprep.subr.mxu0 0.0
    %5277 = vmatpush1.msra.mxu0 %v3930
    %5278 = vmatprep.subr.mxu0 0.0
    %5279 = vmatpush1.msra.mxu0 %v3937
    %5280 = vmatprep.subr.mxu0 0.0
    %5281 = vmatpush1.msra.mxu0 %v3944
    %5282 = vmatprep.subr.mxu0 0.0
    %5283 = vmatpush1.msra.mxu0 %v3951
    %5284 = vmatprep.subr.mxu0 0.0
    %5285 = vmatpush1.msra.mxu0 %v3958
    %5286 = vmatprep.subr.mxu0 0.0
    %5287 = vmatpush1.msra.mxu0 %v3965
    %5288 = vmatprep.subr.mxu0 0.0
    %5289 = vmatpush1.msra.mxu0 %v3972
    %5290 = vmatprep.mubr.f32.mxu0 %v2786
    %5291 = vmatmul.mubr.f32.gmra.mrb[0].mxu0 %v2785
    %v5292 = vpop.f32.mrb[0].mxu0
    %v5293 = vadd.f32 %v5223, %v5292
    %v5294 = vpop.f32.mrb[0].mxu0
    %5295 = vdwg.mxu0
    %5296 = vmatprep.subr.mxu0 0.0
    %5297 = vmatpush1.msra.mxu0 %v3979
    %5298 = vmatprep.subr.mxu0 0.0
    %5299 = vmatpush1.msra.mxu0 %v3986
    %5300 = vmatprep.subr.mxu0 0.0
    %5301 = vmatpush1.msra.mxu0 %v3993
    %5302 = vmatprep.subr.mxu0 0.0
    %5303 = vmatpush1.msra.mxu0 %v4000
    %5304 = vmatprep.subr.mxu0 0.0
    %5305 = vmatpush1.msra.mxu0 %v4007
    %5306 = vmatprep.subr.mxu0 0.0
    %5307 = vmatpush1.msra.mxu0 %v4014
    %5308 = vmatprep.subr.mxu0 0.0
    %5309 = vmatpush1.msra.mxu0 %v4021
    %5310 = vmatprep.subr.mxu0 0.0
    %5311 = vmatpush1.msra.mxu0 %v4028
    %5312 = vmatprep.subr.mxu0 0.0
    %5313 = vmatpush1.msra.mxu0 %v4035
    %5314 = vmatprep.subr.mxu0 0.0
    %5315 = vmatpush1.msra.mxu0 %v4042
    %5316 = vmatprep.subr.mxu0 0.0
    %5317 = vmatpush1.msra.mxu0 %v4049
    %5318 = vmatprep.subr.mxu0 0.0
    %5319 = vmatpush1.msra.mxu0 %v4056
    %5320 = vmatprep.subr.mxu0 0.0
    %5321 = vmatpush1.msra.mxu0 %v4063
    %5322 = vmatprep.subr.mxu0 0.0
    %5323 = vmatpush1.msra.mxu0 %v4070
    %5324 = vmatprep.subr.mxu0 0.0
    %5325 = vmatpush1.msra.mxu0 %v4077
    %5326 = vmatprep.subr.mxu0 0.0
    %5327 = vmatpush1.msra.mxu0 %v4084
    %5328 = vmatprep.subr.mxu0 0.0
    %5329 = vmatpush1.msra.mxu0 %v4091
    %5330 = vmatprep.subr.mxu0 0.0
    %5331 = vmatpush1.msra.mxu0 %v4098
    %5332 = vmatprep.subr.mxu0 0.0
    %5333 = vmatpush1.msra.mxu0 %v4105
    %5334 = vmatprep.subr.mxu0 0.0
    %5335 = vmatpush1.msra.mxu0 %v4112
    %5336 = vmatprep.subr.mxu0 0.0
    %5337 = vmatpush1.msra.mxu0 %v4119
    %5338 = vmatprep.subr.mxu0 0.0
    %5339 = vmatpush1.msra.mxu0 %v4126
    %5340 = vmatprep.subr.mxu0 0.0
    %5341 = vmatpush1.msra.mxu0 %v4133
    %5342 = vmatprep.subr.mxu0 0.0
    %5343 = vmatpush1.msra.mxu0 %v4140
    %5344 = vmatprep.subr.mxu0 0.0
    %5345 = vmatpush1.msra.mxu0 %v4147
    %5346 = vmatprep.subr.mxu0 0.0
    %5347 = vmatpush1.msra.mxu0 %v4154
    %5348 = vmatprep.subr.mxu0 0.0
    %5349 = vmatpush1.msra.mxu0 %v4161
    %5350 = vmatprep.subr.mxu0 0.0
    %5351 = vmatpush1.msra.mxu0 %v4168
    %5352 = vmatprep.subr.mxu0 0.0
    %5353 = vmatpush1.msra.mxu0 %v4175
    %5354 = vmatprep.subr.mxu0 0.0
    %5355 = vmatpush1.msra.mxu0 %v4182
    %5356 = vmatprep.subr.mxu0 0.0
    %5357 = vmatpush1.msra.mxu0 %v4189
    %5358 = vmatprep.subr.mxu0 0.0
    %5359 = vmatpush1.msra.mxu0 %v4196
    %5360 = vmatprep.mubr.f32.mxu0 %v2788
    %5361 = vmatmul.mubr.f32.gmra.mrb[0].mxu0 %v2787
    %v5362 = vpop.f32.mrb[0].mxu0
    %v5363 = vadd.f32 %v5293, %v5362
    %v5364 = vpop.f32.mrb[0].mxu0
    %5365 = vdwg.mxu0
    %v5366 = vxor.u32 %v4514, 2147483648
    %v5367 = vxor.u32 %v4516, 2147483648
    %v5368 = vxor.u32 %v4798, 2147483648
    %v5369 = vxor.u32 %v4800, 2147483648
    %v5370 = vxor.u32 %v5082, 2147483648
    %v5371 = vxor.u32 %v5084, 2147483648
    %v5372 = vxor.u32 %v5363, 2147483648
    %v5373 = vmul.f32 %v5366, 1.442695
    %v5374 = vpow.pop %v5373
    %v5375 = vmul.f32 %v5367, 1.442695
    %v5376 = vpow.pop %v5375
    %v5377 = vmul.f32 %v5368, 1.442695
    %v5378 = vpow.pop %v5377
    %v5379 = vmul.f32 %v5369, 1.442695
    %v5380 = vpow.pop %v5379
    %v5381 = vmul.f32 %v5370, 1.442695
    %v5382 = vpow.pop %v5381
    %v5383 = vmul.f32 %v5371, 1.442695
    %v5384 = vpow.pop %v5383
    %v5385 = vmul.f32 %v5372, 1.442695
    %v5386 = vpow.pop %v5385
    %v5387 = vadd.f32 %v5374, 1.0
    %v5388 = vadd.f32 %v5376, 1.0
    %v5389 = vadd.f32 %v5378, 1.0
    %v5390 = vadd.f32 %v5380, 1.0
    %v5391 = vadd.f32 %v5382, 1.0
    %v5392 = vadd.f32 %v5384, 1.0
    %v5393 = vadd.f32 %v5386, 1.0
    %v5394 = vrcp.pop %v5387
    %v5395 = vmul.f32 1.0, %v5394
    %v5396 = vrcp.pop %v5388
    %v5397 = vmul.f32 1.0, %v5396
    %v5398 = vrcp.pop %v5389
    %v5399 = vmul.f32 1.0, %v5398
    %v5400 = vrcp.pop %v5390
    %v5401 = vmul.f32 1.0, %v5400
    %v5402 = vrcp.pop %v5391
    %v5403 = vmul.f32 1.0, %v5402
    %v5404 = vrcp.pop %v5392
    %v5405 = vmul.f32 1.0, %v5404
    %v5406 = vrcp.pop %v5393
    %v5407 = vmul.f32 1.0, %v5406
    %5408 = vst [vmem:[#allocation32] sm:$0xff] %v5395
    %5409 = vst [vmem:[#allocation32 + $0x8] sm:$0xff] %v5397
    %5410 = vst [vmem:[#allocation32 + $0x10] sm:$0xff] %v5399
    %5411 = vst [vmem:[#allocation32 + $0x18] sm:$0xff] %v5401
    %5412 = vst [vmem:[#allocation32 + $0x20] sm:$0xff] %v5403
    %5413 = vst [vmem:[#allocation32 + $0x28] sm:$0xff] %v5405
    %5414 = vst [vmem:[#allocation32 + $0x30] sm:$0xff] %v5407
    // Predicated region
    $region154: #{tpu_custom_call.1} parent=1 // pred_check
      _
    $region155: #{tpu_custom_call.1} parent=1 // pred_check_branch
      %5416 = sbr.rel (0) target = $region157
    $region156: #{tpu_custom_call.1} parent=1 // pred_region
      %s5418 = ssub.s32 896, 896
      %5419 = vsyncadd [#allocation4], %s5418
      %s5421 = sshll.u32 [#allocation32], 4
      %s5422 = int_to_ptr.vmem [resolvable:$true] %s5421
      %5424 = dma.vmem_to_hbm [thread:$0]  %s5422, 896, %s19, [#allocation4]
    $region157: #{tpu_custom_call.1} parent=1 // pred_fallthru
      _
    // Predicated region
    $region158: #{tpu_custom_call.1} parent=1 // pred_check
      _
    $region159: #{tpu_custom_call.1} parent=1 // pred_check_branch
      %5426 = sbr.rel (0) target = $region161
    $region160: #{tpu_custom_call.1} parent=1 // pred_region
      %5427 = dma.done [#allocation4], 896
    $region161: #{tpu_custom_call.1} parent=1 // pred_fallthru
      _
    %5428 = vsyncpa [#allocation3], 1
    %5429 = vsyncpa [#allocation6], 1
    %5430 = vsyncpa [#allocation9], 1
    %5431 = vsyncpa [#allocation12], 1
    %5432 = vsyncpa [#allocation15], 1
    %5433 = vsyncpa [#allocation18], 1
    %5434 = vsyncpa [#allocation21], 1
    %5435 = vsyncpa [#allocation24], 1
    %5436 = vsyncpa [#allocation27], 1
    %5437 = vsyncpa [#allocation30], 1
    %5438 = vsyncpa [#allocation4], 1

</llo_original>
